<compile_context>
chip_gen: v5e
topology: v5e:2x2
jax: 0.10.0
libtpu: 0.0.40
codegen_flags: <defaults>
</compile_context>

<pallas_src>
import functools

import jax
import jax.numpy as jnp
from jax.experimental import pallas as pl
from jax.experimental.pallas import tpu as pltpu


def _layernorm(x, gamma, beta, eps=1e-5):
    mu = jnp.mean(x, axis=-1, keepdims=True)
    var = jnp.mean((x - mu) ** 2, axis=-1, keepdims=True)
    return (x - mu) * jax.lax.rsqrt(var + eps) * gamma + beta


# ---------------------------------------------------------------------------
# Fused bi-encoder kernel: grid = (encoder, layer).
# Activation resident in VMEM scratch across the layer axis; pooled stats
# written to the (small) output block at the last layer only.
# ---------------------------------------------------------------------------
def fused_encoder_kernel(num_heads,
                         x_ref, wqkv_ref, bqkv_ref, wo_ref, bo_ref,
                         g1_ref, be1_ref, w1_ref, bf1_ref,
                         w2_ref, bf2_ref, g2_ref, be2_ref,
                         pooled_ref, act_ref, ctx_ref):
    B, T, D = act_ref.shape
    N = B * T
    H = num_heads
    dh = D // H
    layer = pl.program_id(1)
    nlayers = pl.num_programs(1)

    # Layer 0: seed the resident activation scratch with the input features.
    @pl.when(layer == 0)
    def _init():
        act_ref[...] = x_ref[...].astype(jnp.float32)

    x = act_ref[...].reshape(N, D)                      # (B*T, D) f32
    xb = x.astype(jnp.bfloat16)

    # --- self attention -----------------------------------------------------
    # One lane-dense QKV matmul.  1/sqrt(dh) already folded into Q columns.
    qkv = jnp.dot(xb, wqkv_ref[0, 0],
                  preferred_element_type=jnp.float32) + bqkv_ref[0, 0]   # (N, 3D)

    # Per-head scores / softmax / context with batch kept as a batch axis
    # (no (B*T)^2 scores, no block-diagonal mask).  H is a short static loop.
    for h in range(H):
        qh = qkv[:, h * dh:(h + 1) * dh].reshape(B, T, dh).astype(jnp.bfloat16)
        kh = qkv[:, D + h * dh:D + (h + 1) * dh].reshape(B, T, dh).astype(jnp.bfloat16)
        vh = qkv[:, 2 * D + h * dh:2 * D + (h + 1) * dh].reshape(B, T, dh).astype(jnp.bfloat16)

        s = jnp.einsum('bqd,bkd->bqk', qh, kh,
                       preferred_element_type=jnp.float32)               # (B, T, T) f32
        m = jnp.max(s, axis=-1, keepdims=True)
        p = jnp.exp(s - m)
        # exact (non-approx) reciprocal of the small (B,T,1) denominator
        p = p * (1.0 / jnp.sum(p, axis=-1, keepdims=True))
        c = jnp.einsum('bqk,bkd->bqd', p.astype(jnp.bfloat16), vh,
                       preferred_element_type=jnp.float32)               # (B, T, dh)
        ctx_ref[:, h * dh:(h + 1) * dh] = c.reshape(N, dh)

    # Single full-depth output projection over the head-concatenated context.
    attn = jnp.dot(ctx_ref[...].astype(jnp.bfloat16), wo_ref[0, 0],
                   preferred_element_type=jnp.float32) + bo_ref[0, 0]    # (N, D)

    # residual + LayerNorm (post-norm); dropout = identity (eval)
    y = _layernorm(x + attn, g1_ref[0, 0], be1_ref[0, 0])

    # --- feed-forward ---------------------------------------------------------
    hdn = jnp.maximum(
        jnp.dot(y.astype(jnp.bfloat16), w1_ref[0, 0],
                preferred_element_type=jnp.float32) + bf1_ref[0, 0], 0.0)
    ff = jnp.dot(hdn.astype(jnp.bfloat16), w2_ref[0, 0],
                 preferred_element_type=jnp.float32) + bf2_ref[0, 0]
    z = _layernorm(y + ff, g2_ref[0, 0], be2_ref[0, 0])

    act_ref[...] = z.reshape(B, T, D)

    # Last layer: stats pooling fused into the encoder — only (B, 2D) pooled
    # stats (mean ++ unbiased std, matching torch.std) ever reach HBM.
    @pl.when(layer == nlayers - 1)
    def _pool():
        z3 = z.reshape(B, T, D)
        mean = jnp.mean(z3, axis=1)                      # (B, D)
        dev = z3 - mean[:, None, :]
        var = jnp.sum(dev * dev, axis=1) / (T - 1)       # requires T > 1
        pooled_ref[0, :, 0:D] = mean
        pooled_ref[0, :, D:2 * D] = jnp.sqrt(var)


# ---------------------------------------------------------------------------
# Head kernel: fcM/fcF on pooled stats, gender gate, age regression
# ---------------------------------------------------------------------------
def head_kernel(pooled_ref, wfcm_ref, bfcm_ref, wfcf_ref, bfcf_ref,
                wg_ref, bg_ref, wa_ref, ba_ref,
                age_ref, gender_ref):
    HID = wfcm_ref.shape[1]

    statsM = pooled_ref[0]                               # (B, 2D) from encoder_M
    statsF = pooled_ref[1]                               # (B, 2D) from encoder_F

    xM = jnp.dot(statsM, wfcm_ref[...],
                 preferred_element_type=jnp.float32) + bfcm_ref[...]     # (B, HID)
    xF = jnp.dot(statsF, wfcf_ref[...],
                 preferred_element_type=jnp.float32) + bfcf_ref[...]

    # Width-1 projections as VPU lane reductions (weights stored transposed).
    wg = wg_ref[...]                                     # (1, 2*HID)
    glogit = (jnp.sum(xM * wg[:, 0:HID], axis=-1, keepdims=True)
              + jnp.sum(xF * wg[:, HID:2 * HID], axis=-1, keepdims=True)
              + bg_ref[...])
    gender = 1.0 / (1.0 + jnp.exp(-glogit))              # (B, 1)

    out = (1.0 - gender) * xM + gender * xF
    age = jnp.sum(out * wa_ref[...], axis=-1, keepdims=True) + ba_ref[...]

    age_ref[...] = age
    gender_ref[...] = gender


# ---------------------------------------------------------------------------
# Parameter init (deterministic, synthetic) — weights pre-packed for the
# fused kernel: stacked over (encoder=2, layer=L), natural (in, out) matmul
# layouts, 1/sqrt(dh) folded into Q, bf16 matmul weights, f32 biases / LN.
# ---------------------------------------------------------------------------
def init_params(key, D, FF, HID, num_layers, num_heads, w_dtype=jnp.bfloat16):
    E, L = 2, num_layers
    dh = D // num_heads
    scale = float(dh) ** -0.5
    ks = iter(jax.random.split(key, 32))

    def nrm(shape, s=0.05):
        return s * jax.random.normal(next(ks), shape, jnp.float32)

    wqkv = nrm((E, L, D, 3 * D))                         # natural (in, 3*out)
    wqkv = wqkv.at[..., 0:D].multiply(scale)             # fold 1/sqrt(dh) into Q cols
    bqkv = jnp.zeros((E, L, 1, 3 * D), jnp.float32)
    bqkv = bqkv.at[..., 0:D].multiply(scale)             # (zero here; keeps fold exact)

    enc = dict(
        wqkv=wqkv.astype(w_dtype), bqkv=bqkv,
        wo=nrm((E, L, D, D)).astype(w_dtype), bo=jnp.zeros((E, L, 1, D), jnp.float32),
        g1=jnp.ones((E, L, 1, D), jnp.float32), be1=jnp.zeros((E, L, 1, D), jnp.float32),
        w1=nrm((E, L, D, FF)).astype(w_dtype), b1=jnp.zeros((E, L, 1, FF), jnp.float32),
        w2=nrm((E, L, FF, D)).astype(w_dtype), b2=jnp.zeros((E, L, 1, D), jnp.float32),
        g2=jnp.ones((E, L, 1, D), jnp.float32), be2=jnp.zeros((E, L, 1, D), jnp.float32),
    )
    head = dict(
        wfcm=nrm((2 * D, HID)), bfcm=jnp.zeros((1, HID), jnp.float32),
        wfcf=nrm((2 * D, HID)), bfcf=jnp.zeros((1, HID), jnp.float32),
        wg=nrm((1, 2 * HID)), bg=jnp.zeros((1, 1), jnp.float32),   # stored transposed
        wa=nrm((1, HID)), ba=jnp.zeros((1, 1), jnp.float32),       # stored transposed
    )
    return {"enc": enc, "head": head}


# ---------------------------------------------------------------------------
# Full forward
# ---------------------------------------------------------------------------
_ENC_ORDER = ("wqkv", "bqkv", "wo", "bo", "g1", "be1",
              "w1", "b1", "w2", "b2", "g2", "be2")
_HEAD_ORDER = ("wfcm", "bfcm", "wfcf", "bfcf", "wg", "bg", "wa", "ba")


def model_forward(x, params, num_heads):
    # TODO(synk): the s3prl wav2vec2 upstream (torch.hub) and the per-sample
    # torch.narrow on raw waveforms are not reproduced; x is already the
    # 'hidden_state_9' feature tensor (B, T, D).
    B, T, D = x.shape
    enc, head = params["enc"], params["head"]
    L = enc["w1"].shape[1]

    enc_args = [enc[k] for k in _ENC_ORDER]

    def stacked(a):
        tail = a.shape[2:]
        nd = len(tail)
        return pl.BlockSpec((1, 1) + tail, lambda e, l, nd=nd: (e, l) + (0,) * nd)

    pooled = pl.pallas_call(
        functools.partial(fused_encoder_kernel, num_heads),
        out_shape=jax.ShapeDtypeStruct((2, B, 2 * D), jnp.float32),
        grid=(2, L),
        in_specs=[pl.BlockSpec((B, T, D), lambda e, l: (0, 0, 0))]
                 + [stacked(a) for a in enc_args],
        out_specs=pl.BlockSpec((1, B, 2 * D), lambda e, l: (e, 0, 0)),
        scratch_shapes=[pltpu.VMEM((B, T, D), jnp.float32),        # resident activation
                        pltpu.VMEM((B * T, D), jnp.float32)],      # head-concat context
        compiler_params=pltpu.CompilerParams(
            dimension_semantics=("parallel", "arbitrary"),
            # 48 MiB fits every generation (incl. v7x's 64 MiB/TC); at
            # production D=768/FF=2048 budget per-TC and retune per gen.
            vmem_limit_bytes=48 * 1024 * 1024),
    )(x, *enc_args)                                      # (2, B, 2D): [0]=M, [1]=F

    head_args = [head[k] for k in _HEAD_ORDER]

    def full(a):
        nd = a.ndim
        return pl.BlockSpec(a.shape, lambda i, nd=nd: (0,) * nd)

    age, gender = pl.pallas_call(
        head_kernel,
        out_shape=(jax.ShapeDtypeStruct((B, 1), jnp.float32),
                   jax.ShapeDtypeStruct((B, 1), jnp.float32)),
        grid=(1,),
        in_specs=[full(pooled)] + [full(a) for a in head_args],
        out_specs=[pl.BlockSpec((B, 1), lambda i: (0, 0)),
                   pl.BlockSpec((B, 1), lambda i: (0, 0))],
    )(pooled, *head_args)
    return age, gender


if __name__ == "__main__":
    # Small, module-consistent shapes (feature_dim scaled 768->128,
    # ffn 2048->256, fc hidden 1024->128; nhead=8, num_layers=6 kept).
    B, T, D, H, FF, HID, L = 2, 16, 128, 8, 256, 128, 6

    key = jax.random.PRNGKey(0)
    k_x, k_p = jax.random.split(key)

    x = jax.random.normal(k_x, (B, T, D), jnp.float32)   # 'hidden_state_9' features
    x_len = jnp.full((B,), T, jnp.int32)                  # unused (see TODO above)

    params = init_params(k_p, D, FF, HID, L, H)

    age, gender = model_forward(x, params, num_heads=H)
    jax.block_until_ready((age, gender))

    assert age.shape == (B, 1) and gender.shape == (B, 1)
    assert bool(jnp.all(jnp.isfinite(age))) and bool(jnp.all(jnp.isfinite(gender)))
    print("KERNEL_OK")
</pallas_src>

<mosaic_0001>
module attributes {stable_mosaic.version = 11 : i64} {
  func.func @fused_encoder_kernel(%arg0: i32, %arg1: i32, %arg2: memref<2x16x128xf32, #tpu.memory_space<vmem>>, %arg3: memref<1x1x128x384xbf16, #tpu.memory_space<vmem>>, %arg4: memref<1x1x1x384xf32, #tpu.memory_space<vmem>>, %arg5: memref<1x1x128x128xbf16, #tpu.memory_space<vmem>>, %arg6: memref<1x1x1x128xf32, #tpu.memory_space<vmem>>, %arg7: memref<1x1x1x128xf32, #tpu.memory_space<vmem>>, %arg8: memref<1x1x1x128xf32, #tpu.memory_space<vmem>>, %arg9: memref<1x1x128x256xbf16, #tpu.memory_space<vmem>>, %arg10: memref<1x1x1x256xf32, #tpu.memory_space<vmem>>, %arg11: memref<1x1x256x128xbf16, #tpu.memory_space<vmem>>, %arg12: memref<1x1x1x128xf32, #tpu.memory_space<vmem>>, %arg13: memref<1x1x1x128xf32, #tpu.memory_space<vmem>>, %arg14: memref<1x1x1x128xf32, #tpu.memory_space<vmem>>, %arg15: memref<1x2x256xf32, #tpu.memory_space<vmem>>, %arg16: memref<2x16x128xf32, #tpu.memory_space<vmem>>, %arg17: memref<32x128xf32, #tpu.memory_space<vmem>>) attributes {dimension_semantics = [#tpu.dimension_semantics<parallel>, #tpu.dimension_semantics<arbitrary>], iteration_bounds = array<i64: 2, 6>, scalar_prefetch = 0 : i64, scratch_operands = 2 : i64, tpu.core_type = #tpu.core_type<tc>, window_params = [{pipeline_mode = #tpu.pipeline_mode<synchronous>, transform_indices = @transform_0, window_bounds = array<i64: 2, 16, 128>}, {transform_indices = @transform_1, window_bounds = array<i64: 1, 1, 128, 384>}, {transform_indices = @transform_2, window_bounds = array<i64: 1, 1, 1, 384>}, {transform_indices = @transform_3, window_bounds = array<i64: 1, 1, 128, 128>}, {transform_indices = @transform_4, window_bounds = array<i64: 1, 1, 1, 128>}, {transform_indices = @transform_5, window_bounds = array<i64: 1, 1, 1, 128>}, {transform_indices = @transform_6, window_bounds = array<i64: 1, 1, 1, 128>}, {transform_indices = @transform_7, window_bounds = array<i64: 1, 1, 128, 256>}, {transform_indices = @transform_8, window_bounds = array<i64: 1, 1, 1, 256>}, {transform_indices = @transform_9, window_bounds = array<i64: 1, 1, 256, 128>}, {transform_indices = @transform_10, window_bounds = array<i64: 1, 1, 1, 128>}, {transform_indices = @transform_11, window_bounds = array<i64: 1, 1, 1, 128>}, {transform_indices = @transform_12, window_bounds = array<i64: 1, 1, 1, 128>}, {transform_indices = @transform_13, window_bounds = array<i64: 1, 2, 256>}]} {
    %c0_i32 = arith.constant 0 : i32
    %0 = arith.cmpi eq, %arg1, %c0_i32 : i32
    %1 = arith.extui %0 : i1 to i32
    %c0_i32_0 = arith.constant 0 : i32
    %2 = arith.cmpi ne, %1, %c0_i32_0 : i32
    scf.if %2 {
      %c0_120 = arith.constant 0 : index
      %c0_121 = arith.constant 0 : index
      %c0_122 = arith.constant 0 : index
      %299 = vector.load %arg2[%c0_120, %c0_121, %c0_122] : memref<2x16x128xf32, #tpu.memory_space<vmem>>, vector<2x16x128xf32>
      %c0_123 = arith.constant 0 : index
      %c0_124 = arith.constant 0 : index
      %c0_125 = arith.constant 0 : index
      %300 = vector.load %arg16[%c0_123, %c0_124, %c0_125] : memref<2x16x128xf32, #tpu.memory_space<vmem>>, vector<2x16x128xf32>
      tpu.vector_store %arg16[%c0_123, %c0_124, %c0_125], %299 {strides = array<i32>} : memref<2x16x128xf32, #tpu.memory_space<vmem>>, vector<2x16x128xf32>,
    } else {
    }
    %c0 = arith.constant 0 : index
    %c0_1 = arith.constant 0 : index
    %c0_2 = arith.constant 0 : index
    %3 = vector.load %arg16[%c0, %c0_1, %c0_2] : memref<2x16x128xf32, #tpu.memory_space<vmem>>, vector<2x16x128xf32>
    %4 = vector.shape_cast %3 : vector<2x16x128xf32> to vector<32x128xf32>
    %5 = arith.truncf %4 : vector<32x128xf32> to vector<32x128xbf16>
    %c0_3 = arith.constant 0 : index
    %c0_4 = arith.constant 0 : index
    %c0_5 = arith.constant 0 : index
    %c0_6 = arith.constant 0 : index
    %6 = vector.load %arg3[%c0_3, %c0_4, %c0_5, %c0_6] : memref<1x1x128x384xbf16, #tpu.memory_space<vmem>>, vector<1x1x128x384xbf16>
    %7 = vector.shape_cast %6 : vector<1x1x128x384xbf16> to vector<128x384xbf16>
    %cst = arith.constant dense<0.000000e+00> : vector<32x384xf32>
    %8 = tpu.matmul %5, %7, %cst {dimension_numbers = #tpu.dot_dimension_numbers<[1], [0], [0], [1], [0, 0, 1, 1], [], []>} : vector<32x128xbf16>, vector<128x384xbf16>, vector<32x384xf32> -> vector<32x384xf32>
    %c0_7 = arith.constant 0 : index
    %c0_8 = arith.constant 0 : index
    %c0_9 = arith.constant 0 : index
    %c0_10 = arith.constant 0 : index
    %9 = vector.load %arg4[%c0_7, %c0_8, %c0_9, %c0_10] : memref<1x1x1x384xf32, #tpu.memory_space<vmem>>, vector<1x1x1x384xf32>
    %10 = vector.shape_cast %9 : vector<1x1x1x384xf32> to vector<1x384xf32>
    %11 = vector.broadcast %10 : vector<1x384xf32> to vector<32x384xf32>
    %12 = arith.addf %8, %11 : vector<32x384xf32>
    %13 = vector.extract_strided_slice %12 {offsets = [0, 0], sizes = [32, 16], strides = [1, 1]} : vector<32x384xf32> to vector<32x16xf32>
    %14 = vector.shape_cast %13 : vector<32x16xf32> to vector<2x16x16xf32>
    %15 = arith.truncf %14 : vector<2x16x16xf32> to vector<2x16x16xbf16>
    %16 = vector.extract_strided_slice %12 {offsets = [0, 128], sizes = [32, 16], strides = [1, 1]} : vector<32x384xf32> to vector<32x16xf32>
    %17 = vector.shape_cast %16 : vector<32x16xf32> to vector<2x16x16xf32>
    %18 = arith.truncf %17 : vector<2x16x16xf32> to vector<2x16x16xbf16>
    %19 = vector.extract_strided_slice %12 {offsets = [0, 256], sizes = [32, 16], strides = [1, 1]} : vector<32x384xf32> to vector<32x16xf32>
    %20 = vector.shape_cast %19 : vector<32x16xf32> to vector<2x16x16xf32>
    %21 = arith.truncf %20 : vector<2x16x16xf32> to vector<2x16x16xbf16>
    "tpu.trace_start"() <{level = 10 : i32, message = "bqd,bkd->bqk"}> : () -> ()
    %cst_11 = arith.constant dense<0.000000e+00> : vector<2x16x16xf32>
    %22 = tpu.matmul %15, %18, %cst_11 {dimension_numbers = #tpu.dot_dimension_numbers<[2], [2], [1], [1], [0, 0, 0, 1, 1, 1], [0], [0]>} : vector<2x16x16xbf16>, vector<2x16x16xbf16>, vector<2x16x16xf32> -> vector<2x16x16xf32>
    "tpu.trace_stop"() : () -> ()
    %cst_12 = arith.constant dense<0xFF800000> : vector<2x16xf32>
    %23 = vector.multi_reduction <maximumf>, %22, %cst_12 [2] : vector<2x16x16xf32> to vector<2x16xf32>
    %24 = vector.shape_cast %23 : vector<2x16xf32> to vector<2x16x1xf32>
    %25 = vector.broadcast %24 : vector<2x16x1xf32> to vector<2x16x16xf32>
    %26 = arith.subf %22, %25 : vector<2x16x16xf32>
    %27 = math.exp %26 : vector<2x16x16xf32>
    %cst_13 = arith.constant dense<0.000000e+00> : vector<2x16xf32>
    %28 = vector.multi_reduction <add>, %27, %cst_13 [2] : vector<2x16x16xf32> to vector<2x16xf32>
    %29 = vector.shape_cast %28 : vector<2x16xf32> to vector<2x16x1xf32>
    %cst_14 = arith.constant 1.000000e+00 : f32
    %30 = vector.broadcast %cst_14 : f32 to vector<2x16x1xf32>
    %31 = arith.divf %30, %29 : vector<2x16x1xf32>
    %32 = vector.broadcast %31 : vector<2x16x1xf32> to vector<2x16x16xf32>
    %33 = arith.mulf %27, %32 : vector<2x16x16xf32>
    %34 = arith.truncf %33 : vector<2x16x16xf32> to vector<2x16x16xbf16>
    "tpu.trace_start"() <{level = 10 : i32, message = "bqk,bkd->bqd"}> : () -> ()
    %cst_15 = arith.constant dense<0.000000e+00> : vector<2x16x16xf32>
    %35 = tpu.matmul %34, %21, %cst_15 {dimension_numbers = #tpu.dot_dimension_numbers<[2], [1], [1], [2], [0, 0, 0, 1, 1, 2], [0], [0]>} : vector<2x16x16xbf16>, vector<2x16x16xbf16>, vector<2x16x16xf32> -> vector<2x16x16xf32>
    "tpu.trace_stop"() : () -> ()
    %36 = vector.shape_cast %35 : vector<2x16x16xf32> to vector<32x16xf32>
    %c0_16 = arith.constant 0 : index
    %c0_17 = arith.constant 0 : index
    %37 = vector.load %arg17[%c0_16, %c0_17] : memref<32x128xf32, #tpu.memory_space<vmem>>, vector<32x16xf32>
    tpu.vector_store %arg17[%c0_16, %c0_17], %36 {strides = array<i32>} : memref<32x128xf32, #tpu.memory_space<vmem>>, vector<32x16xf32>,
    %38 = vector.extract_strided_slice %12 {offsets = [0, 16], sizes = [32, 16], strides = [1, 1]} : vector<32x384xf32> to vector<32x16xf32>
    %39 = vector.shape_cast %38 : vector<32x16xf32> to vector<2x16x16xf32>
    %40 = arith.truncf %39 : vector<2x16x16xf32> to vector<2x16x16xbf16>
    %41 = vector.extract_strided_slice %12 {offsets = [0, 144], sizes = [32, 16], strides = [1, 1]} : vector<32x384xf32> to vector<32x16xf32>
    %42 = vector.shape_cast %41 : vector<32x16xf32> to vector<2x16x16xf32>
    %43 = arith.truncf %42 : vector<2x16x16xf32> to vector<2x16x16xbf16>
    %44 = vector.extract_strided_slice %12 {offsets = [0, 272], sizes = [32, 16], strides = [1, 1]} : vector<32x384xf32> to vector<32x16xf32>
    %45 = vector.shape_cast %44 : vector<32x16xf32> to vector<2x16x16xf32>
    %46 = arith.truncf %45 : vector<2x16x16xf32> to vector<2x16x16xbf16>
    "tpu.trace_start"() <{level = 10 : i32, message = "bqd,bkd->bqk"}> : () -> ()
    %cst_18 = arith.constant dense<0.000000e+00> : vector<2x16x16xf32>
    %47 = tpu.matmul %40, %43, %cst_18 {dimension_numbers = #tpu.dot_dimension_numbers<[2], [2], [1], [1], [0, 0, 0, 1, 1, 1], [0], [0]>} : vector<2x16x16xbf16>, vector<2x16x16xbf16>, vector<2x16x16xf32> -> vector<2x16x16xf32>
    "tpu.trace_stop"() : () -> ()
    %cst_19 = arith.constant dense<0xFF800000> : vector<2x16xf32>
    %48 = vector.multi_reduction <maximumf>, %47, %cst_19 [2] : vector<2x16x16xf32> to vector<2x16xf32>
    %49 = vector.shape_cast %48 : vector<2x16xf32> to vector<2x16x1xf32>
    %50 = vector.broadcast %49 : vector<2x16x1xf32> to vector<2x16x16xf32>
    %51 = arith.subf %47, %50 : vector<2x16x16xf32>
    %52 = math.exp %51 : vector<2x16x16xf32>
    %cst_20 = arith.constant dense<0.000000e+00> : vector<2x16xf32>
    %53 = vector.multi_reduction <add>, %52, %cst_20 [2] : vector<2x16x16xf32> to vector<2x16xf32>
    %54 = vector.shape_cast %53 : vector<2x16xf32> to vector<2x16x1xf32>
    %cst_21 = arith.constant 1.000000e+00 : f32
    %55 = vector.broadcast %cst_21 : f32 to vector<2x16x1xf32>
    %56 = arith.divf %55, %54 : vector<2x16x1xf32>
    %57 = vector.broadcast %56 : vector<2x16x1xf32> to vector<2x16x16xf32>
    %58 = arith.mulf %52, %57 : vector<2x16x16xf32>
    %59 = arith.truncf %58 : vector<2x16x16xf32> to vector<2x16x16xbf16>
    "tpu.trace_start"() <{level = 10 : i32, message = "bqk,bkd->bqd"}> : () -> ()
    %cst_22 = arith.constant dense<0.000000e+00> : vector<2x16x16xf32>
    %60 = tpu.matmul %59, %46, %cst_22 {dimension_numbers = #tpu.dot_dimension_numbers<[2], [1], [1], [2], [0, 0, 0, 1, 1, 2], [0], [0]>} : vector<2x16x16xbf16>, vector<2x16x16xbf16>, vector<2x16x16xf32> -> vector<2x16x16xf32>
    "tpu.trace_stop"() : () -> ()
    %61 = vector.shape_cast %60 : vector<2x16x16xf32> to vector<32x16xf32>
    %c0_23 = arith.constant 0 : index
    %c16 = arith.constant 16 : index
    %62 = vector.load %arg17[%c0_23, %c16] : memref<32x128xf32, #tpu.memory_space<vmem>>, vector<32x16xf32>
    tpu.vector_store %arg17[%c0_23, %c16], %61 {strides = array<i32>} : memref<32x128xf32, #tpu.memory_space<vmem>>, vector<32x16xf32>,
    %63 = vector.extract_strided_slice %12 {offsets = [0, 32], sizes = [32, 16], strides = [1, 1]} : vector<32x384xf32> to vector<32x16xf32>
    %64 = vector.shape_cast %63 : vector<32x16xf32> to vector<2x16x16xf32>
    %65 = arith.truncf %64 : vector<2x16x16xf32> to vector<2x16x16xbf16>
    %66 = vector.extract_strided_slice %12 {offsets = [0, 160], sizes = [32, 16], strides = [1, 1]} : vector<32x384xf32> to vector<32x16xf32>
    %67 = vector.shape_cast %66 : vector<32x16xf32> to vector<2x16x16xf32>
    %68 = arith.truncf %67 : vector<2x16x16xf32> to vector<2x16x16xbf16>
    %69 = vector.extract_strided_slice %12 {offsets = [0, 288], sizes = [32, 16], strides = [1, 1]} : vector<32x384xf32> to vector<32x16xf32>
    %70 = vector.shape_cast %69 : vector<32x16xf32> to vector<2x16x16xf32>
    %71 = arith.truncf %70 : vector<2x16x16xf32> to vector<2x16x16xbf16>
    "tpu.trace_start"() <{level = 10 : i32, message = "bqd,bkd->bqk"}> : () -> ()
    %cst_24 = arith.constant dense<0.000000e+00> : vector<2x16x16xf32>
    %72 = tpu.matmul %65, %68, %cst_24 {dimension_numbers = #tpu.dot_dimension_numbers<[2], [2], [1], [1], [0, 0, 0, 1, 1, 1], [0], [0]>} : vector<2x16x16xbf16>, vector<2x16x16xbf16>, vector<2x16x16xf32> -> vector<2x16x16xf32>
    "tpu.trace_stop"() : () -> ()
    %cst_25 = arith.constant dense<0xFF800000> : vector<2x16xf32>
    %73 = vector.multi_reduction <maximumf>, %72, %cst_25 [2] : vector<2x16x16xf32> to vector<2x16xf32>
    %74 = vector.shape_cast %73 : vector<2x16xf32> to vector<2x16x1xf32>
    %75 = vector.broadcast %74 : vector<2x16x1xf32> to vector<2x16x16xf32>
    %76 = arith.subf %72, %75 : vector<2x16x16xf32>
    %77 = math.exp %76 : vector<2x16x16xf32>
    %cst_26 = arith.constant dense<0.000000e+00> : vector<2x16xf32>
    %78 = vector.multi_reduction <add>, %77, %cst_26 [2] : vector<2x16x16xf32> to vector<2x16xf32>
    %79 = vector.shape_cast %78 : vector<2x16xf32> to vector<2x16x1xf32>
    %cst_27 = arith.constant 1.000000e+00 : f32
    %80 = vector.broadcast %cst_27 : f32 to vector<2x16x1xf32>
    %81 = arith.divf %80, %79 : vector<2x16x1xf32>
    %82 = vector.broadcast %81 : vector<2x16x1xf32> to vector<2x16x16xf32>
    %83 = arith.mulf %77, %82 : vector<2x16x16xf32>
    %84 = arith.truncf %83 : vector<2x16x16xf32> to vector<2x16x16xbf16>
    "tpu.trace_start"() <{level = 10 : i32, message = "bqk,bkd->bqd"}> : () -> ()
    %cst_28 = arith.constant dense<0.000000e+00> : vector<2x16x16xf32>
    %85 = tpu.matmul %84, %71, %cst_28 {dimension_numbers = #tpu.dot_dimension_numbers<[2], [1], [1], [2], [0, 0, 0, 1, 1, 2], [0], [0]>} : vector<2x16x16xbf16>, vector<2x16x16xbf16>, vector<2x16x16xf32> -> vector<2x16x16xf32>
    "tpu.trace_stop"() : () -> ()
    %86 = vector.shape_cast %85 : vector<2x16x16xf32> to vector<32x16xf32>
    %c0_29 = arith.constant 0 : index
    %c32 = arith.constant 32 : index
    %87 = vector.load %arg17[%c0_29, %c32] : memref<32x128xf32, #tpu.memory_space<vmem>>, vector<32x16xf32>
    tpu.vector_store %arg17[%c0_29, %c32], %86 {strides = array<i32>} : memref<32x128xf32, #tpu.memory_space<vmem>>, vector<32x16xf32>,
    %88 = vector.extract_strided_slice %12 {offsets = [0, 48], sizes = [32, 16], strides = [1, 1]} : vector<32x384xf32> to vector<32x16xf32>
    %89 = vector.shape_cast %88 : vector<32x16xf32> to vector<2x16x16xf32>
    %90 = arith.truncf %89 : vector<2x16x16xf32> to vector<2x16x16xbf16>
    %91 = vector.extract_strided_slice %12 {offsets = [0, 176], sizes = [32, 16], strides = [1, 1]} : vector<32x384xf32> to vector<32x16xf32>
    %92 = vector.shape_cast %91 : vector<32x16xf32> to vector<2x16x16xf32>
    %93 = arith.truncf %92 : vector<2x16x16xf32> to vector<2x16x16xbf16>
    %94 = vector.extract_strided_slice %12 {offsets = [0, 304], sizes = [32, 16], strides = [1, 1]} : vector<32x384xf32> to vector<32x16xf32>
    %95 = vector.shape_cast %94 : vector<32x16xf32> to vector<2x16x16xf32>
    %96 = arith.truncf %95 : vector<2x16x16xf32> to vector<2x16x16xbf16>
    "tpu.trace_start"() <{level = 10 : i32, message = "bqd,bkd->bqk"}> : () -> ()
    %cst_30 = arith.constant dense<0.000000e+00> : vector<2x16x16xf32>
    %97 = tpu.matmul %90, %93, %cst_30 {dimension_numbers = #tpu.dot_dimension_numbers<[2], [2], [1], [1], [0, 0, 0, 1, 1, 1], [0], [0]>} : vector<2x16x16xbf16>, vector<2x16x16xbf16>, vector<2x16x16xf32> -> vector<2x16x16xf32>
    "tpu.trace_stop"() : () -> ()
    %cst_31 = arith.constant dense<0xFF800000> : vector<2x16xf32>
    %98 = vector.multi_reduction <maximumf>, %97, %cst_31 [2] : vector<2x16x16xf32> to vector<2x16xf32>
    %99 = vector.shape_cast %98 : vector<2x16xf32> to vector<2x16x1xf32>
    %100 = vector.broadcast %99 : vector<2x16x1xf32> to vector<2x16x16xf32>
    %101 = arith.subf %97, %100 : vector<2x16x16xf32>
    %102 = math.exp %101 : vector<2x16x16xf32>
    %cst_32 = arith.constant dense<0.000000e+00> : vector<2x16xf32>
    %103 = vector.multi_reduction <add>, %102, %cst_32 [2] : vector<2x16x16xf32> to vector<2x16xf32>
    %104 = vector.shape_cast %103 : vector<2x16xf32> to vector<2x16x1xf32>
    %cst_33 = arith.constant 1.000000e+00 : f32
    %105 = vector.broadcast %cst_33 : f32 to vector<2x16x1xf32>
    %106 = arith.divf %105, %104 : vector<2x16x1xf32>
    %107 = vector.broadcast %106 : vector<2x16x1xf32> to vector<2x16x16xf32>
    %108 = arith.mulf %102, %107 : vector<2x16x16xf32>
    %109 = arith.truncf %108 : vector<2x16x16xf32> to vector<2x16x16xbf16>
    "tpu.trace_start"() <{level = 10 : i32, message = "bqk,bkd->bqd"}> : () -> ()
    %cst_34 = arith.constant dense<0.000000e+00> : vector<2x16x16xf32>
    %110 = tpu.matmul %109, %96, %cst_34 {dimension_numbers = #tpu.dot_dimension_numbers<[2], [1], [1], [2], [0, 0, 0, 1, 1, 2], [0], [0]>} : vector<2x16x16xbf16>, vector<2x16x16xbf16>, vector<2x16x16xf32> -> vector<2x16x16xf32>
    "tpu.trace_stop"() : () -> ()
    %111 = vector.shape_cast %110 : vector<2x16x16xf32> to vector<32x16xf32>
    %c0_35 = arith.constant 0 : index
    %c48 = arith.constant 48 : index
    %112 = vector.load %arg17[%c0_35, %c48] : memref<32x128xf32, #tpu.memory_space<vmem>>, vector<32x16xf32>
    tpu.vector_store %arg17[%c0_35, %c48], %111 {strides = array<i32>} : memref<32x128xf32, #tpu.memory_space<vmem>>, vector<32x16xf32>,
    %113 = vector.extract_strided_slice %12 {offsets = [0, 64], sizes = [32, 16], strides = [1, 1]} : vector<32x384xf32> to vector<32x16xf32>
    %114 = vector.shape_cast %113 : vector<32x16xf32> to vector<2x16x16xf32>
    %115 = arith.truncf %114 : vector<2x16x16xf32> to vector<2x16x16xbf16>
    %116 = vector.extract_strided_slice %12 {offsets = [0, 192], sizes = [32, 16], strides = [1, 1]} : vector<32x384xf32> to vector<32x16xf32>
    %117 = vector.shape_cast %116 : vector<32x16xf32> to vector<2x16x16xf32>
    %118 = arith.truncf %117 : vector<2x16x16xf32> to vector<2x16x16xbf16>
    %119 = vector.extract_strided_slice %12 {offsets = [0, 320], sizes = [32, 16], strides = [1, 1]} : vector<32x384xf32> to vector<32x16xf32>
    %120 = vector.shape_cast %119 : vector<32x16xf32> to vector<2x16x16xf32>
    %121 = arith.truncf %120 : vector<2x16x16xf32> to vector<2x16x16xbf16>
    "tpu.trace_start"() <{level = 10 : i32, message = "bqd,bkd->bqk"}> : () -> ()
    %cst_36 = arith.constant dense<0.000000e+00> : vector<2x16x16xf32>
    %122 = tpu.matmul %115, %118, %cst_36 {dimension_numbers = #tpu.dot_dimension_numbers<[2], [2], [1], [1], [0, 0, 0, 1, 1, 1], [0], [0]>} : vector<2x16x16xbf16>, vector<2x16x16xbf16>, vector<2x16x16xf32> -> vector<2x16x16xf32>
    "tpu.trace_stop"() : () -> ()
    %cst_37 = arith.constant dense<0xFF800000> : vector<2x16xf32>
    %123 = vector.multi_reduction <maximumf>, %122, %cst_37 [2] : vector<2x16x16xf32> to vector<2x16xf32>
    %124 = vector.shape_cast %123 : vector<2x16xf32> to vector<2x16x1xf32>
    %125 = vector.broadcast %124 : vector<2x16x1xf32> to vector<2x16x16xf32>
    %126 = arith.subf %122, %125 : vector<2x16x16xf32>
    %127 = math.exp %126 : vector<2x16x16xf32>
    %cst_38 = arith.constant dense<0.000000e+00> : vector<2x16xf32>
    %128 = vector.multi_reduction <add>, %127, %cst_38 [2] : vector<2x16x16xf32> to vector<2x16xf32>
    %129 = vector.shape_cast %128 : vector<2x16xf32> to vector<2x16x1xf32>
    %cst_39 = arith.constant 1.000000e+00 : f32
    %130 = vector.broadcast %cst_39 : f32 to vector<2x16x1xf32>
    %131 = arith.divf %130, %129 : vector<2x16x1xf32>
    %132 = vector.broadcast %131 : vector<2x16x1xf32> to vector<2x16x16xf32>
    %133 = arith.mulf %127, %132 : vector<2x16x16xf32>
    %134 = arith.truncf %133 : vector<2x16x16xf32> to vector<2x16x16xbf16>
    "tpu.trace_start"() <{level = 10 : i32, message = "bqk,bkd->bqd"}> : () -> ()
    %cst_40 = arith.constant dense<0.000000e+00> : vector<2x16x16xf32>
    %135 = tpu.matmul %134, %121, %cst_40 {dimension_numbers = #tpu.dot_dimension_numbers<[2], [1], [1], [2], [0, 0, 0, 1, 1, 2], [0], [0]>} : vector<2x16x16xbf16>, vector<2x16x16xbf16>, vector<2x16x16xf32> -> vector<2x16x16xf32>
    "tpu.trace_stop"() : () -> ()
    %136 = vector.shape_cast %135 : vector<2x16x16xf32> to vector<32x16xf32>
    %c0_41 = arith.constant 0 : index
    %c64 = arith.constant 64 : index
    %137 = vector.load %arg17[%c0_41, %c64] : memref<32x128xf32, #tpu.memory_space<vmem>>, vector<32x16xf32>
    tpu.vector_store %arg17[%c0_41, %c64], %136 {strides = array<i32>} : memref<32x128xf32, #tpu.memory_space<vmem>>, vector<32x16xf32>,
    %138 = vector.extract_strided_slice %12 {offsets = [0, 80], sizes = [32, 16], strides = [1, 1]} : vector<32x384xf32> to vector<32x16xf32>
    %139 = vector.shape_cast %138 : vector<32x16xf32> to vector<2x16x16xf32>
    %140 = arith.truncf %139 : vector<2x16x16xf32> to vector<2x16x16xbf16>
    %141 = vector.extract_strided_slice %12 {offsets = [0, 208], sizes = [32, 16], strides = [1, 1]} : vector<32x384xf32> to vector<32x16xf32>
    %142 = vector.shape_cast %141 : vector<32x16xf32> to vector<2x16x16xf32>
    %143 = arith.truncf %142 : vector<2x16x16xf32> to vector<2x16x16xbf16>
    %144 = vector.extract_strided_slice %12 {offsets = [0, 336], sizes = [32, 16], strides = [1, 1]} : vector<32x384xf32> to vector<32x16xf32>
    %145 = vector.shape_cast %144 : vector<32x16xf32> to vector<2x16x16xf32>
    %146 = arith.truncf %145 : vector<2x16x16xf32> to vector<2x16x16xbf16>
    "tpu.trace_start"() <{level = 10 : i32, message = "bqd,bkd->bqk"}> : () -> ()
    %cst_42 = arith.constant dense<0.000000e+00> : vector<2x16x16xf32>
    %147 = tpu.matmul %140, %143, %cst_42 {dimension_numbers = #tpu.dot_dimension_numbers<[2], [2], [1], [1], [0, 0, 0, 1, 1, 1], [0], [0]>} : vector<2x16x16xbf16>, vector<2x16x16xbf16>, vector<2x16x16xf32> -> vector<2x16x16xf32>
    "tpu.trace_stop"() : () -> ()
    %cst_43 = arith.constant dense<0xFF800000> : vector<2x16xf32>
    %148 = vector.multi_reduction <maximumf>, %147, %cst_43 [2] : vector<2x16x16xf32> to vector<2x16xf32>
    %149 = vector.shape_cast %148 : vector<2x16xf32> to vector<2x16x1xf32>
    %150 = vector.broadcast %149 : vector<2x16x1xf32> to vector<2x16x16xf32>
    %151 = arith.subf %147, %150 : vector<2x16x16xf32>
    %152 = math.exp %151 : vector<2x16x16xf32>
    %cst_44 = arith.constant dense<0.000000e+00> : vector<2x16xf32>
    %153 = vector.multi_reduction <add>, %152, %cst_44 [2] : vector<2x16x16xf32> to vector<2x16xf32>
    %154 = vector.shape_cast %153 : vector<2x16xf32> to vector<2x16x1xf32>
    %cst_45 = arith.constant 1.000000e+00 : f32
    %155 = vector.broadcast %cst_45 : f32 to vector<2x16x1xf32>
    %156 = arith.divf %155, %154 : vector<2x16x1xf32>
    %157 = vector.broadcast %156 : vector<2x16x1xf32> to vector<2x16x16xf32>
    %158 = arith.mulf %152, %157 : vector<2x16x16xf32>
    %159 = arith.truncf %158 : vector<2x16x16xf32> to vector<2x16x16xbf16>
    "tpu.trace_start"() <{level = 10 : i32, message = "bqk,bkd->bqd"}> : () -> ()
    %cst_46 = arith.constant dense<0.000000e+00> : vector<2x16x16xf32>
    %160 = tpu.matmul %159, %146, %cst_46 {dimension_numbers = #tpu.dot_dimension_numbers<[2], [1], [1], [2], [0, 0, 0, 1, 1, 2], [0], [0]>} : vector<2x16x16xbf16>, vector<2x16x16xbf16>, vector<2x16x16xf32> -> vector<2x16x16xf32>
    "tpu.trace_stop"() : () -> ()
    %161 = vector.shape_cast %160 : vector<2x16x16xf32> to vector<32x16xf32>
    %c0_47 = arith.constant 0 : index
    %c80 = arith.constant 80 : index
    %162 = vector.load %arg17[%c0_47, %c80] : memref<32x128xf32, #tpu.memory_space<vmem>>, vector<32x16xf32>
    tpu.vector_store %arg17[%c0_47, %c80], %161 {strides = array<i32>} : memref<32x128xf32, #tpu.memory_space<vmem>>, vector<32x16xf32>,
    %163 = vector.extract_strided_slice %12 {offsets = [0, 96], sizes = [32, 16], strides = [1, 1]} : vector<32x384xf32> to vector<32x16xf32>
    %164 = vector.shape_cast %163 : vector<32x16xf32> to vector<2x16x16xf32>
    %165 = arith.truncf %164 : vector<2x16x16xf32> to vector<2x16x16xbf16>
    %166 = vector.extract_strided_slice %12 {offsets = [0, 224], sizes = [32, 16], strides = [1, 1]} : vector<32x384xf32> to vector<32x16xf32>
    %167 = vector.shape_cast %166 : vector<32x16xf32> to vector<2x16x16xf32>
    %168 = arith.truncf %167 : vector<2x16x16xf32> to vector<2x16x16xbf16>
    %169 = vector.extract_strided_slice %12 {offsets = [0, 352], sizes = [32, 16], strides = [1, 1]} : vector<32x384xf32> to vector<32x16xf32>
    %170 = vector.shape_cast %169 : vector<32x16xf32> to vector<2x16x16xf32>
    %171 = arith.truncf %170 : vector<2x16x16xf32> to vector<2x16x16xbf16>
    "tpu.trace_start"() <{level = 10 : i32, message = "bqd,bkd->bqk"}> : () -> ()
    %cst_48 = arith.constant dense<0.000000e+00> : vector<2x16x16xf32>
    %172 = tpu.matmul %165, %168, %cst_48 {dimension_numbers = #tpu.dot_dimension_numbers<[2], [2], [1], [1], [0, 0, 0, 1, 1, 1], [0], [0]>} : vector<2x16x16xbf16>, vector<2x16x16xbf16>, vector<2x16x16xf32> -> vector<2x16x16xf32>
    "tpu.trace_stop"() : () -> ()
    %cst_49 = arith.constant dense<0xFF800000> : vector<2x16xf32>
    %173 = vector.multi_reduction <maximumf>, %172, %cst_49 [2] : vector<2x16x16xf32> to vector<2x16xf32>
    %174 = vector.shape_cast %173 : vector<2x16xf32> to vector<2x16x1xf32>
    %175 = vector.broadcast %174 : vector<2x16x1xf32> to vector<2x16x16xf32>
    %176 = arith.subf %172, %175 : vector<2x16x16xf32>
    %177 = math.exp %176 : vector<2x16x16xf32>
    %cst_50 = arith.constant dense<0.000000e+00> : vector<2x16xf32>
    %178 = vector.multi_reduction <add>, %177, %cst_50 [2] : vector<2x16x16xf32> to vector<2x16xf32>
    %179 = vector.shape_cast %178 : vector<2x16xf32> to vector<2x16x1xf32>
    %cst_51 = arith.constant 1.000000e+00 : f32
    %180 = vector.broadcast %cst_51 : f32 to vector<2x16x1xf32>
    %181 = arith.divf %180, %179 : vector<2x16x1xf32>
    %182 = vector.broadcast %181 : vector<2x16x1xf32> to vector<2x16x16xf32>
    %183 = arith.mulf %177, %182 : vector<2x16x16xf32>
    %184 = arith.truncf %183 : vector<2x16x16xf32> to vector<2x16x16xbf16>
    "tpu.trace_start"() <{level = 10 : i32, message = "bqk,bkd->bqd"}> : () -> ()
    %cst_52 = arith.constant dense<0.000000e+00> : vector<2x16x16xf32>
    %185 = tpu.matmul %184, %171, %cst_52 {dimension_numbers = #tpu.dot_dimension_numbers<[2], [1], [1], [2], [0, 0, 0, 1, 1, 2], [0], [0]>} : vector<2x16x16xbf16>, vector<2x16x16xbf16>, vector<2x16x16xf32> -> vector<2x16x16xf32>
    "tpu.trace_stop"() : () -> ()
    %186 = vector.shape_cast %185 : vector<2x16x16xf32> to vector<32x16xf32>
    %c0_53 = arith.constant 0 : index
    %c96 = arith.constant 96 : index
    %187 = vector.load %arg17[%c0_53, %c96] : memref<32x128xf32, #tpu.memory_space<vmem>>, vector<32x16xf32>
    tpu.vector_store %arg17[%c0_53, %c96], %186 {strides = array<i32>} : memref<32x128xf32, #tpu.memory_space<vmem>>, vector<32x16xf32>,
    %188 = vector.extract_strided_slice %12 {offsets = [0, 112], sizes = [32, 16], strides = [1, 1]} : vector<32x384xf32> to vector<32x16xf32>
    %189 = vector.shape_cast %188 : vector<32x16xf32> to vector<2x16x16xf32>
    %190 = arith.truncf %189 : vector<2x16x16xf32> to vector<2x16x16xbf16>
    %191 = vector.extract_strided_slice %12 {offsets = [0, 240], sizes = [32, 16], strides = [1, 1]} : vector<32x384xf32> to vector<32x16xf32>
    %192 = vector.shape_cast %191 : vector<32x16xf32> to vector<2x16x16xf32>
    %193 = arith.truncf %192 : vector<2x16x16xf32> to vector<2x16x16xbf16>
    %194 = vector.extract_strided_slice %12 {offsets = [0, 368], sizes = [32, 16], strides = [1, 1]} : vector<32x384xf32> to vector<32x16xf32>
    %195 = vector.shape_cast %194 : vector<32x16xf32> to vector<2x16x16xf32>
    %196 = arith.truncf %195 : vector<2x16x16xf32> to vector<2x16x16xbf16>
    "tpu.trace_start"() <{level = 10 : i32, message = "bqd,bkd->bqk"}> : () -> ()
    %cst_54 = arith.constant dense<0.000000e+00> : vector<2x16x16xf32>
    %197 = tpu.matmul %190, %193, %cst_54 {dimension_numbers = #tpu.dot_dimension_numbers<[2], [2], [1], [1], [0, 0, 0, 1, 1, 1], [0], [0]>} : vector<2x16x16xbf16>, vector<2x16x16xbf16>, vector<2x16x16xf32> -> vector<2x16x16xf32>
    "tpu.trace_stop"() : () -> ()
    %cst_55 = arith.constant dense<0xFF800000> : vector<2x16xf32>
    %198 = vector.multi_reduction <maximumf>, %197, %cst_55 [2] : vector<2x16x16xf32> to vector<2x16xf32>
    %199 = vector.shape_cast %198 : vector<2x16xf32> to vector<2x16x1xf32>
    %200 = vector.broadcast %199 : vector<2x16x1xf32> to vector<2x16x16xf32>
    %201 = arith.subf %197, %200 : vector<2x16x16xf32>
    %202 = math.exp %201 : vector<2x16x16xf32>
    %cst_56 = arith.constant dense<0.000000e+00> : vector<2x16xf32>
    %203 = vector.multi_reduction <add>, %202, %cst_56 [2] : vector<2x16x16xf32> to vector<2x16xf32>
    %204 = vector.shape_cast %203 : vector<2x16xf32> to vector<2x16x1xf32>
    %cst_57 = arith.constant 1.000000e+00 : f32
    %205 = vector.broadcast %cst_57 : f32 to vector<2x16x1xf32>
    %206 = arith.divf %205, %204 : vector<2x16x1xf32>
    %207 = vector.broadcast %206 : vector<2x16x1xf32> to vector<2x16x16xf32>
    %208 = arith.mulf %202, %207 : vector<2x16x16xf32>
    %209 = arith.truncf %208 : vector<2x16x16xf32> to vector<2x16x16xbf16>
    "tpu.trace_start"() <{level = 10 : i32, message = "bqk,bkd->bqd"}> : () -> ()
    %cst_58 = arith.constant dense<0.000000e+00> : vector<2x16x16xf32>
    %210 = tpu.matmul %209, %196, %cst_58 {dimension_numbers = #tpu.dot_dimension_numbers<[2], [1], [1], [2], [0, 0, 0, 1, 1, 2], [0], [0]>} : vector<2x16x16xbf16>, vector<2x16x16xbf16>, vector<2x16x16xf32> -> vector<2x16x16xf32>
    "tpu.trace_stop"() : () -> ()
    %211 = vector.shape_cast %210 : vector<2x16x16xf32> to vector<32x16xf32>
    %c0_59 = arith.constant 0 : index
    %c112 = arith.constant 112 : index
    %212 = vector.load %arg17[%c0_59, %c112] : memref<32x128xf32, #tpu.memory_space<vmem>>, vector<32x16xf32>
    tpu.vector_store %arg17[%c0_59, %c112], %211 {strides = array<i32>} : memref<32x128xf32, #tpu.memory_space<vmem>>, vector<32x16xf32>,
    %c0_60 = arith.constant 0 : index
    %c0_61 = arith.constant 0 : index
    %213 = vector.load %arg17[%c0_60, %c0_61] : memref<32x128xf32, #tpu.memory_space<vmem>>, vector<32x128xf32>
    %214 = arith.truncf %213 : vector<32x128xf32> to vector<32x128xbf16>
    %c0_62 = arith.constant 0 : index
    %c0_63 = arith.constant 0 : index
    %c0_64 = arith.constant 0 : index
    %c0_65 = arith.constant 0 : index
    %215 = vector.load %arg5[%c0_62, %c0_63, %c0_64, %c0_65] : memref<1x1x128x128xbf16, #tpu.memory_space<vmem>>, vector<1x1x128x128xbf16>
    %216 = vector.shape_cast %215 : vector<1x1x128x128xbf16> to vector<128x128xbf16>
    %cst_66 = arith.constant dense<0.000000e+00> : vector<32x128xf32>
    %217 = tpu.matmul %214, %216, %cst_66 {dimension_numbers = #tpu.dot_dimension_numbers<[1], [0], [0], [1], [0, 0, 1, 1], [], []>} : vector<32x128xbf16>, vector<128x128xbf16>, vector<32x128xf32> -> vector<32x128xf32>
    %c0_67 = arith.constant 0 : index
    %c0_68 = arith.constant 0 : index
    %c0_69 = arith.constant 0 : index
    %c0_70 = arith.constant 0 : index
    %218 = vector.load %arg6[%c0_67, %c0_68, %c0_69, %c0_70] : memref<1x1x1x128xf32, #tpu.memory_space<vmem>>, vector<1x1x1x128xf32>
    %219 = vector.shape_cast %218 : vector<1x1x1x128xf32> to vector<1x128xf32>
    %220 = vector.broadcast %219 : vector<1x128xf32> to vector<32x128xf32>
    %221 = arith.addf %217, %220 : vector<32x128xf32>
    %222 = arith.addf %4, %221 : vector<32x128xf32>
    %c0_71 = arith.constant 0 : index
    %c0_72 = arith.constant 0 : index
    %c0_73 = arith.constant 0 : index
    %c0_74 = arith.constant 0 : index
    %223 = vector.load %arg7[%c0_71, %c0_72, %c0_73, %c0_74] : memref<1x1x1x128xf32, #tpu.memory_space<vmem>>, vector<1x1x1x128xf32>
    %224 = vector.shape_cast %223 : vector<1x1x1x128xf32> to vector<1x128xf32>
    %c0_75 = arith.constant 0 : index
    %c0_76 = arith.constant 0 : index
    %c0_77 = arith.constant 0 : index
    %c0_78 = arith.constant 0 : index
    %225 = vector.load %arg8[%c0_75, %c0_76, %c0_77, %c0_78] : memref<1x1x1x128xf32, #tpu.memory_space<vmem>>, vector<1x1x1x128xf32>
    %226 = vector.shape_cast %225 : vector<1x1x1x128xf32> to vector<1x128xf32>
    %cst_79 = arith.constant dense<0.000000e+00> : vector<32xf32>
    %227 = vector.multi_reduction <add>, %222, %cst_79 [1] : vector<32x128xf32> to vector<32xf32>
    %228 = vector.shape_cast %227 : vector<32xf32> to vector<32x1xf32>
    %cst_80 = arith.constant 1.280000e+02 : f32
    %229 = vector.broadcast %cst_80 : f32 to vector<32x1xf32>
    %230 = arith.divf %228, %229 : vector<32x1xf32>
    %231 = vector.broadcast %230 : vector<32x1xf32> to vector<32x128xf32>
    %232 = arith.subf %222, %231 : vector<32x128xf32>
    %233 = arith.mulf %232, %232 : vector<32x128xf32>
    %cst_81 = arith.constant dense<0.000000e+00> : vector<32xf32>
    %234 = vector.multi_reduction <add>, %233, %cst_81 [1] : vector<32x128xf32> to vector<32xf32>
    %235 = vector.shape_cast %234 : vector<32xf32> to vector<32x1xf32>
    %cst_82 = arith.constant 1.280000e+02 : f32
    %236 = vector.broadcast %cst_82 : f32 to vector<32x1xf32>
    %237 = arith.divf %235, %236 : vector<32x1xf32>
    %238 = vector.broadcast %230 : vector<32x1xf32> to vector<32x128xf32>
    %239 = arith.subf %222, %238 : vector<32x128xf32>
    %cst_83 = arith.constant 9.99999974E-6 : f32
    %240 = vector.broadcast %cst_83 : f32 to vector<32x1xf32>
    %241 = arith.addf %237, %240 : vector<32x1xf32>
    %242 = math.rsqrt %241 : vector<32x1xf32>
    %243 = vector.broadcast %242 : vector<32x1xf32> to vector<32x128xf32>
    %244 = arith.mulf %239, %243 : vector<32x128xf32>
    %245 = vector.broadcast %224 : vector<1x128xf32> to vector<32x128xf32>
    %246 = arith.mulf %244, %245 : vector<32x128xf32>
    %247 = vector.broadcast %226 : vector<1x128xf32> to vector<32x128xf32>
    %248 = arith.addf %246, %247 : vector<32x128xf32>
    %249 = arith.truncf %248 : vector<32x128xf32> to vector<32x128xbf16>
    %c0_84 = arith.constant 0 : index
    %c0_85 = arith.constant 0 : index
    %c0_86 = arith.constant 0 : index
    %c0_87 = arith.constant 0 : index
    %250 = vector.load %arg9[%c0_84, %c0_85, %c0_86, %c0_87] : memref<1x1x128x256xbf16, #tpu.memory_space<vmem>>, vector<1x1x128x256xbf16>
    %251 = vector.shape_cast %250 : vector<1x1x128x256xbf16> to vector<128x256xbf16>
    %cst_88 = arith.constant dense<0.000000e+00> : vector<32x256xf32>
    %252 = tpu.matmul %249, %251, %cst_88 {dimension_numbers = #tpu.dot_dimension_numbers<[1], [0], [0], [1], [0, 0, 1, 1], [], []>} : vector<32x128xbf16>, vector<128x256xbf16>, vector<32x256xf32> -> vector<32x256xf32>
    %c0_89 = arith.constant 0 : index
    %c0_90 = arith.constant 0 : index
    %c0_91 = arith.constant 0 : index
    %c0_92 = arith.constant 0 : index
    %253 = vector.load %arg10[%c0_89, %c0_90, %c0_91, %c0_92] : memref<1x1x1x256xf32, #tpu.memory_space<vmem>>, vector<1x1x1x256xf32>
    %254 = vector.shape_cast %253 : vector<1x1x1x256xf32> to vector<1x256xf32>
    %255 = vector.broadcast %254 : vector<1x256xf32> to vector<32x256xf32>
    %256 = arith.addf %252, %255 : vector<32x256xf32>
    %cst_93 = arith.constant 0.000000e+00 : f32
    %257 = vector.broadcast %cst_93 : f32 to vector<32x256xf32>
    %258 = arith.maximumf %256, %257 : vector<32x256xf32>
    %259 = arith.truncf %258 : vector<32x256xf32> to vector<32x256xbf16>
    %c0_94 = arith.constant 0 : index
    %c0_95 = arith.constant 0 : index
    %c0_96 = arith.constant 0 : index
    %c0_97 = arith.constant 0 : index
    %260 = vector.load %arg11[%c0_94, %c0_95, %c0_96, %c0_97] : memref<1x1x256x128xbf16, #tpu.memory_space<vmem>>, vector<1x1x256x128xbf16>
    %261 = vector.shape_cast %260 : vector<1x1x256x128xbf16> to vector<256x128xbf16>
    %cst_98 = arith.constant dense<0.000000e+00> : vector<32x128xf32>
    %262 = tpu.matmul %259, %261, %cst_98 {dimension_numbers = #tpu.dot_dimension_numbers<[1], [0], [0], [1], [0, 0, 1, 1], [], []>} : vector<32x256xbf16>, vector<256x128xbf16>, vector<32x128xf32> -> vector<32x128xf32>
    %c0_99 = arith.constant 0 : index
    %c0_100 = arith.constant 0 : index
    %c0_101 = arith.constant 0 : index
    %c0_102 = arith.constant 0 : index
    %263 = vector.load %arg12[%c0_99, %c0_100, %c0_101, %c0_102] : memref<1x1x1x128xf32, #tpu.memory_space<vmem>>, vector<1x1x1x128xf32>
    %264 = vector.shape_cast %263 : vector<1x1x1x128xf32> to vector<1x128xf32>
    %265 = vector.broadcast %264 : vector<1x128xf32> to vector<32x128xf32>
    %266 = arith.addf %262, %265 : vector<32x128xf32>
    %267 = arith.addf %248, %266 : vector<32x128xf32>
    %c0_103 = arith.constant 0 : index
    %c0_104 = arith.constant 0 : index
    %c0_105 = arith.constant 0 : index
    %c0_106 = arith.constant 0 : index
    %268 = vector.load %arg13[%c0_103, %c0_104, %c0_105, %c0_106] : memref<1x1x1x128xf32, #tpu.memory_space<vmem>>, vector<1x1x1x128xf32>
    %269 = vector.shape_cast %268 : vector<1x1x1x128xf32> to vector<1x128xf32>
    %c0_107 = arith.constant 0 : index
    %c0_108 = arith.constant 0 : index
    %c0_109 = arith.constant 0 : index
    %c0_110 = arith.constant 0 : index
    %270 = vector.load %arg14[%c0_107, %c0_108, %c0_109, %c0_110] : memref<1x1x1x128xf32, #tpu.memory_space<vmem>>, vector<1x1x1x128xf32>
    %271 = vector.shape_cast %270 : vector<1x1x1x128xf32> to vector<1x128xf32>
    %cst_111 = arith.constant dense<0.000000e+00> : vector<32xf32>
    %272 = vector.multi_reduction <add>, %267, %cst_111 [1] : vector<32x128xf32> to vector<32xf32>
    %273 = vector.shape_cast %272 : vector<32xf32> to vector<32x1xf32>
    %cst_112 = arith.constant 1.280000e+02 : f32
    %274 = vector.broadcast %cst_112 : f32 to vector<32x1xf32>
    %275 = arith.divf %273, %274 : vector<32x1xf32>
    %276 = vector.broadcast %275 : vector<32x1xf32> to vector<32x128xf32>
    %277 = arith.subf %267, %276 : vector<32x128xf32>
    %278 = arith.mulf %277, %277 : vector<32x128xf32>
    %cst_113 = arith.constant dense<0.000000e+00> : vector<32xf32>
    %279 = vector.multi_reduction <add>, %278, %cst_113 [1] : vector<32x128xf32> to vector<32xf32>
    %280 = vector.shape_cast %279 : vector<32xf32> to vector<32x1xf32>
    %cst_114 = arith.constant 1.280000e+02 : f32
    %281 = vector.broadcast %cst_114 : f32 to vector<32x1xf32>
    %282 = arith.divf %280, %281 : vector<32x1xf32>
    %283 = vector.broadcast %275 : vector<32x1xf32> to vector<32x128xf32>
    %284 = arith.subf %267, %283 : vector<32x128xf32>
    %cst_115 = arith.constant 9.99999974E-6 : f32
    %285 = vector.broadcast %cst_115 : f32 to vector<32x1xf32>
    %286 = arith.addf %282, %285 : vector<32x1xf32>
    %287 = math.rsqrt %286 : vector<32x1xf32>
    %288 = vector.broadcast %287 : vector<32x1xf32> to vector<32x128xf32>
    %289 = arith.mulf %284, %288 : vector<32x128xf32>
    %290 = vector.broadcast %269 : vector<1x128xf32> to vector<32x128xf32>
    %291 = arith.mulf %289, %290 : vector<32x128xf32>
    %292 = vector.broadcast %271 : vector<1x128xf32> to vector<32x128xf32>
    %293 = arith.addf %291, %292 : vector<32x128xf32>
    %294 = vector.shape_cast %293 : vector<32x128xf32> to vector<2x16x128xf32>
    %c0_116 = arith.constant 0 : index
    %c0_117 = arith.constant 0 : index
    %c0_118 = arith.constant 0 : index
    %295 = vector.load %arg16[%c0_116, %c0_117, %c0_118] : memref<2x16x128xf32, #tpu.memory_space<vmem>>, vector<2x16x128xf32>
    tpu.vector_store %arg16[%c0_116, %c0_117, %c0_118], %294 {strides = array<i32>} : memref<2x16x128xf32, #tpu.memory_space<vmem>>, vector<2x16x128xf32>,
    %c5_i32 = arith.constant 5 : i32
    %296 = arith.cmpi eq, %arg1, %c5_i32 : i32
    %297 = arith.extui %296 : i1 to i32
    %c0_i32_119 = arith.constant 0 : i32
    %298 = arith.cmpi ne, %297, %c0_i32_119 : i32
    scf.if %298 {
      %299 = vector.shape_cast %293 : vector<32x128xf32> to vector<2x16x128xf32>
      %cst_120 = arith.constant dense<0.000000e+00> : vector<2x128xf32>
      %300 = vector.multi_reduction <add>, %299, %cst_120 [1] : vector<2x16x128xf32> to vector<2x128xf32>
      %cst_121 = arith.constant 1.600000e+01 : f32
      %301 = vector.broadcast %cst_121 : f32 to vector<2x128xf32>
      %302 = arith.divf %300, %301 : vector<2x128xf32>
      %303 = vector.shape_cast %302 : vector<2x128xf32> to vector<2x1x128xf32>
      %304 = vector.broadcast %303 : vector<2x1x128xf32> to vector<2x16x128xf32>
      %305 = arith.subf %299, %304 : vector<2x16x128xf32>
      %306 = arith.mulf %305, %305 : vector<2x16x128xf32>
      %cst_122 = arith.constant dense<0.000000e+00> : vector<2x128xf32>
      %307 = vector.multi_reduction <add>, %306, %cst_122 [1] : vector<2x16x128xf32> to vector<2x128xf32>
      %cst_123 = arith.constant 1.500000e+01 : f32
      %308 = vector.broadcast %cst_123 : f32 to vector<2x128xf32>
      %309 = arith.divf %307, %308 : vector<2x128xf32>
      %c0_124 = arith.constant 0 : index
      %c0_125 = arith.constant 0 : index
      %c0_126 = arith.constant 0 : index
      %310 = vector.load %arg15[%c0_124, %c0_125, %c0_126] : memref<1x2x256xf32, #tpu.memory_space<vmem>>, vector<1x2x128xf32>
      %311 = vector.shape_cast %310 : vector<1x2x128xf32> to vector<2x128xf32>
      %312 = vector.shape_cast %302 : vector<2x128xf32> to vector<1x2x128xf32>
      tpu.vector_store %arg15[%c0_124, %c0_125, %c0_126], %312 {strides = array<i32>} : memref<1x2x256xf32, #tpu.memory_space<vmem>>, vector<1x2x128xf32>,
      %313 = math.sqrt %309 : vector<2x128xf32>
      %c0_127 = arith.constant 0 : index
      %c0_128 = arith.constant 0 : index
      %c128 = arith.constant 128 : index
      %314 = vector.load %arg15[%c0_127, %c0_128, %c128] : memref<1x2x256xf32, #tpu.memory_space<vmem>>, vector<1x2x128xf32>
      %315 = vector.shape_cast %314 : vector<1x2x128xf32> to vector<2x128xf32>
      %316 = vector.shape_cast %313 : vector<2x128xf32> to vector<1x2x128xf32>
      tpu.vector_store %arg15[%c0_127, %c0_128, %c128], %316 {strides = array<i32>} : memref<1x2x256xf32, #tpu.memory_space<vmem>>, vector<1x2x128xf32>,
    } else {
    }
    return
  }
  func.func @transform_0(%arg0: i32, %arg1: i32) -> (i32, i32, i32) {
    %c0_i32 = arith.constant 0 : i32
    %c0_i32_0 = arith.constant 0 : i32
    %c0_i32_1 = arith.constant 0 : i32
    %c0_i32_2 = arith.constant 0 : i32
    return %c0_i32, %c0_i32_0, %c0_i32_1 : i32, i32, i32
  }
  func.func @transform_1(%arg0: i32, %arg1: i32) -> (i32, i32, i32, i32) {
    %c0_i32 = arith.constant 0 : i32
    %c0_i32_0 = arith.constant 0 : i32
    %c0_i32_1 = arith.constant 0 : i32
    return %arg0, %arg1, %c0_i32, %c0_i32_0 : i32, i32, i32, i32
  }
  func.func @transform_2(%arg0: i32, %arg1: i32) -> (i32, i32, i32, i32) {
    %c0_i32 = arith.constant 0 : i32
    %c0_i32_0 = arith.constant 0 : i32
    %c0_i32_1 = arith.constant 0 : i32
    return %arg0, %arg1, %c0_i32, %c0_i32_0 : i32, i32, i32, i32
  }
  func.func @transform_3(%arg0: i32, %arg1: i32) -> (i32, i32, i32, i32) {
    %c0_i32 = arith.constant 0 : i32
    %c0_i32_0 = arith.constant 0 : i32
    %c0_i32_1 = arith.constant 0 : i32
    return %arg0, %arg1, %c0_i32, %c0_i32_0 : i32, i32, i32, i32
  }
  func.func @transform_4(%arg0: i32, %arg1: i32) -> (i32, i32, i32, i32) {
    %c0_i32 = arith.constant 0 : i32
    %c0_i32_0 = arith.constant 0 : i32
    %c0_i32_1 = arith.constant 0 : i32
    return %arg0, %arg1, %c0_i32, %c0_i32_0 : i32, i32, i32, i32
  }
  func.func @transform_5(%arg0: i32, %arg1: i32) -> (i32, i32, i32, i32) {
    %c0_i32 = arith.constant 0 : i32
    %c0_i32_0 = arith.constant 0 : i32
    %c0_i32_1 = arith.constant 0 : i32
    return %arg0, %arg1, %c0_i32, %c0_i32_0 : i32, i32, i32, i32
  }
  func.func @transform_6(%arg0: i32, %arg1: i32) -> (i32, i32, i32, i32) {
    %c0_i32 = arith.constant 0 : i32
    %c0_i32_0 = arith.constant 0 : i32
    %c0_i32_1 = arith.constant 0 : i32
    return %arg0, %arg1, %c0_i32, %c0_i32_0 : i32, i32, i32, i32
  }
  func.func @transform_7(%arg0: i32, %arg1: i32) -> (i32, i32, i32, i32) {
    %c0_i32 = arith.constant 0 : i32
    %c0_i32_0 = arith.constant 0 : i32
    %c0_i32_1 = arith.constant 0 : i32
    return %arg0, %arg1, %c0_i32, %c0_i32_0 : i32, i32, i32, i32
  }
  func.func @transform_8(%arg0: i32, %arg1: i32) -> (i32, i32, i32, i32) {
    %c0_i32 = arith.constant 0 : i32
    %c0_i32_0 = arith.constant 0 : i32
    %c0_i32_1 = arith.constant 0 : i32
    return %arg0, %arg1, %c0_i32, %c0_i32_0 : i32, i32, i32, i32
  }
  func.func @transform_9(%arg0: i32, %arg1: i32) -> (i32, i32, i32, i32) {
    %c0_i32 = arith.constant 0 : i32
    %c0_i32_0 = arith.constant 0 : i32
    %c0_i32_1 = arith.constant 0 : i32
    return %arg0, %arg1, %c0_i32, %c0_i32_0 : i32, i32, i32, i32
  }
  func.func @transform_10(%arg0: i32, %arg1: i32) -> (i32, i32, i32, i32) {
    %c0_i32 = arith.constant 0 : i32
    %c0_i32_0 = arith.constant 0 : i32
    %c0_i32_1 = arith.constant 0 : i32
    return %arg0, %arg1, %c0_i32, %c0_i32_0 : i32, i32, i32, i32
  }
  func.func @transform_11(%arg0: i32, %arg1: i32) -> (i32, i32, i32, i32) {
    %c0_i32 = arith.constant 0 : i32
    %c0_i32_0 = arith.constant 0 : i32
    %c0_i32_1 = arith.constant 0 : i32
    return %arg0, %arg1, %c0_i32, %c0_i32_0 : i32, i32, i32, i32
  }
  func.func @transform_12(%arg0: i32, %arg1: i32) -> (i32, i32, i32, i32) {
    %c0_i32 = arith.constant 0 : i32
    %c0_i32_0 = arith.constant 0 : i32
    %c0_i32_1 = arith.constant 0 : i32
    return %arg0, %arg1, %c0_i32, %c0_i32_0 : i32, i32, i32, i32
  }
  func.func @transform_13(%arg0: i32, %arg1: i32) -> (i32, i32, i32) {
    %c0_i32 = arith.constant 0 : i32
    %c0_i32_0 = arith.constant 0 : i32
    %c0_i32_1 = arith.constant 0 : i32
    return %arg0, %c0_i32, %c0_i32_0 : i32, i32, i32
  }
}

</mosaic_0001>

<llo_original>
// kernel: tpu_custom_call.1
$region0: #{tpu_custom_call.1}
  #allocation0 [shape = 'u32[]', space=smem, size = 0x4, offset = 0x4, fixed_abs, tag = 'smem constant byte address 0x4 - core index']
  #allocation1 [shape = 'u32[72,128]{1,0:T(1,128)}', space=vmem, size = 0x9000, scoped, tag = 'internal scratch']
  #allocation2 [shape = 'f32[2,16,128]{2,1,0:T(8,128)}', space=vmem, size = 0x4000, scoped, tag = 'scratch operand']
  #allocation3 [shape = 'f32[32,128]{1,0:T(8,128)}', space=vmem, size = 0x4000, scoped, tag = 'scratch operand']
  %s0 = inlined_call_operand.hbm [shape: f32[2,16,128], index: 0, kind: input, shape index: {}]
  %s1 = inlined_call_operand.hbm [shape: bf16[2,6,128,384], index: 1, kind: input, shape index: {}]
  %s2 = inlined_call_operand.hbm [shape: f32[2,6,1,384], index: 2, kind: input, shape index: {}]
  %s3 = inlined_call_operand.hbm [shape: bf16[2,6,128,128], index: 3, kind: input, shape index: {}]
  %s4 = inlined_call_operand.hbm [shape: f32[2,6,1,128], index: 4, kind: input, shape index: {}]
  %s5 = inlined_call_operand.hbm [shape: f32[2,6,1,128], index: 5, kind: input, shape index: {}]
  %s6 = inlined_call_operand.hbm [shape: f32[2,6,1,128], index: 6, kind: input, shape index: {}]
  %s7 = inlined_call_operand.hbm [shape: bf16[2,6,128,256], index: 7, kind: input, shape index: {}]
  %s8 = inlined_call_operand.hbm [shape: f32[2,6,1,256], index: 8, kind: input, shape index: {}]
  %s9 = inlined_call_operand.hbm [shape: bf16[2,6,256,128], index: 9, kind: input, shape index: {}]
  %s10 = inlined_call_operand.hbm [shape: f32[2,6,1,128], index: 10, kind: input, shape index: {}]
  %s11 = inlined_call_operand.hbm [shape: f32[2,6,1,128], index: 11, kind: input, shape index: {}]
  %s12 = inlined_call_operand.hbm [shape: f32[2,6,1,128], index: 12, kind: input, shape index: {}]
  %s13 = inlined_call_operand.hbm [shape: f32[2,2,256], index: 13, kind: output, shape index: {}]
  %s14 = sld [smem:[#allocation0]]
  $region145: #{tpu_custom_call.1} parent=0
    _
  %s16 = ssub.s32 1, %s14
  %s17 = scalar_select 0, %s16, %s14
  $region1: #{tpu_custom_call.1} parent=0
    #allocation4 [shape = 'u8[16384]{0}', space=vmem, size = 0x4000, scoped, tag = 'input window, operand 0, single buffered']
    #allocation5 [shape = 's32[2]{0}', space=sflag, size = 0x8, scoped, tag = 'scoped memory for tpu_custom_call.1']
    #allocation6 [shape = 's32[2]{0}', space=sflag, size = 0x8, scoped, tag = 'scoped memory for tpu_custom_call.1']
    #allocation7 [shape = 'u8[196608]{0}', space=vmem, size = 0x30000, scoped, tag = 'input window, operand 1']
    #allocation8 [shape = 's32[2]{0}', space=sflag, size = 0x8, scoped, tag = 'scoped memory for tpu_custom_call.1']
    #allocation9 [shape = 'u8[3072]{0}', space=vmem, size = 0xc00, scoped, tag = 'input window, operand 2']
    #allocation10 [shape = 'u8[65536]{0}', space=vmem, size = 0x10000, scoped, tag = 'input window, operand 3']
    #allocation11 [shape = 's32[2]{0}', space=sflag, size = 0x8, scoped, tag = 'scoped memory for tpu_custom_call.1']
    #allocation12 [shape = 'u8[1024]{0}', space=vmem, size = 0x400, scoped, tag = 'input window, operand 4']
    #allocation13 [shape = 'u8[1024]{0}', space=vmem, size = 0x400, scoped, tag = 'input window, operand 5']
    #allocation14 [shape = 's32[2]{0}', space=sflag, size = 0x8, scoped, tag = 'scoped memory for tpu_custom_call.1']
    #allocation15 [shape = 'u8[1024]{0}', space=vmem, size = 0x400, scoped, tag = 'input window, operand 6']
    #allocation16 [shape = 'u8[131072]{0}', space=vmem, size = 0x20000, scoped, tag = 'input window, operand 7']
    #allocation17 [shape = 's32[2]{0}', space=sflag, size = 0x8, scoped, tag = 'scoped memory for tpu_custom_call.1']
    #allocation18 [shape = 'u8[2048]{0}', space=vmem, size = 0x800, scoped, tag = 'input window, operand 8']
    #allocation19 [shape = 'u8[131072]{0}', space=vmem, size = 0x20000, scoped, tag = 'input window, operand 9']
    #allocation20 [shape = 's32[2]{0}', space=sflag, size = 0x8, scoped, tag = 'scoped memory for tpu_custom_call.1']
    #allocation21 [shape = 'u8[1024]{0}', space=vmem, size = 0x400, scoped, tag = 'input window, operand 10']
    #allocation22 [shape = 'u8[1024]{0}', space=vmem, size = 0x400, scoped, tag = 'input window, operand 11']
    #allocation23 [shape = 's32[2]{0}', space=sflag, size = 0x8, scoped, tag = 'scoped memory for tpu_custom_call.1']
    #allocation24 [shape = 'u8[1024]{0}', space=vmem, size = 0x400, scoped, tag = 'input window, operand 12']
    #allocation25 [shape = 'u8[4096]{0}', space=vmem, size = 0x1000, scoped, tag = 'output window, operand 0']
    %18 = vsyncpa [#allocation5], 0
    %19 = vsyncpa [#allocation8], 0
    %s20 = scalar_lea.sflag [#allocation8], 1
    %21 = vsyncpa %s20, 0
    %22 = vsyncpa [#allocation11], 0
    %s23 = scalar_lea.sflag [#allocation11], 1
    %24 = vsyncpa %s23, 0
    %25 = vsyncpa [#allocation14], 0
    %s26 = scalar_lea.sflag [#allocation14], 1
    %27 = vsyncpa %s26, 0
    %28 = vsyncpa [#allocation17], 0
    %s29 = scalar_lea.sflag [#allocation17], 1
    %30 = vsyncpa %s29, 0
    %31 = vsyncpa [#allocation20], 0
    %s32 = scalar_lea.sflag [#allocation20], 1
    %33 = vsyncpa %s32, 0
    %34 = vsyncpa [#allocation23], 0
    %s35 = scalar_lea.sflag [#allocation23], 1
    %36 = vsyncpa %s35, 0
    %37 = vsyncpa [#allocation6], 0
    %s38 = scalar_lea.sflag [#allocation6], 1
    %39 = vsyncpa %s38, 0
    loop: start=0, step=1, limit=14
    $region2: #{tpu_custom_call.1} parent=1 // loop_pre_header
      _
    $region3: #{tpu_custom_call.1} parent=1 // loop_header
      %s41 = sphi 0, %s45
      %p42 = scmp.ge.s32.totalorder %s41, 14
      %s48 = sphi 0, %s60
      %s49 = sphi 0, %s56
      %s50 = sphi 0, %s48
      %s51 = sphi 0, %s49
      %s52 = sphi 0, %s50
      %s53 = sphi 0, %s51
      %s61 = sphi 0, %s61
      %s63 = sphi 0, %s61
      %s64 = sphi 0, %s63
      %s78 = sphi 0, %s64
      %s86 = sphi 0, %s88
      %s89 = sphi 0, %s86
      %s90 = sphi 0, %s89
      %s106 = sphi 0, %s90
      %s114 = sphi 0, %s116
      %s117 = sphi 0, %s114
      %s118 = sphi 0, %s117
      %s134 = sphi 0, %s118
      %s142 = sphi 0, %s144
      %s145 = sphi 0, %s142
      %s146 = sphi 0, %s145
      %s162 = sphi 0, %s146
      %s170 = sphi 0, %s172
      %s173 = sphi 0, %s170
      %s174 = sphi 0, %s173
      %s190 = sphi 0, %s174
      %s198 = sphi 0, %s200
      %s201 = sphi 0, %s198
      %s202 = sphi 0, %s201
      %s218 = sphi 0, %s202
      %s226 = sphi 0, %s228
      %s229 = sphi 0, %s226
      %s230 = sphi 0, %s229
      %s246 = sphi 0, %s230
      %s254 = sphi 0, %s256
      %s257 = sphi 0, %s254
      %s258 = sphi 0, %s257
      %s274 = sphi 0, %s258
      %s282 = sphi 0, %s284
      %s285 = sphi 0, %s282
      %s286 = sphi 0, %s285
      %s302 = sphi 0, %s286
      %s310 = sphi 0, %s312
      %s313 = sphi 0, %s310
      %s314 = sphi 0, %s313
      %s330 = sphi 0, %s314
      %s338 = sphi 0, %s340
      %s341 = sphi 0, %s338
      %s342 = sphi 0, %s341
      %s358 = sphi 0, %s342
      %s366 = sphi 0, %s368
      %s369 = sphi 0, %s366
      %s370 = sphi 0, %s369
      %s386 = sphi 0, %s370
      %s394 = sphi 0, %s396
      %s397 = sphi 0, %s394
      %s398 = sphi 0, %s397
      %s414 = sphi 0, %s398
      %s420 = sphi 0, %s422
      %s423 = sphi 0, %s420
      %s424 = sphi 0, %s423
      %s440 = sphi 0, %s424
    $region4: #{tpu_custom_call.1} parent=1 // loop_header_branch
      %44 = sbr.rel (%p42) target = $region8
    $region5: #{tpu_custom_call.1} parent=1 // loop_body
      %s46 = ssub.s32 %s41, 1
      %s47 = ssub.s32 %s41, 2
      %s54 = sadd.s32 1, %s49
      %p55 = scmp.ge.s32.totalorder %s54, 6
      %s56 = scalar_select %p55, 0, %s54
      %s57 = sadd.s32 1, %s48
      %s58 = scalar_select %p55, %s57, %s48
      %p59 = scmp.ge.s32.totalorder %s58, 2
      %s60 = scalar_select %p59, 0, %s58
      %s62 = sadd.s32 %s61, 1
      %p65 = scmp.eq.s32.totalorder %s41, 11
      %p66 = scmp.ne.s32.totalorder %s61, %s63
      %p67 = scmp.eq.s32.totalorder %s41, 0
      %p68 = por %p66, %p67
      %p69 = scmp.ne.s32.totalorder %s61, %s63
      %p70 = scmp.eq.s32.totalorder %s46, 11
      %p71 = por %p69, %p70
      %p72 = scmp.ne.s32.totalorder %s63, %s64
      %p73 = scmp.eq.s32.totalorder %s46, 0
      %p74 = por %p72, %p73
      %p75 = scmp.ne.s32.totalorder %s63, %s64
      %p76 = scmp.eq.s32.totalorder %s47, 11
      %p77 = por %p75, %p76
      %p79 = scmp.ne.s32.totalorder %s64, %s78
      %p80 = scmp.eq.s32.totalorder %s47, 0
      %p81 = por %p79, %p80
      %s82 = ssub.s32 %s48, %s60
      %s83 = ssub.s32 %s49, %s56
      %s84 = sor.u32 %s82, %s83
      %p85 = scmp.eq.s32.totalorder %s84, 0
      %s87 = sadd.s32 %s86, 1
      %s88 = scalar_select %p85, %s86, %s87
      %p91 = pneg %p85
      %p92 = scmp.eq.s32.totalorder %s41, 11
      %p93 = por %p91, %p92
      %p94 = scmp.ne.s32.totalorder %s86, %s89
      %p95 = scmp.eq.s32.totalorder %s41, 0
      %p96 = por %p94, %p95
      %p97 = scmp.ne.s32.totalorder %s86, %s89
      %p98 = scmp.eq.s32.totalorder %s46, 11
      %p99 = por %p97, %p98
      %p100 = scmp.ne.s32.totalorder %s89, %s90
      %p101 = scmp.eq.s32.totalorder %s46, 0
      %p102 = por %p100, %p101
      %p103 = scmp.ne.s32.totalorder %s89, %s90
      %p104 = scmp.eq.s32.totalorder %s47, 11
      %p105 = por %p103, %p104
      %p107 = scmp.ne.s32.totalorder %s90, %s106
      %p108 = scmp.eq.s32.totalorder %s47, 0
      %p109 = por %p107, %p108
      %s110 = ssub.s32 %s48, %s60
      %s111 = ssub.s32 %s49, %s56
      %s112 = sor.u32 %s110, %s111
      %p113 = scmp.eq.s32.totalorder %s112, 0
      %s115 = sadd.s32 %s114, 1
      %s116 = scalar_select %p113, %s114, %s115
      %p119 = pneg %p113
      %p120 = scmp.eq.s32.totalorder %s41, 11
      %p121 = por %p119, %p120
      %p122 = scmp.ne.s32.totalorder %s114, %s117
      %p123 = scmp.eq.s32.totalorder %s41, 0
      %p124 = por %p122, %p123
      %p125 = scmp.ne.s32.totalorder %s114, %s117
      %p126 = scmp.eq.s32.totalorder %s46, 11
      %p127 = por %p125, %p126
      %p128 = scmp.ne.s32.totalorder %s117, %s118
      %p129 = scmp.eq.s32.totalorder %s46, 0
      %p130 = por %p128, %p129
      %p131 = scmp.ne.s32.totalorder %s117, %s118
      %p132 = scmp.eq.s32.totalorder %s47, 11
      %p133 = por %p131, %p132
      %p135 = scmp.ne.s32.totalorder %s118, %s134
      %p136 = scmp.eq.s32.totalorder %s47, 0
      %p137 = por %p135, %p136
      %s138 = ssub.s32 %s48, %s60
      %s139 = ssub.s32 %s49, %s56
      %s140 = sor.u32 %s138, %s139
      %p141 = scmp.eq.s32.totalorder %s140, 0
      %s143 = sadd.s32 %s142, 1
      %s144 = scalar_select %p141, %s142, %s143
      %p147 = pneg %p141
      %p148 = scmp.eq.s32.totalorder %s41, 11
      %p149 = por %p147, %p148
      %p150 = scmp.ne.s32.totalorder %s142, %s145
      %p151 = scmp.eq.s32.totalorder %s41, 0
      %p152 = por %p150, %p151
      %p153 = scmp.ne.s32.totalorder %s142, %s145
      %p154 = scmp.eq.s32.totalorder %s46, 11
      %p155 = por %p153, %p154
      %p156 = scmp.ne.s32.totalorder %s145, %s146
      %p157 = scmp.eq.s32.totalorder %s46, 0
      %p158 = por %p156, %p157
      %p159 = scmp.ne.s32.totalorder %s145, %s146
      %p160 = scmp.eq.s32.totalorder %s47, 11
      %p161 = por %p159, %p160
      %p163 = scmp.ne.s32.totalorder %s146, %s162
      %p164 = scmp.eq.s32.totalorder %s47, 0
      %p165 = por %p163, %p164
      %s166 = ssub.s32 %s48, %s60
      %s167 = ssub.s32 %s49, %s56
      %s168 = sor.u32 %s166, %s167
      %p169 = scmp.eq.s32.totalorder %s168, 0
      %s171 = sadd.s32 %s170, 1
      %s172 = scalar_select %p169, %s170, %s171
      %p175 = pneg %p169
      %p176 = scmp.eq.s32.totalorder %s41, 11
      %p177 = por %p175, %p176
      %p178 = scmp.ne.s32.totalorder %s170, %s173
      %p179 = scmp.eq.s32.totalorder %s41, 0
      %p180 = por %p178, %p179
      %p181 = scmp.ne.s32.totalorder %s170, %s173
      %p182 = scmp.eq.s32.totalorder %s46, 11
      %p183 = por %p181, %p182
      %p184 = scmp.ne.s32.totalorder %s173, %s174
      %p185 = scmp.eq.s32.totalorder %s46, 0
      %p186 = por %p184, %p185
      %p187 = scmp.ne.s32.totalorder %s173, %s174
      %p188 = scmp.eq.s32.totalorder %s47, 11
      %p189 = por %p187, %p188
      %p191 = scmp.ne.s32.totalorder %s174, %s190
      %p192 = scmp.eq.s32.totalorder %s47, 0
      %p193 = por %p191, %p192
      %s194 = ssub.s32 %s48, %s60
      %s195 = ssub.s32 %s49, %s56
      %s196 = sor.u32 %s194, %s195
      %p197 = scmp.eq.s32.totalorder %s196, 0
      %s199 = sadd.s32 %s198, 1
      %s200 = scalar_select %p197, %s198, %s199
      %p203 = pneg %p197
      %p204 = scmp.eq.s32.totalorder %s41, 11
      %p205 = por %p203, %p204
      %p206 = scmp.ne.s32.totalorder %s198, %s201
      %p207 = scmp.eq.s32.totalorder %s41, 0
      %p208 = por %p206, %p207
      %p209 = scmp.ne.s32.totalorder %s198, %s201
      %p210 = scmp.eq.s32.totalorder %s46, 11
      %p211 = por %p209, %p210
      %p212 = scmp.ne.s32.totalorder %s201, %s202
      %p213 = scmp.eq.s32.totalorder %s46, 0
      %p214 = por %p212, %p213
      %p215 = scmp.ne.s32.totalorder %s201, %s202
      %p216 = scmp.eq.s32.totalorder %s47, 11
      %p217 = por %p215, %p216
      %p219 = scmp.ne.s32.totalorder %s202, %s218
      %p220 = scmp.eq.s32.totalorder %s47, 0
      %p221 = por %p219, %p220
      %s222 = ssub.s32 %s48, %s60
      %s223 = ssub.s32 %s49, %s56
      %s224 = sor.u32 %s222, %s223
      %p225 = scmp.eq.s32.totalorder %s224, 0
      %s227 = sadd.s32 %s226, 1
      %s228 = scalar_select %p225, %s226, %s227
      %p231 = pneg %p225
      %p232 = scmp.eq.s32.totalorder %s41, 11
      %p233 = por %p231, %p232
      %p234 = scmp.ne.s32.totalorder %s226, %s229
      %p235 = scmp.eq.s32.totalorder %s41, 0
      %p236 = por %p234, %p235
      %p237 = scmp.ne.s32.totalorder %s226, %s229
      %p238 = scmp.eq.s32.totalorder %s46, 11
      %p239 = por %p237, %p238
      %p240 = scmp.ne.s32.totalorder %s229, %s230
      %p241 = scmp.eq.s32.totalorder %s46, 0
      %p242 = por %p240, %p241
      %p243 = scmp.ne.s32.totalorder %s229, %s230
      %p244 = scmp.eq.s32.totalorder %s47, 11
      %p245 = por %p243, %p244
      %p247 = scmp.ne.s32.totalorder %s230, %s246
      %p248 = scmp.eq.s32.totalorder %s47, 0
      %p249 = por %p247, %p248
      %s250 = ssub.s32 %s48, %s60
      %s251 = ssub.s32 %s49, %s56
      %s252 = sor.u32 %s250, %s251
      %p253 = scmp.eq.s32.totalorder %s252, 0
      %s255 = sadd.s32 %s254, 1
      %s256 = scalar_select %p253, %s254, %s255
      %p259 = pneg %p253
      %p260 = scmp.eq.s32.totalorder %s41, 11
      %p261 = por %p259, %p260
      %p262 = scmp.ne.s32.totalorder %s254, %s257
      %p263 = scmp.eq.s32.totalorder %s41, 0
      %p264 = por %p262, %p263
      %p265 = scmp.ne.s32.totalorder %s254, %s257
      %p266 = scmp.eq.s32.totalorder %s46, 11
      %p267 = por %p265, %p266
      %p268 = scmp.ne.s32.totalorder %s257, %s258
      %p269 = scmp.eq.s32.totalorder %s46, 0
      %p270 = por %p268, %p269
      %p271 = scmp.ne.s32.totalorder %s257, %s258
      %p272 = scmp.eq.s32.totalorder %s47, 11
      %p273 = por %p271, %p272
      %p275 = scmp.ne.s32.totalorder %s258, %s274
      %p276 = scmp.eq.s32.totalorder %s47, 0
      %p277 = por %p275, %p276
      %s278 = ssub.s32 %s48, %s60
      %s279 = ssub.s32 %s49, %s56
      %s280 = sor.u32 %s278, %s279
      %p281 = scmp.eq.s32.totalorder %s280, 0
      %s283 = sadd.s32 %s282, 1
      %s284 = scalar_select %p281, %s282, %s283
      %p287 = pneg %p281
      %p288 = scmp.eq.s32.totalorder %s41, 11
      %p289 = por %p287, %p288
      %p290 = scmp.ne.s32.totalorder %s282, %s285
      %p291 = scmp.eq.s32.totalorder %s41, 0
      %p292 = por %p290, %p291
      %p293 = scmp.ne.s32.totalorder %s282, %s285
      %p294 = scmp.eq.s32.totalorder %s46, 11
      %p295 = por %p293, %p294
      %p296 = scmp.ne.s32.totalorder %s285, %s286
      %p297 = scmp.eq.s32.totalorder %s46, 0
      %p298 = por %p296, %p297
      %p299 = scmp.ne.s32.totalorder %s285, %s286
      %p300 = scmp.eq.s32.totalorder %s47, 11
      %p301 = por %p299, %p300
      %p303 = scmp.ne.s32.totalorder %s286, %s302
      %p304 = scmp.eq.s32.totalorder %s47, 0
      %p305 = por %p303, %p304
      %s306 = ssub.s32 %s48, %s60
      %s307 = ssub.s32 %s49, %s56
      %s308 = sor.u32 %s306, %s307
      %p309 = scmp.eq.s32.totalorder %s308, 0
      %s311 = sadd.s32 %s310, 1
      %s312 = scalar_select %p309, %s310, %s311
      %p315 = pneg %p309
      %p316 = scmp.eq.s32.totalorder %s41, 11
      %p317 = por %p315, %p316
      %p318 = scmp.ne.s32.totalorder %s310, %s313
      %p319 = scmp.eq.s32.totalorder %s41, 0
      %p320 = por %p318, %p319
      %p321 = scmp.ne.s32.totalorder %s310, %s313
      %p322 = scmp.eq.s32.totalorder %s46, 11
      %p323 = por %p321, %p322
      %p324 = scmp.ne.s32.totalorder %s313, %s314
      %p325 = scmp.eq.s32.totalorder %s46, 0
      %p326 = por %p324, %p325
      %p327 = scmp.ne.s32.totalorder %s313, %s314
      %p328 = scmp.eq.s32.totalorder %s47, 11
      %p329 = por %p327, %p328
      %p331 = scmp.ne.s32.totalorder %s314, %s330
      %p332 = scmp.eq.s32.totalorder %s47, 0
      %p333 = por %p331, %p332
      %s334 = ssub.s32 %s48, %s60
      %s335 = ssub.s32 %s49, %s56
      %s336 = sor.u32 %s334, %s335
      %p337 = scmp.eq.s32.totalorder %s336, 0
      %s339 = sadd.s32 %s338, 1
      %s340 = scalar_select %p337, %s338, %s339
      %p343 = pneg %p337
      %p344 = scmp.eq.s32.totalorder %s41, 11
      %p345 = por %p343, %p344
      %p346 = scmp.ne.s32.totalorder %s338, %s341
      %p347 = scmp.eq.s32.totalorder %s41, 0
      %p348 = por %p346, %p347
      %p349 = scmp.ne.s32.totalorder %s338, %s341
      %p350 = scmp.eq.s32.totalorder %s46, 11
      %p351 = por %p349, %p350
      %p352 = scmp.ne.s32.totalorder %s341, %s342
      %p353 = scmp.eq.s32.totalorder %s46, 0
      %p354 = por %p352, %p353
      %p355 = scmp.ne.s32.totalorder %s341, %s342
      %p356 = scmp.eq.s32.totalorder %s47, 11
      %p357 = por %p355, %p356
      %p359 = scmp.ne.s32.totalorder %s342, %s358
      %p360 = scmp.eq.s32.totalorder %s47, 0
      %p361 = por %p359, %p360
      %s362 = ssub.s32 %s48, %s60
      %s363 = ssub.s32 %s49, %s56
      %s364 = sor.u32 %s362, %s363
      %p365 = scmp.eq.s32.totalorder %s364, 0
      %s367 = sadd.s32 %s366, 1
      %s368 = scalar_select %p365, %s366, %s367
      %p371 = pneg %p365
      %p372 = scmp.eq.s32.totalorder %s41, 11
      %p373 = por %p371, %p372
      %p374 = scmp.ne.s32.totalorder %s366, %s369
      %p375 = scmp.eq.s32.totalorder %s41, 0
      %p376 = por %p374, %p375
      %p377 = scmp.ne.s32.totalorder %s366, %s369
      %p378 = scmp.eq.s32.totalorder %s46, 11
      %p379 = por %p377, %p378
      %p380 = scmp.ne.s32.totalorder %s369, %s370
      %p381 = scmp.eq.s32.totalorder %s46, 0
      %p382 = por %p380, %p381
      %p383 = scmp.ne.s32.totalorder %s369, %s370
      %p384 = scmp.eq.s32.totalorder %s47, 11
      %p385 = por %p383, %p384
      %p387 = scmp.ne.s32.totalorder %s370, %s386
      %p388 = scmp.eq.s32.totalorder %s47, 0
      %p389 = por %p387, %p388
      %s390 = ssub.s32 %s48, %s60
      %s391 = ssub.s32 %s49, %s56
      %s392 = sor.u32 %s390, %s391
      %p393 = scmp.eq.s32.totalorder %s392, 0
      %s395 = sadd.s32 %s394, 1
      %s396 = scalar_select %p393, %s394, %s395
      %p399 = pneg %p393
      %p400 = scmp.eq.s32.totalorder %s41, 11
      %p401 = por %p399, %p400
      %p402 = scmp.ne.s32.totalorder %s394, %s397
      %p403 = scmp.eq.s32.totalorder %s41, 0
      %p404 = por %p402, %p403
      %p405 = scmp.ne.s32.totalorder %s394, %s397
      %p406 = scmp.eq.s32.totalorder %s46, 11
      %p407 = por %p405, %p406
      %p408 = scmp.ne.s32.totalorder %s397, %s398
      %p409 = scmp.eq.s32.totalorder %s46, 0
      %p410 = por %p408, %p409
      %p411 = scmp.ne.s32.totalorder %s397, %s398
      %p412 = scmp.eq.s32.totalorder %s47, 11
      %p413 = por %p411, %p412
      %p415 = scmp.ne.s32.totalorder %s398, %s414
      %p416 = scmp.eq.s32.totalorder %s47, 0
      %p417 = por %p415, %p416
      %s418 = ssub.s32 %s48, %s60
      %p419 = scmp.eq.s32.totalorder %s418, 0
      %s421 = sadd.s32 %s420, 1
      %s422 = scalar_select %p419, %s420, %s421
      %p425 = pneg %p419
      %p426 = scmp.eq.s32.totalorder %s41, 11
      %p427 = por %p425, %p426
      %p428 = scmp.ne.s32.totalorder %s420, %s423
      %p429 = scmp.eq.s32.totalorder %s41, 0
      %p430 = por %p428, %p429
      %p431 = scmp.ne.s32.totalorder %s420, %s423
      %p432 = scmp.eq.s32.totalorder %s46, 11
      %p433 = por %p431, %p432
      %p434 = scmp.ne.s32.totalorder %s423, %s424
      %p435 = scmp.eq.s32.totalorder %s46, 0
      %p436 = por %p434, %p435
      %p437 = scmp.ne.s32.totalorder %s423, %s424
      %p438 = scmp.eq.s32.totalorder %s47, 11
      %p439 = por %p437, %p438
      %p441 = scmp.ne.s32.totalorder %s424, %s440
      %p442 = scmp.eq.s32.totalorder %s47, 0
      %p443 = por %p441, %p442
      %p444 = scmp.le.s32.totalorder 1, %s41
      %p445 = scmp.lt.s32.totalorder %s41, 13
      %p446 = pnand %p444, %p445
      %p447 = pneg %p446
      // Predicated region
      $region9: #{tpu_custom_call.1} parent=5 // pred_check
        _
      $region10: #{tpu_custom_call.1} parent=5 // pred_check_branch
        %449 = sbr.rel (%p446) target = $region12
      $region11: #{tpu_custom_call.1} parent=5 // pred_region
        %s450 = ssub.s32 %s41, 1
        // Predicated region
        $region13: #{tpu_custom_call.1} parent=11 // pred_check
          %p451 = pneg %p74
        $region14: #{tpu_custom_call.1} parent=11 // pred_check_branch
          %453 = sbr.rel (%p451) target = $region16
        $region15: #{tpu_custom_call.1} parent=11 // pred_region
          %455 = vsyncadd [#allocation5], 0
          %s456 = sshll.u32 %s0, 4
          %s457 = int_to_ptr.hbm [resolvable:$true] %s456
          %s458 = sshll.u32 [#allocation4], 4
          %s459 = int_to_ptr.vmem [resolvable:$true] %s458
          %464 = dma.hbm_to_vmem [thread:$0]  %s457, 512, %s459, [#allocation5], 128, 128, 8
        $region16: #{tpu_custom_call.1} parent=11 // pred_fallthru
          _
      $region12: #{tpu_custom_call.1} parent=5 // pred_fallthru
        _
      %p465 = scmp.lt.s32.totalorder %s41, 12
      // Predicated region
      $region17: #{tpu_custom_call.1} parent=5 // pred_check
        %p466 = pneg %p465
      $region18: #{tpu_custom_call.1} parent=5 // pred_check_branch
        %468 = sbr.rel (%p466) target = $region20
      $region19: #{tpu_custom_call.1} parent=5 // pred_region
        // Predicated region
        $region21: #{tpu_custom_call.1} parent=19 // pred_check
          %p469 = pneg %p96
        $region22: #{tpu_custom_call.1} parent=19 // pred_check_branch
          %471 = sbr.rel (%p469) target = $region24
        $region23: #{tpu_custom_call.1} parent=19 // pred_region
          %s472 = sand.u32 %s41, 1
          %s473 = scalar_lea.sflag [#allocation8], %s472
          %s474 = sand.u32 %s86, 1
          %s475 = smul.addr %s474, 192
          %s476 = scalar_lea.vmem [#allocation7], %s475
          %478 = vsyncadd %s473, 0
          %s479 = smul.addr %s49, 48
          %s480 = smul.addr %s48, 288
          %s481 = sadd.s32 %s479, %s480
          %s482 = smul.addr %s481, 4
          %s483 = scalar_lea.hbm %s1, %s482
          %s484 = sshll.u32 %s483, 4
          %s485 = int_to_ptr.hbm [resolvable:$true] %s484
          %s486 = sshll.u32 %s476, 4
          %s487 = int_to_ptr.vmem [resolvable:$true] %s486
          %492 = dma.hbm_to_vmem [thread:$0]  %s485, 3072, %s487, %s473, 192, 192, 12
        $region24: #{tpu_custom_call.1} parent=19 // pred_fallthru
          _
        // Predicated region
        $region25: #{tpu_custom_call.1} parent=19 // pred_check
          %p493 = pneg %p124
        $region26: #{tpu_custom_call.1} parent=19 // pred_check_branch
          %495 = sbr.rel (%p493) target = $region28
        $region27: #{tpu_custom_call.1} parent=19 // pred_region
          %s496 = sand.u32 %s41, 1
          %s497 = scalar_lea.sflag [#allocation8], %s496
          %s498 = sand.u32 %s114, 1
          %s499 = smul.addr %s498, 3
          %s500 = scalar_lea.vmem [#allocation9], %s499
          %502 = vsyncadd %s497, 0
          %s503 = smul.addr %s49, 3
          %s504 = smul.addr %s48, 18
          %s505 = sadd.s32 %s503, %s504
          %s506 = scalar_lea.hbm %s2, %s505
          %s508 = sshll.u32 %s506, 4
          %s509 = int_to_ptr.hbm [resolvable:$true] %s508
          %s510 = sshll.u32 %s500, 4
          %s511 = int_to_ptr.vmem [resolvable:$true] %s510
          %513 = dma.hbm_to_vmem [thread:$0]  %s509, 48, %s511, %s497
        $region28: #{tpu_custom_call.1} parent=19 // pred_fallthru
          _
        // Predicated region
        $region29: #{tpu_custom_call.1} parent=19 // pred_check
          %p514 = pneg %p152
        $region30: #{tpu_custom_call.1} parent=19 // pred_check_branch
          %516 = sbr.rel (%p514) target = $region32
        $region31: #{tpu_custom_call.1} parent=19 // pred_region
          %s517 = sand.u32 %s41, 1
          %s518 = scalar_lea.sflag [#allocation11], %s517
          %s519 = sand.u32 %s142, 1
          %s520 = smul.addr %s519, 64
          %s521 = scalar_lea.vmem [#allocation10], %s520
          %523 = vsyncadd %s518, 0
          %s524 = smul.addr %s49, 16
          %s525 = smul.addr %s48, 96
          %s526 = sadd.s32 %s524, %s525
          %s527 = smul.addr %s526, 4
          %s528 = scalar_lea.hbm %s3, %s527
          %s529 = sshll.u32 %s528, 4
          %s530 = int_to_ptr.hbm [resolvable:$true] %s529
          %s531 = sshll.u32 %s521, 4
          %s532 = int_to_ptr.vmem [resolvable:$true] %s531
          %537 = dma.hbm_to_vmem [thread:$0]  %s530, 1024, %s532, %s518, 64, 64, 4
        $region32: #{tpu_custom_call.1} parent=19 // pred_fallthru
          _
        // Predicated region
        $region33: #{tpu_custom_call.1} parent=19 // pred_check
          %p538 = pneg %p180
        $region34: #{tpu_custom_call.1} parent=19 // pred_check_branch
          %540 = sbr.rel (%p538) target = $region36
        $region35: #{tpu_custom_call.1} parent=19 // pred_region
          %s541 = sand.u32 %s41, 1
          %s542 = scalar_lea.sflag [#allocation11], %s541
          %s543 = sand.u32 %s170, 1
          %s544 = scalar_lea.vmem [#allocation12], %s543
          %546 = vsyncadd %s542, 0
          %s547 = smul.addr %s48, 6
          %s548 = sadd.s32 %s49, %s547
          %s549 = scalar_lea.hbm %s4, %s548
          %s551 = sshll.u32 %s549, 4
          %s552 = int_to_ptr.hbm [resolvable:$true] %s551
          %s553 = sshll.u32 %s544, 4
          %s554 = int_to_ptr.vmem [resolvable:$true] %s553
          %556 = dma.hbm_to_vmem [thread:$0]  %s552, 16, %s554, %s542
        $region36: #{tpu_custom_call.1} parent=19 // pred_fallthru
          _
        // Predicated region
        $region37: #{tpu_custom_call.1} parent=19 // pred_check
          %p557 = pneg %p208
        $region38: #{tpu_custom_call.1} parent=19 // pred_check_branch
          %559 = sbr.rel (%p557) target = $region40
        $region39: #{tpu_custom_call.1} parent=19 // pred_region
          %s560 = sand.u32 %s41, 1
          %s561 = scalar_lea.sflag [#allocation14], %s560
          %s562 = sand.u32 %s198, 1
          %s563 = scalar_lea.vmem [#allocation13], %s562
          %565 = vsyncadd %s561, 0
          %s566 = smul.addr %s48, 6
          %s567 = sadd.s32 %s49, %s566
          %s568 = scalar_lea.hbm %s5, %s567
          %s570 = sshll.u32 %s568, 4
          %s571 = int_to_ptr.hbm [resolvable:$true] %s570
          %s572 = sshll.u32 %s563, 4
          %s573 = int_to_ptr.vmem [resolvable:$true] %s572
          %575 = dma.hbm_to_vmem [thread:$0]  %s571, 16, %s573, %s561
        $region40: #{tpu_custom_call.1} parent=19 // pred_fallthru
          _
        // Predicated region
        $region41: #{tpu_custom_call.1} parent=19 // pred_check
          %p576 = pneg %p236
        $region42: #{tpu_custom_call.1} parent=19 // pred_check_branch
          %578 = sbr.rel (%p576) target = $region44
        $region43: #{tpu_custom_call.1} parent=19 // pred_region
          %s579 = sand.u32 %s41, 1
          %s580 = scalar_lea.sflag [#allocation14], %s579
          %s581 = sand.u32 %s226, 1
          %s582 = scalar_lea.vmem [#allocation15], %s581
          %584 = vsyncadd %s580, 0
          %s585 = smul.addr %s48, 6
          %s586 = sadd.s32 %s49, %s585
          %s587 = scalar_lea.hbm %s6, %s586
          %s589 = sshll.u32 %s587, 4
          %s590 = int_to_ptr.hbm [resolvable:$true] %s589
          %s591 = sshll.u32 %s582, 4
          %s592 = int_to_ptr.vmem [resolvable:$true] %s591
          %594 = dma.hbm_to_vmem [thread:$0]  %s590, 16, %s592, %s580
        $region44: #{tpu_custom_call.1} parent=19 // pred_fallthru
          _
        // Predicated region
        $region45: #{tpu_custom_call.1} parent=19 // pred_check
          %p595 = pneg %p264
        $region46: #{tpu_custom_call.1} parent=19 // pred_check_branch
          %597 = sbr.rel (%p595) target = $region48
        $region47: #{tpu_custom_call.1} parent=19 // pred_region
          %s598 = sand.u32 %s41, 1
          %s599 = scalar_lea.sflag [#allocation17], %s598
          %s600 = sand.u32 %s254, 1
          %s601 = smul.addr %s600, 128
          %s602 = scalar_lea.vmem [#allocation16], %s601
          %604 = vsyncadd %s599, 0
          %s605 = smul.addr %s49, 32
          %s606 = smul.addr %s48, 192
          %s607 = sadd.s32 %s605, %s606
          %s608 = smul.addr %s607, 4
          %s609 = scalar_lea.hbm %s7, %s608
          %s610 = sshll.u32 %s609, 4
          %s611 = int_to_ptr.hbm [resolvable:$true] %s610
          %s612 = sshll.u32 %s602, 4
          %s613 = int_to_ptr.vmem [resolvable:$true] %s612
          %618 = dma.hbm_to_vmem [thread:$0]  %s611, 2048, %s613, %s599, 128, 128, 8
        $region48: #{tpu_custom_call.1} parent=19 // pred_fallthru
          _
        // Predicated region
        $region49: #{tpu_custom_call.1} parent=19 // pred_check
          %p619 = pneg %p292
        $region50: #{tpu_custom_call.1} parent=19 // pred_check_branch
          %621 = sbr.rel (%p619) target = $region52
        $region51: #{tpu_custom_call.1} parent=19 // pred_region
          %s622 = sand.u32 %s41, 1
          %s623 = scalar_lea.sflag [#allocation17], %s622
          %s624 = sand.u32 %s282, 1
          %s625 = smul.addr %s624, 2
          %s626 = scalar_lea.vmem [#allocation18], %s625
          %628 = vsyncadd %s623, 0
          %s629 = smul.addr %s49, 2
          %s630 = smul.addr %s48, 12
          %s631 = sadd.s32 %s629, %s630
          %s632 = scalar_lea.hbm %s8, %s631
          %s634 = sshll.u32 %s632, 4
          %s635 = int_to_ptr.hbm [resolvable:$true] %s634
          %s636 = sshll.u32 %s626, 4
          %s637 = int_to_ptr.vmem [resolvable:$true] %s636
          %639 = dma.hbm_to_vmem [thread:$0]  %s635, 32, %s637, %s623
        $region52: #{tpu_custom_call.1} parent=19 // pred_fallthru
          _
        // Predicated region
        $region53: #{tpu_custom_call.1} parent=19 // pred_check
          %p640 = pneg %p320
        $region54: #{tpu_custom_call.1} parent=19 // pred_check_branch
          %642 = sbr.rel (%p640) target = $region56
        $region55: #{tpu_custom_call.1} parent=19 // pred_region
          %s643 = sand.u32 %s41, 1
          %s644 = scalar_lea.sflag [#allocation20], %s643
          %s645 = sand.u32 %s310, 1
          %s646 = smul.addr %s645, 128
          %s647 = scalar_lea.vmem [#allocation19], %s646
          %649 = vsyncadd %s644, 0
          %s650 = smul.addr %s49, 32
          %s651 = smul.addr %s48, 192
          %s652 = sadd.s32 %s650, %s651
          %s653 = smul.addr %s652, 4
          %s654 = scalar_lea.hbm %s9, %s653
          %s655 = sshll.u32 %s654, 4
          %s656 = int_to_ptr.hbm [resolvable:$true] %s655
          %s657 = sshll.u32 %s647, 4
          %s658 = int_to_ptr.vmem [resolvable:$true] %s657
          %663 = dma.hbm_to_vmem [thread:$0]  %s656, 2048, %s658, %s644, 64, 64, 4
        $region56: #{tpu_custom_call.1} parent=19 // pred_fallthru
          _
        // Predicated region
        $region57: #{tpu_custom_call.1} parent=19 // pred_check
          %p664 = pneg %p348
        $region58: #{tpu_custom_call.1} parent=19 // pred_check_branch
          %666 = sbr.rel (%p664) target = $region60
        $region59: #{tpu_custom_call.1} parent=19 // pred_region
          %s667 = sand.u32 %s41, 1
          %s668 = scalar_lea.sflag [#allocation20], %s667
          %s669 = sand.u32 %s338, 1
          %s670 = scalar_lea.vmem [#allocation21], %s669
          %672 = vsyncadd %s668, 0
          %s673 = smul.addr %s48, 6
          %s674 = sadd.s32 %s49, %s673
          %s675 = scalar_lea.hbm %s10, %s674
          %s677 = sshll.u32 %s675, 4
          %s678 = int_to_ptr.hbm [resolvable:$true] %s677
          %s679 = sshll.u32 %s670, 4
          %s680 = int_to_ptr.vmem [resolvable:$true] %s679
          %682 = dma.hbm_to_vmem [thread:$0]  %s678, 16, %s680, %s668
        $region60: #{tpu_custom_call.1} parent=19 // pred_fallthru
          _
        // Predicated region
        $region61: #{tpu_custom_call.1} parent=19 // pred_check
          %p683 = pneg %p376
        $region62: #{tpu_custom_call.1} parent=19 // pred_check_branch
          %685 = sbr.rel (%p683) target = $region64
        $region63: #{tpu_custom_call.1} parent=19 // pred_region
          %s686 = sand.u32 %s41, 1
          %s687 = scalar_lea.sflag [#allocation23], %s686
          %s688 = sand.u32 %s366, 1
          %s689 = scalar_lea.vmem [#allocation22], %s688
          %691 = vsyncadd %s687, 0
          %s692 = smul.addr %s48, 6
          %s693 = sadd.s32 %s49, %s692
          %s694 = scalar_lea.hbm %s11, %s693
          %s696 = sshll.u32 %s694, 4
          %s697 = int_to_ptr.hbm [resolvable:$true] %s696
          %s698 = sshll.u32 %s689, 4
          %s699 = int_to_ptr.vmem [resolvable:$true] %s698
          %701 = dma.hbm_to_vmem [thread:$0]  %s697, 16, %s699, %s687
        $region64: #{tpu_custom_call.1} parent=19 // pred_fallthru
          _
        // Predicated region
        $region65: #{tpu_custom_call.1} parent=19 // pred_check
          %p702 = pneg %p404
        $region66: #{tpu_custom_call.1} parent=19 // pred_check_branch
          %704 = sbr.rel (%p702) target = $region68
        $region67: #{tpu_custom_call.1} parent=19 // pred_region
          %s705 = sand.u32 %s41, 1
          %s706 = scalar_lea.sflag [#allocation23], %s705
          %s707 = sand.u32 %s394, 1
          %s708 = scalar_lea.vmem [#allocation24], %s707
          %710 = vsyncadd %s706, 0
          %s711 = smul.addr %s48, 6
          %s712 = sadd.s32 %s49, %s711
          %s713 = scalar_lea.hbm %s12, %s712
          %s715 = sshll.u32 %s713, 4
          %s716 = int_to_ptr.hbm [resolvable:$true] %s715
          %s717 = sshll.u32 %s708, 4
          %s718 = int_to_ptr.vmem [resolvable:$true] %s717
          %720 = dma.hbm_to_vmem [thread:$0]  %s716, 16, %s718, %s706
        $region68: #{tpu_custom_call.1} parent=19 // pred_fallthru
          _
      $region20: #{tpu_custom_call.1} parent=5 // pred_fallthru
        _
      %p721 = scmp.le.s32.totalorder 1, %s41
      %p722 = scmp.lt.s32.totalorder %s41, 13
      %p723 = pnand %p721, %p722
      %p724 = pneg %p723
      // Predicated region
      $region69: #{tpu_custom_call.1} parent=5 // pred_check
        _
      $region70: #{tpu_custom_call.1} parent=5 // pred_check_branch
        %726 = sbr.rel (%p723) target = $region72
      $region71: #{tpu_custom_call.1} parent=5 // pred_region
        %s727 = ssub.s32 %s41, 1
        // Predicated region
        $region73: #{tpu_custom_call.1} parent=71 // pred_check
          %p728 = pneg %p74
        $region74: #{tpu_custom_call.1} parent=71 // pred_check_branch
          %730 = sbr.rel (%p728) target = $region76
        $region75: #{tpu_custom_call.1} parent=71 // pred_region
          %732 = dma.done [#allocation5], 512
        $region76: #{tpu_custom_call.1} parent=71 // pred_fallthru
          _
        %s733 = sand.u32 %s46, 1
        %s734 = scalar_lea.sflag [#allocation8], %s733
        %s735 = sand.u32 %s89, 1
        %s736 = smul.addr %s735, 192
        %s737 = scalar_lea.vmem [#allocation7], %s736
        // Predicated region
        $region77: #{tpu_custom_call.1} parent=71 // pred_check
          %p738 = pneg %p102
        $region78: #{tpu_custom_call.1} parent=71 // pred_check_branch
          %740 = sbr.rel (%p738) target = $region80
        $region79: #{tpu_custom_call.1} parent=71 // pred_region
          %742 = dma.done %s734, 3072
        $region80: #{tpu_custom_call.1} parent=71 // pred_fallthru
          _
        %s743 = sand.u32 %s46, 1
        %s744 = scalar_lea.sflag [#allocation8], %s743
        %s745 = sand.u32 %s117, 1
        %s746 = smul.addr %s745, 3
        %s747 = scalar_lea.vmem [#allocation9], %s746
        // Predicated region
        $region81: #{tpu_custom_call.1} parent=71 // pred_check
          %p748 = pneg %p130
        $region82: #{tpu_custom_call.1} parent=71 // pred_check_branch
          %750 = sbr.rel (%p748) target = $region84
        $region83: #{tpu_custom_call.1} parent=71 // pred_region
          %752 = dma.done %s744, 48
        $region84: #{tpu_custom_call.1} parent=71 // pred_fallthru
          _
        %s753 = sand.u32 %s46, 1
        %s754 = scalar_lea.sflag [#allocation11], %s753
        %s755 = sand.u32 %s145, 1
        %s756 = smul.addr %s755, 64
        %s757 = scalar_lea.vmem [#allocation10], %s756
        // Predicated region
        $region85: #{tpu_custom_call.1} parent=71 // pred_check
          %p758 = pneg %p158
        $region86: #{tpu_custom_call.1} parent=71 // pred_check_branch
          %760 = sbr.rel (%p758) target = $region88
        $region87: #{tpu_custom_call.1} parent=71 // pred_region
          %762 = dma.done %s754, 1024
        $region88: #{tpu_custom_call.1} parent=71 // pred_fallthru
          _
        %s763 = sand.u32 %s46, 1
        %s764 = scalar_lea.sflag [#allocation11], %s763
        %s765 = sand.u32 %s173, 1
        %s766 = scalar_lea.vmem [#allocation12], %s765
        // Predicated region
        $region89: #{tpu_custom_call.1} parent=71 // pred_check
          %p767 = pneg %p186
        $region90: #{tpu_custom_call.1} parent=71 // pred_check_branch
          %769 = sbr.rel (%p767) target = $region92
        $region91: #{tpu_custom_call.1} parent=71 // pred_region
          %771 = dma.done %s764, 16
        $region92: #{tpu_custom_call.1} parent=71 // pred_fallthru
          _
        %s772 = sand.u32 %s46, 1
        %s773 = scalar_lea.sflag [#allocation14], %s772
        %s774 = sand.u32 %s201, 1
        %s775 = scalar_lea.vmem [#allocation13], %s774
        // Predicated region
        $region93: #{tpu_custom_call.1} parent=71 // pred_check
          %p776 = pneg %p214
        $region94: #{tpu_custom_call.1} parent=71 // pred_check_branch
          %778 = sbr.rel (%p776) target = $region96
        $region95: #{tpu_custom_call.1} parent=71 // pred_region
          %780 = dma.done %s773, 16
        $region96: #{tpu_custom_call.1} parent=71 // pred_fallthru
          _
        %s781 = sand.u32 %s46, 1
        %s782 = scalar_lea.sflag [#allocation14], %s781
        %s783 = sand.u32 %s229, 1
        %s784 = scalar_lea.vmem [#allocation15], %s783
        // Predicated region
        $region97: #{tpu_custom_call.1} parent=71 // pred_check
          %p785 = pneg %p242
        $region98: #{tpu_custom_call.1} parent=71 // pred_check_branch
          %787 = sbr.rel (%p785) target = $region100
        $region99: #{tpu_custom_call.1} parent=71 // pred_region
          %789 = dma.done %s782, 16
        $region100: #{tpu_custom_call.1} parent=71 // pred_fallthru
          _
        %s790 = sand.u32 %s46, 1
        %s791 = scalar_lea.sflag [#allocation17], %s790
        %s792 = sand.u32 %s257, 1
        %s793 = smul.addr %s792, 128
        %s794 = scalar_lea.vmem [#allocation16], %s793
        // Predicated region
        $region101: #{tpu_custom_call.1} parent=71 // pred_check
          %p795 = pneg %p270
        $region102: #{tpu_custom_call.1} parent=71 // pred_check_branch
          %797 = sbr.rel (%p795) target = $region104
        $region103: #{tpu_custom_call.1} parent=71 // pred_region
          %799 = dma.done %s791, 2048
        $region104: #{tpu_custom_call.1} parent=71 // pred_fallthru
          _
        %s800 = sand.u32 %s46, 1
        %s801 = scalar_lea.sflag [#allocation17], %s800
        %s802 = sand.u32 %s285, 1
        %s803 = smul.addr %s802, 2
        %s804 = scalar_lea.vmem [#allocation18], %s803
        // Predicated region
        $region105: #{tpu_custom_call.1} parent=71 // pred_check
          %p805 = pneg %p298
        $region106: #{tpu_custom_call.1} parent=71 // pred_check_branch
          %807 = sbr.rel (%p805) target = $region108
        $region107: #{tpu_custom_call.1} parent=71 // pred_region
          %809 = dma.done %s801, 32
        $region108: #{tpu_custom_call.1} parent=71 // pred_fallthru
          _
        %s810 = sand.u32 %s46, 1
        %s811 = scalar_lea.sflag [#allocation20], %s810
        %s812 = sand.u32 %s313, 1
        %s813 = smul.addr %s812, 128
        %s814 = scalar_lea.vmem [#allocation19], %s813
        // Predicated region
        $region109: #{tpu_custom_call.1} parent=71 // pred_check
          %p815 = pneg %p326
        $region110: #{tpu_custom_call.1} parent=71 // pred_check_branch
          %817 = sbr.rel (%p815) target = $region112
        $region111: #{tpu_custom_call.1} parent=71 // pred_region
          %819 = dma.done %s811, 2048
        $region112: #{tpu_custom_call.1} parent=71 // pred_fallthru
          _
        %s820 = sand.u32 %s46, 1
        %s821 = scalar_lea.sflag [#allocation20], %s820
        %s822 = sand.u32 %s341, 1
        %s823 = scalar_lea.vmem [#allocation21], %s822
        // Predicated region
        $region113: #{tpu_custom_call.1} parent=71 // pred_check
          %p824 = pneg %p354
        $region114: #{tpu_custom_call.1} parent=71 // pred_check_branch
          %826 = sbr.rel (%p824) target = $region116
        $region115: #{tpu_custom_call.1} parent=71 // pred_region
          %828 = dma.done %s821, 16
        $region116: #{tpu_custom_call.1} parent=71 // pred_fallthru
          _
        %s829 = sand.u32 %s46, 1
        %s830 = scalar_lea.sflag [#allocation23], %s829
        %s831 = sand.u32 %s369, 1
        %s832 = scalar_lea.vmem [#allocation22], %s831
        // Predicated region
        $region117: #{tpu_custom_call.1} parent=71 // pred_check
          %p833 = pneg %p382
        $region118: #{tpu_custom_call.1} parent=71 // pred_check_branch
          %835 = sbr.rel (%p833) target = $region120
        $region119: #{tpu_custom_call.1} parent=71 // pred_region
          %837 = dma.done %s830, 16
        $region120: #{tpu_custom_call.1} parent=71 // pred_fallthru
          _
        %s838 = sand.u32 %s46, 1
        %s839 = scalar_lea.sflag [#allocation23], %s838
        %s840 = sand.u32 %s397, 1
        %s841 = scalar_lea.vmem [#allocation24], %s840
        // Predicated region
        $region121: #{tpu_custom_call.1} parent=71 // pred_check
          %p842 = pneg %p410
        $region122: #{tpu_custom_call.1} parent=71 // pred_check_branch
          %844 = sbr.rel (%p842) target = $region124
        $region123: #{tpu_custom_call.1} parent=71 // pred_region
          %846 = dma.done %s839, 16
        $region124: #{tpu_custom_call.1} parent=71 // pred_fallthru
          _
        %p847 = pneg %p74
        %p848 = pneg %p71
        %s849 = sand.u32 %s46, 1
        %s850 = scalar_lea.sflag [#allocation8], %s849
        %s851 = sand.u32 %s89, 1
        %s852 = smul.addr %s851, 192
        %s853 = scalar_lea.vmem [#allocation7], %s852
        %p854 = pneg %p102
        %p855 = pneg %p99
        %s856 = sand.u32 %s46, 1
        %s857 = scalar_lea.sflag [#allocation8], %s856
        %s858 = sand.u32 %s117, 1
        %s859 = smul.addr %s858, 3
        %s860 = scalar_lea.vmem [#allocation9], %s859
        %p861 = pneg %p130
        %p862 = pneg %p127
        %s863 = sand.u32 %s46, 1
        %s864 = scalar_lea.sflag [#allocation11], %s863
        %s865 = sand.u32 %s145, 1
        %s866 = smul.addr %s865, 64
        %s867 = scalar_lea.vmem [#allocation10], %s866
        %p868 = pneg %p158
        %p869 = pneg %p155
        %s870 = sand.u32 %s46, 1
        %s871 = scalar_lea.sflag [#allocation11], %s870
        %s872 = sand.u32 %s173, 1
        %s873 = scalar_lea.vmem [#allocation12], %s872
        %p874 = pneg %p186
        %p875 = pneg %p183
        %s876 = sand.u32 %s46, 1
        %s877 = scalar_lea.sflag [#allocation14], %s876
        %s878 = sand.u32 %s201, 1
        %s879 = scalar_lea.vmem [#allocation13], %s878
        %p880 = pneg %p214
        %p881 = pneg %p211
        %s882 = sand.u32 %s46, 1
        %s883 = scalar_lea.sflag [#allocation14], %s882
        %s884 = sand.u32 %s229, 1
        %s885 = scalar_lea.vmem [#allocation15], %s884
        %p886 = pneg %p242
        %p887 = pneg %p239
        %s888 = sand.u32 %s46, 1
        %s889 = scalar_lea.sflag [#allocation17], %s888
        %s890 = sand.u32 %s257, 1
        %s891 = smul.addr %s890, 128
        %s892 = scalar_lea.vmem [#allocation16], %s891
        %p893 = pneg %p270
        %p894 = pneg %p267
        %s895 = sand.u32 %s46, 1
        %s896 = scalar_lea.sflag [#allocation17], %s895
        %s897 = sand.u32 %s285, 1
        %s898 = smul.addr %s897, 2
        %s899 = scalar_lea.vmem [#allocation18], %s898
        %p900 = pneg %p298
        %p901 = pneg %p295
        %s902 = sand.u32 %s46, 1
        %s903 = scalar_lea.sflag [#allocation20], %s902
        %s904 = sand.u32 %s313, 1
        %s905 = smul.addr %s904, 128
        %s906 = scalar_lea.vmem [#allocation19], %s905
        %p907 = pneg %p326
        %p908 = pneg %p323
        %s909 = sand.u32 %s46, 1
        %s910 = scalar_lea.sflag [#allocation20], %s909
        %s911 = sand.u32 %s341, 1
        %s912 = scalar_lea.vmem [#allocation21], %s911
        %p913 = pneg %p354
        %p914 = pneg %p351
        %s915 = sand.u32 %s46, 1
        %s916 = scalar_lea.sflag [#allocation23], %s915
        %s917 = sand.u32 %s369, 1
        %s918 = scalar_lea.vmem [#allocation22], %s917
        %p919 = pneg %p382
        %p920 = pneg %p379
        %s921 = sand.u32 %s46, 1
        %s922 = scalar_lea.sflag [#allocation23], %s921
        %s923 = sand.u32 %s397, 1
        %s924 = scalar_lea.vmem [#allocation24], %s923
        %p925 = pneg %p410
        %p926 = pneg %p407
        %p927 = pneg %p436
        %p928 = pneg %p433
        %s929 = sand.u32 %s423, 1
        %s930 = scalar_lea.sflag [#allocation6], %s929
        %s931 = sand.u32 %s423, 1
        %s932 = smul.addr %s931, 4
        %s933 = scalar_lea.vmem [#allocation25], %s932
        %p935 = scmp.eq.s32.totalorder %s51, 0
        // Predicated region
        $region125: #{tpu_custom_call.1} parent=71 // pred_check
          %p936 = pneg %p935
        $region126: #{tpu_custom_call.1} parent=71 // pred_check_branch
          %938 = sbr.rel (%p936) target = $region128
        $region127: #{tpu_custom_call.1} parent=71 // pred_region
          %v939 = vld [vmem:[#allocation4] sm:$0xff]
          %v940 = vld [vmem:[#allocation4 + $0x8] sm:$0xff]
          %v941 = vld [vmem:[#allocation4 + $0x10] sm:$0xff]
          %v942 = vld [vmem:[#allocation4 + $0x18] sm:$0xff]
          %943 = vst [vmem:[#allocation2] sm:$0xff] %v939
          %944 = vst [vmem:[#allocation2 + $0x8] sm:$0xff] %v940
          %945 = vst [vmem:[#allocation2 + $0x10] sm:$0xff] %v941
          %946 = vst [vmem:[#allocation2 + $0x18] sm:$0xff] %v942
        $region128: #{tpu_custom_call.1} parent=71 // pred_fallthru
          _
        %v947 = vld [vmem:[#allocation2] sm:$0xff]
        %v948 = vld [vmem:[#allocation2 + $0x8] sm:$0xff]
        %v949 = vld [vmem:[#allocation2 + $0x10] sm:$0xff]
        %v950 = vld [vmem:[#allocation2 + $0x18] sm:$0xff]
        %v951 = vpack.c.bf16 %v948, %v947
        %v952 = vpack.c.bf16 %v950, %v949
        %v953 = vld [vmem:[%s737] sm:$0xff]
        %v954 = vld [vmem:[%s737 + $0x8] sm:$0xf]
        %v955 = vld [vmem:[%s737 + $0xc] sm:$0xff]
        %v956 = vld [vmem:[%s737 + $0x14] sm:$0xf]
        %v957 = vld [vmem:[%s737 + $0x18] sm:$0xff]
        %v958 = vld [vmem:[%s737 + $0x20] sm:$0xf]
        %v959 = vld [vmem:[%s737 + $0x24] sm:$0xff]
        %v960 = vld [vmem:[%s737 + $0x2c] sm:$0xf]
        %v961 = vld [vmem:[%s737 + $0x30] sm:$0xff]
        %v962 = vld [vmem:[%s737 + $0x38] sm:$0xf]
        %v963 = vld [vmem:[%s737 + $0x3c] sm:$0xff]
        %v964 = vld [vmem:[%s737 + $0x44] sm:$0xf]
        %v965 = vld [vmem:[%s737 + $0x48] sm:$0xff]
        %v966 = vld [vmem:[%s737 + $0x50] sm:$0xf]
        %v967 = vld [vmem:[%s737 + $0x54] sm:$0xff]
        %v968 = vld [vmem:[%s737 + $0x5c] sm:$0xf]
        %v969 = vld [vmem:[%s737 + $0x60] sm:$0xff]
        %v970 = vld [vmem:[%s737 + $0x68] sm:$0xf]
        %v971 = vld [vmem:[%s737 + $0x6c] sm:$0xff]
        %v972 = vld [vmem:[%s737 + $0x74] sm:$0xf]
        %v973 = vld [vmem:[%s737 + $0x78] sm:$0xff]
        %v974 = vld [vmem:[%s737 + $0x80] sm:$0xf]
        %v975 = vld [vmem:[%s737 + $0x84] sm:$0xff]
        %v976 = vld [vmem:[%s737 + $0x8c] sm:$0xf]
        %v977 = vld [vmem:[%s737 + $0x90] sm:$0xff]
        %v978 = vld [vmem:[%s737 + $0x98] sm:$0xf]
        %v979 = vld [vmem:[%s737 + $0x9c] sm:$0xff]
        %v980 = vld [vmem:[%s737 + $0xa4] sm:$0xf]
        %v981 = vld [vmem:[%s737 + $0xa8] sm:$0xff]
        %v982 = vld [vmem:[%s737 + $0xb0] sm:$0xf]
        %v983 = vld [vmem:[%s737 + $0xb4] sm:$0xff]
        %v984 = vld [vmem:[%s737 + $0xbc] sm:$0xf]
        %v985 = vld [vmem:[%s747] sm:$0x7]
        %v987 = vperm.slane %v985, 0
        %v988 = vperm.slane %v985, 1
        %v989 = vperm.slane %v985, 2
        %v1025 = vunpack.c.l.b16 %v953
        %v1026 = vunpack.c.h.b16 %v953
        %v1027 = vunpack.c.l.b16 %v954
        %v1028 = vunpack.c.l.b16 %v955
        %v1029 = vunpack.c.h.b16 %v955
        %v1030 = vunpack.c.l.b16 %v956
        %v1031 = vunpack.c.l.b16 %v957
        %v1032 = vunpack.c.h.b16 %v957
        %v1033 = vunpack.c.l.b16 %v958
        %v1034 = vunpack.c.l.b16 %v959
        %v1035 = vunpack.c.h.b16 %v959
        %v1036 = vunpack.c.l.b16 %v960
        %v1037 = vunpack.c.l.b16 %v961
        %v1038 = vunpack.c.h.b16 %v961
        %v1039 = vunpack.c.l.b16 %v962
        %v1040 = vunpack.c.l.b16 %v963
        %v1041 = vunpack.c.h.b16 %v963
        %v1042 = vunpack.c.l.b16 %v964
        %v1043 = vunpack.c.l.b16 %v965
        %v1044 = vunpack.c.h.b16 %v965
        %v1045 = vunpack.c.l.b16 %v966
        %v1046 = vunpack.c.l.b16 %v967
        %v1047 = vunpack.c.h.b16 %v967
        %v1048 = vunpack.c.l.b16 %v968
        %v1049 = vunpack.c.l.b16 %v969
        %v1050 = vunpack.c.h.b16 %v969
        %v1051 = vunpack.c.l.b16 %v970
        %v1052 = vunpack.c.l.b16 %v971
        %v1053 = vunpack.c.h.b16 %v971
        %v1054 = vunpack.c.l.b16 %v972
        %v1055 = vunpack.c.l.b16 %v973
        %v1056 = vunpack.c.h.b16 %v973
        %v1057 = vunpack.c.l.b16 %v974
        %v1058 = vunpack.c.l.b16 %v975
        %v1059 = vunpack.c.h.b16 %v975
        %v1060 = vunpack.c.l.b16 %v976
        %v1061 = vunpack.c.l.b16 %v977
        %v1062 = vunpack.c.h.b16 %v977
        %v1063 = vunpack.c.l.b16 %v978
        %v1064 = vunpack.c.l.b16 %v979
        %v1065 = vunpack.c.h.b16 %v979
        %v1066 = vunpack.c.l.b16 %v980
        %v1067 = vunpack.c.l.b16 %v981
        %v1068 = vunpack.c.h.b16 %v981
        %v1069 = vunpack.c.l.b16 %v982
        %v1070 = vunpack.c.l.b16 %v983
        %v1071 = vunpack.c.h.b16 %v983
        %v1072 = vunpack.c.l.b16 %v984
        %v1073 = vpack.c.b16 %v1028, %v1025
        %v1074 = vpack.c.b16 %v1029, %v1026
        %v1075 = vpack.c.b16 %v1030, %v1027
        %v1076 = vpack.c.b16 %v1034, %v1031
        %v1077 = vpack.c.b16 %v1035, %v1032
        %v1078 = vpack.c.b16 %v1036, %v1033
        %v1079 = vpack.c.b16 %v1040, %v1037
        %v1080 = vpack.c.b16 %v1041, %v1038
        %v1081 = vpack.c.b16 %v1042, %v1039
        %v1082 = vpack.c.b16 %v1046, %v1043
        %v1083 = vpack.c.b16 %v1047, %v1044
        %v1084 = vpack.c.b16 %v1048, %v1045
        %v1085 = vpack.c.b16 %v1052, %v1049
        %v1086 = vpack.c.b16 %v1053, %v1050
        %v1087 = vpack.c.b16 %v1054, %v1051
        %v1088 = vpack.c.b16 %v1058, %v1055
        %v1089 = vpack.c.b16 %v1059, %v1056
        %v1090 = vpack.c.b16 %v1060, %v1057
        %v1091 = vpack.c.b16 %v1064, %v1061
        %v1092 = vpack.c.b16 %v1065, %v1062
        %v1093 = vpack.c.b16 %v1066, %v1063
        %v1094 = vpack.c.b16 %v1070, %v1067
        %v1095 = vpack.c.b16 %v1071, %v1068
        %v1096 = vpack.c.b16 %v1072, %v1069
        %1121 = vmatpush.bf16.msra.mxu0 %v1094
        %1122 = vmatpush.bf16.msra.mxu0 %v1091
        %1123 = vmatpush.bf16.msra.mxu0 %v1088
        %1124 = vmatpush.bf16.msra.mxu0 %v1085
        %1125 = vmatpush.bf16.msra.mxu0 %v1082
        %1126 = vmatpush.bf16.msra.mxu0 %v1079
        %1127 = vmatpush.bf16.msra.mxu0 %v1076
        %1128 = vmatpush.bf16.msra.mxu0 %v1073
        %1129 = vmatmul.bf16.gmra.mxu0 %v951
        %v1130 = vpop.f32.mrf.mxu0
        %v1131 = vadd.f32 %v987, %v1130
        %v1132 = vpop.f32.mrf.mxu0
        %v1133 = vadd.f32 %v987, %v1132
        %1134 = vmatmul.bf16.gmra.mxu0 %v952
        %v1135 = vpop.f32.mrf.mxu0
        %v1136 = vadd.f32 %v987, %v1135
        %v1137 = vpop.f32.mrf.mxu0
        %v1138 = vadd.f32 %v987, %v1137
        %1139 = vdwg.mxu0
        %1140 = vmatpush.bf16.msra.mxu0 %v1095
        %1141 = vmatpush.bf16.msra.mxu0 %v1092
        %1142 = vmatpush.bf16.msra.mxu0 %v1089
        %1143 = vmatpush.bf16.msra.mxu0 %v1086
        %1144 = vmatpush.bf16.msra.mxu0 %v1083
        %1145 = vmatpush.bf16.msra.mxu0 %v1080
        %1146 = vmatpush.bf16.msra.mxu0 %v1077
        %1147 = vmatpush.bf16.msra.mxu0 %v1074
        %1148 = vmatmul.bf16.gmra.mxu0 %v951
        %v1149 = vpop.f32.mrf.mxu0
        %v1150 = vadd.f32 %v988, %v1149
        %v1151 = vpop.f32.mrf.mxu0
        %v1152 = vadd.f32 %v988, %v1151
        %1153 = vmatmul.bf16.gmra.mxu0 %v952
        %v1154 = vpop.f32.mrf.mxu0
        %v1155 = vadd.f32 %v988, %v1154
        %v1156 = vpop.f32.mrf.mxu0
        %v1157 = vadd.f32 %v988, %v1156
        %1158 = vdwg.mxu0
        %1159 = vmatpush.bf16.msra.mxu0 %v1096
        %1160 = vmatpush.bf16.msra.mxu0 %v1093
        %1161 = vmatpush.bf16.msra.mxu0 %v1090
        %1162 = vmatpush.bf16.msra.mxu0 %v1087
        %1163 = vmatpush.bf16.msra.mxu0 %v1084
        %1164 = vmatpush.bf16.msra.mxu0 %v1081
        %1165 = vmatpush.bf16.msra.mxu0 %v1078
        %1166 = vmatpush.bf16.msra.mxu0 %v1075
        %1167 = vmatmul.bf16.gmra.mxu0 %v951
        %v1168 = vpop.f32.mrf.mxu0
        %v1169 = vadd.f32 %v989, %v1168
        %v1170 = vpop.f32.mrf.mxu0
        %v1171 = vadd.f32 %v989, %v1170
        %1172 = vmatmul.bf16.gmra.mxu0 %v952
        %v1173 = vpop.f32.mrf.mxu0
        %v1174 = vadd.f32 %v989, %v1173
        %v1175 = vpop.f32.mrf.mxu0
        %v1176 = vadd.f32 %v989, %v1175
        %1177 = vdwg.mxu0
        %v1178 = vpack.c.bf16 %v1131, %v1131
        %v1179 = vpack.c.bf16 %v1133, %v1133
        %v1180 = vpack.c.bf16 %v1136, %v1136
        %v1181 = vpack.c.bf16 %v1138, %v1138
        %v1182 = vpack.c.bf16 %v1150, %v1150
        %v1183 = vpack.c.bf16 %v1152, %v1152
        %v1184 = vpack.c.bf16 %v1155, %v1155
        %v1185 = vpack.c.bf16 %v1157, %v1157
        %v1186 = vpack.c.bf16 %v1169, %v1169
        %v1187 = vpack.c.bf16 %v1171, %v1171
        %v1188 = vpack.c.bf16 %v1174, %v1174
        %v1189 = vpack.c.bf16 %v1176, %v1176
        %v1192 = vunpack.c.l.b16 %v1178
        %v1193 = vunpack.c.l.b16 %v1179
        %v1194 = vpack.c.b16 %v1193, %v1192
        %v1197 = vunpack.c.l.b16 %v1182
        %v1198 = vunpack.c.l.b16 %v1183
        %v1199 = vpack.c.b16 %v1198, %v1197
        %vm1200 = vcmask 130048
        %v1202 = vsel %vm1200, %v1194, 0
        %v1205 = vsel %vm1200, %v1199, 0
        %1207 = vmatpush.bf16.xpose.msra.mxu0 0
        %1208 = vmatpush.bf16.xpose.msra.mxu0 0
        %1209 = vmatpush.bf16.xpose.msra.mxu0 0
        %1210 = vmatpush.bf16.xpose.msra.mxu0 0
        %1211 = vmatpush.bf16.xpose.msra.mxu0 0
        %1212 = vmatpush.bf16.xpose.msra.mxu0 0
        %1213 = vmatpush.bf16.xpose.msra.mxu0 0
        %1214 = vmatpush.bf16.xpose.msra.mxu0 %v1205
        %1215 = vmatmul.bf16.gmra.mxu0 %v1202
        %v1216 = vpop.f32.mrf.mxu0
        %v1217 = vadd.f32 0.0, %v1216
        %v1218 = vpop.f32.mrf.mxu0
        %v1219 = vadd.f32 0.0, %v1218
        %1220 = vdwg.mxu0
        %v1223 = vunpack.c.l.b16 %v1180
        %v1224 = vunpack.c.l.b16 %v1181
        %v1225 = vpack.c.b16 %v1224, %v1223
        %v1228 = vunpack.c.l.b16 %v1184
        %v1229 = vunpack.c.l.b16 %v1185
        %v1230 = vpack.c.b16 %v1229, %v1228
        %v1232 = vsel %vm1200, %v1225, 0
        %v1235 = vsel %vm1200, %v1230, 0
        %1237 = vmatpush.bf16.xpose.msra.mxu0 0
        %1238 = vmatpush.bf16.xpose.msra.mxu0 0
        %1239 = vmatpush.bf16.xpose.msra.mxu0 0
        %1240 = vmatpush.bf16.xpose.msra.mxu0 0
        %1241 = vmatpush.bf16.xpose.msra.mxu0 0
        %1242 = vmatpush.bf16.xpose.msra.mxu0 0
        %1243 = vmatpush.bf16.xpose.msra.mxu0 0
        %1244 = vmatpush.bf16.xpose.msra.mxu0 %v1235
        %1245 = vmatmul.bf16.gmra.mxu0 %v1232
        %v1246 = vpop.f32.mrf.mxu0
        %v1247 = vadd.f32 0.0, %v1246
        %v1248 = vpop.f32.mrf.mxu0
        %v1249 = vadd.f32 0.0, %v1248
        %1250 = vdwg.mxu0
        %v1251 = vsel %vm1200, %v1217, -inf
        %1252 = vmax.xlane.f32.xlu0 %v1251
        %v1253 = vpop.xlane.xlu0 %1252
        %v1254 = vsel %vm1200, %v1219, -inf
        %1255 = vmax.xlane.f32.xlu0 %v1254
        %v1256 = vpop.xlane.xlu0 %1255
        %v1257 = vsel %vm1200, %v1247, -inf
        %1258 = vmax.xlane.f32.xlu0 %v1257
        %v1259 = vpop.xlane.xlu0 %1258
        %v1260 = vsel %vm1200, %v1249, -inf
        %1261 = vmax.xlane.f32.xlu0 %v1260
        %v1262 = vpop.xlane.xlu0 %1261
        %v1263 = vsub.f32 %v1217, %v1253
        %v1264 = vsub.f32 %v1219, %v1256
        %v1265 = vsub.f32 %v1247, %v1259
        %v1266 = vsub.f32 %v1249, %v1262
        %v1267 = vmul.f32 %v1263, 1.442695
        %v1268 = vpow.pop %v1267
        %v1269 = vmul.f32 %v1264, 1.442695
        %v1270 = vpow.pop %v1269
        %v1271 = vmul.f32 %v1265, 1.442695
        %v1272 = vpow.pop %v1271
        %v1273 = vmul.f32 %v1266, 1.442695
        %v1274 = vpow.pop %v1273
        %v1275 = vsel %vm1200, %v1268, 0.0
        %1276 = vadd.xlane.f32.xlu0 %v1275
        %v1277 = vpop.xlane.xlu0 %1276
        %v1278 = vsel %vm1200, %v1270, 0.0
        %1279 = vadd.xlane.f32.xlu0 %v1278
        %v1280 = vpop.xlane.xlu0 %1279
        %v1281 = vsel %vm1200, %v1272, 0.0
        %1282 = vadd.xlane.f32.xlu0 %v1281
        %v1283 = vpop.xlane.xlu0 %1282
        %v1284 = vsel %vm1200, %v1274, 0.0
        %1285 = vadd.xlane.f32.xlu0 %v1284
        %v1286 = vpop.xlane.xlu0 %1285
        %v1287 = vrcp.pop %v1277
        %v1288 = vmul.f32 %v1277, %v1287
        %v1289 = vsub.f32 1.0, %v1288
        %v1290 = vmul.f32 %v1287, %v1289
        %v1291 = vadd.f32 %v1287, %v1290
        %vm1292 = vweird.f32 %v1277
        %vm1293 = vweird.f32 %v1287
        %vm1294 = vmor %vm1292, %vm1293
        %v1295 = vsel %vm1294, %v1287, %v1291
        %v1296 = vand.u32 2147483647, %v1277
        %vm1297 = vcmp.eq.f32.partialorder %v1296, 8.507059e+37
        %v1298 = vand.u32 %v1277, 2147483648
        %v1299 = vor.u32 1.1754944e-38, %v1298
        %v1300 = vsel %vm1297, %v1299, %v1295
        %v1301 = vmul.f32 1.0, %v1300
        %v1302 = vrcp.pop %v1280
        %v1303 = vmul.f32 %v1280, %v1302
        %v1304 = vsub.f32 1.0, %v1303
        %v1305 = vmul.f32 %v1302, %v1304
        %v1306 = vadd.f32 %v1302, %v1305
        %vm1307 = vweird.f32 %v1280
        %vm1308 = vweird.f32 %v1302
        %vm1309 = vmor %vm1307, %vm1308
        %v1310 = vsel %vm1309, %v1302, %v1306
        %v1311 = vand.u32 2147483647, %v1280
        %vm1312 = vcmp.eq.f32.partialorder %v1311, 8.507059e+37
        %v1313 = vand.u32 %v1280, 2147483648
        %v1314 = vor.u32 1.1754944e-38, %v1313
        %v1315 = vsel %vm1312, %v1314, %v1310
        %v1316 = vmul.f32 1.0, %v1315
        %v1317 = vrcp.pop %v1283
        %v1318 = vmul.f32 %v1283, %v1317
        %v1319 = vsub.f32 1.0, %v1318
        %v1320 = vmul.f32 %v1317, %v1319
        %v1321 = vadd.f32 %v1317, %v1320
        %vm1322 = vweird.f32 %v1283
        %vm1323 = vweird.f32 %v1317
        %vm1324 = vmor %vm1322, %vm1323
        %v1325 = vsel %vm1324, %v1317, %v1321
        %v1326 = vand.u32 2147483647, %v1283
        %vm1327 = vcmp.eq.f32.partialorder %v1326, 8.507059e+37
        %v1328 = vand.u32 %v1283, 2147483648
        %v1329 = vor.u32 1.1754944e-38, %v1328
        %v1330 = vsel %vm1327, %v1329, %v1325
        %v1331 = vmul.f32 1.0, %v1330
        %v1332 = vrcp.pop %v1286
        %v1333 = vmul.f32 %v1286, %v1332
        %v1334 = vsub.f32 1.0, %v1333
        %v1335 = vmul.f32 %v1332, %v1334
        %v1336 = vadd.f32 %v1332, %v1335
        %vm1337 = vweird.f32 %v1286
        %vm1338 = vweird.f32 %v1332
        %vm1339 = vmor %vm1337, %vm1338
        %v1340 = vsel %vm1339, %v1332, %v1336
        %v1341 = vand.u32 2147483647, %v1286
        %vm1342 = vcmp.eq.f32.partialorder %v1341, 8.507059e+37
        %v1343 = vand.u32 %v1286, 2147483648
        %v1344 = vor.u32 1.1754944e-38, %v1343
        %v1345 = vsel %vm1342, %v1344, %v1340
        %v1346 = vmul.f32 1.0, %v1345
        %v1347 = vmul.f32 %v1268, %v1301
        %v1348 = vmul.f32 %v1270, %v1316
        %v1349 = vmul.f32 %v1272, %v1331
        %v1350 = vmul.f32 %v1274, %v1346
        %v1351 = vpack.c.bf16 %v1347, %v1347
        %v1352 = vpack.c.bf16 %v1348, %v1348
        %v1353 = vpack.c.bf16 %v1349, %v1349
        %v1354 = vpack.c.bf16 %v1350, %v1350
        %v1357 = vunpack.c.l.b16 %v1351
        %v1358 = vunpack.c.l.b16 %v1352
        %v1359 = vpack.c.b16 %v1358, %v1357
        %v1362 = vunpack.c.l.b16 %v1186
        %v1363 = vunpack.c.l.b16 %v1187
        %v1364 = vpack.c.b16 %v1363, %v1362
        %v1367 = vsel %vm1200, %v1359, 0
        %1369 = vmatpush.bf16.msra.mxu0 0
        %1370 = vmatpush.bf16.msra.mxu0 0
        %1371 = vmatpush.bf16.msra.mxu0 0
        %1372 = vmatpush.bf16.msra.mxu0 0
        %1373 = vmatpush.bf16.msra.mxu0 0
        %1374 = vmatpush.bf16.msra.mxu0 0
        %1375 = vmatpush.bf16.msra.mxu0 0
        %1376 = vmatpush.bf16.msra.mxu0 %v1364
        %1377 = vmatmul.bf16.gmra.mxu0 %v1367
        %v1378 = vpop.f32.mrf.mxu0
        %v1379 = vadd.f32 0.0, %v1378
        %v1380 = vpop.f32.mrf.mxu0
        %v1381 = vadd.f32 0.0, %v1380
        %1382 = vdwg.mxu0
        %v1385 = vunpack.c.l.b16 %v1353
        %v1386 = vunpack.c.l.b16 %v1354
        %v1387 = vpack.c.b16 %v1386, %v1385
        %v1390 = vunpack.c.l.b16 %v1188
        %v1391 = vunpack.c.l.b16 %v1189
        %v1392 = vpack.c.b16 %v1391, %v1390
        %v1395 = vsel %vm1200, %v1387, 0
        %1397 = vmatpush.bf16.msra.mxu0 0
        %1398 = vmatpush.bf16.msra.mxu0 0
        %1399 = vmatpush.bf16.msra.mxu0 0
        %1400 = vmatpush.bf16.msra.mxu0 0
        %1401 = vmatpush.bf16.msra.mxu0 0
        %1402 = vmatpush.bf16.msra.mxu0 0
        %1403 = vmatpush.bf16.msra.mxu0 0
        %1404 = vmatpush.bf16.msra.mxu0 %v1392
        %1405 = vmatmul.bf16.gmra.mxu0 %v1395
        %v1406 = vpop.f32.mrf.mxu0
        %v1407 = vadd.f32 0.0, %v1406
        %v1408 = vpop.f32.mrf.mxu0
        %v1409 = vadd.f32 0.0, %v1408
        %1410 = vdwg.mxu0
        %1411 = vst.msk [vmem:[#allocation3] sm:$0xff] %vm1200, %v1379
        %1412 = vst.msk [vmem:[#allocation3 + $0x8] sm:$0xff] %vm1200, %v1381
        %1413 = vst.msk [vmem:[#allocation3 + $0x10] sm:$0xff] %vm1200, %v1407
        %1414 = vst.msk [vmem:[#allocation3 + $0x18] sm:$0xff] %vm1200, %v1409
        %1415 = vrot.lane.b32.xlu0 %v1194, 112
        %v1416 = vpop.permute.xlu0 %1415
        %1417 = vrot.lane.b32.xlu0 %v1199, 112
        %v1418 = vpop.permute.xlu0 %1417
        %v1420 = vsel %vm1200, %v1416, 0
        %v1423 = vsel %vm1200, %v1418, 0
        %1425 = vmatpush.bf16.xpose.msra.mxu0 0
        %1426 = vmatpush.bf16.xpose.msra.mxu0 0
        %1427 = vmatpush.bf16.xpose.msra.mxu0 0
        %1428 = vmatpush.bf16.xpose.msra.mxu0 0
        %1429 = vmatpush.bf16.xpose.msra.mxu0 0
        %1430 = vmatpush.bf16.xpose.msra.mxu0 0
        %1431 = vmatpush.bf16.xpose.msra.mxu0 0
        %1432 = vmatpush.bf16.xpose.msra.mxu0 %v1423
        %1433 = vmatmul.bf16.gmra.mxu0 %v1420
        %v1434 = vpop.f32.mrf.mxu0
        %v1435 = vadd.f32 0.0, %v1434
        %v1436 = vpop.f32.mrf.mxu0
        %v1437 = vadd.f32 0.0, %v1436
        %1438 = vdwg.mxu0
        %1439 = vrot.lane.b32.xlu0 %v1225, 112
        %v1440 = vpop.permute.xlu0 %1439
        %1441 = vrot.lane.b32.xlu0 %v1230, 112
        %v1442 = vpop.permute.xlu0 %1441
        %v1444 = vsel %vm1200, %v1440, 0
        %v1447 = vsel %vm1200, %v1442, 0
        %1449 = vmatpush.bf16.xpose.msra.mxu0 0
        %1450 = vmatpush.bf16.xpose.msra.mxu0 0
        %1451 = vmatpush.bf16.xpose.msra.mxu0 0
        %1452 = vmatpush.bf16.xpose.msra.mxu0 0
        %1453 = vmatpush.bf16.xpose.msra.mxu0 0
        %1454 = vmatpush.bf16.xpose.msra.mxu0 0
        %1455 = vmatpush.bf16.xpose.msra.mxu0 0
        %1456 = vmatpush.bf16.xpose.msra.mxu0 %v1447
        %1457 = vmatmul.bf16.gmra.mxu0 %v1444
        %v1458 = vpop.f32.mrf.mxu0
        %v1459 = vadd.f32 0.0, %v1458
        %v1460 = vpop.f32.mrf.mxu0
        %v1461 = vadd.f32 0.0, %v1460
        %1462 = vdwg.mxu0
        %v1463 = vsel %vm1200, %v1435, -inf
        %1464 = vmax.xlane.f32.xlu0 %v1463
        %v1465 = vpop.xlane.xlu0 %1464
        %v1466 = vsel %vm1200, %v1437, -inf
        %1467 = vmax.xlane.f32.xlu0 %v1466
        %v1468 = vpop.xlane.xlu0 %1467
        %v1469 = vsel %vm1200, %v1459, -inf
        %1470 = vmax.xlane.f32.xlu0 %v1469
        %v1471 = vpop.xlane.xlu0 %1470
        %v1472 = vsel %vm1200, %v1461, -inf
        %1473 = vmax.xlane.f32.xlu0 %v1472
        %v1474 = vpop.xlane.xlu0 %1473
        %v1475 = vsub.f32 %v1435, %v1465
        %v1476 = vsub.f32 %v1437, %v1468
        %v1477 = vsub.f32 %v1459, %v1471
        %v1478 = vsub.f32 %v1461, %v1474
        %v1479 = vmul.f32 %v1475, 1.442695
        %v1480 = vpow.pop %v1479
        %v1481 = vmul.f32 %v1476, 1.442695
        %v1482 = vpow.pop %v1481
        %v1483 = vmul.f32 %v1477, 1.442695
        %v1484 = vpow.pop %v1483
        %v1485 = vmul.f32 %v1478, 1.442695
        %v1486 = vpow.pop %v1485
        %v1487 = vsel %vm1200, %v1480, 0.0
        %1488 = vadd.xlane.f32.xlu0 %v1487
        %v1489 = vpop.xlane.xlu0 %1488
        %v1490 = vsel %vm1200, %v1482, 0.0
        %1491 = vadd.xlane.f32.xlu0 %v1490
        %v1492 = vpop.xlane.xlu0 %1491
        %v1493 = vsel %vm1200, %v1484, 0.0
        %1494 = vadd.xlane.f32.xlu0 %v1493
        %v1495 = vpop.xlane.xlu0 %1494
        %v1496 = vsel %vm1200, %v1486, 0.0
        %1497 = vadd.xlane.f32.xlu0 %v1496
        %v1498 = vpop.xlane.xlu0 %1497
        %v1499 = vrcp.pop %v1489
        %v1500 = vmul.f32 %v1489, %v1499
        %v1501 = vsub.f32 1.0, %v1500
        %v1502 = vmul.f32 %v1499, %v1501
        %v1503 = vadd.f32 %v1499, %v1502
        %vm1504 = vweird.f32 %v1489
        %vm1505 = vweird.f32 %v1499
        %vm1506 = vmor %vm1504, %vm1505
        %v1507 = vsel %vm1506, %v1499, %v1503
        %v1508 = vand.u32 2147483647, %v1489
        %vm1509 = vcmp.eq.f32.partialorder %v1508, 8.507059e+37
        %v1510 = vand.u32 %v1489, 2147483648
        %v1511 = vor.u32 1.1754944e-38, %v1510
        %v1512 = vsel %vm1509, %v1511, %v1507
        %v1513 = vmul.f32 1.0, %v1512
        %v1514 = vrcp.pop %v1492
        %v1515 = vmul.f32 %v1492, %v1514
        %v1516 = vsub.f32 1.0, %v1515
        %v1517 = vmul.f32 %v1514, %v1516
        %v1518 = vadd.f32 %v1514, %v1517
        %vm1519 = vweird.f32 %v1492
        %vm1520 = vweird.f32 %v1514
        %vm1521 = vmor %vm1519, %vm1520
        %v1522 = vsel %vm1521, %v1514, %v1518
        %v1523 = vand.u32 2147483647, %v1492
        %vm1524 = vcmp.eq.f32.partialorder %v1523, 8.507059e+37
        %v1525 = vand.u32 %v1492, 2147483648
        %v1526 = vor.u32 1.1754944e-38, %v1525
        %v1527 = vsel %vm1524, %v1526, %v1522
        %v1528 = vmul.f32 1.0, %v1527
        %v1529 = vrcp.pop %v1495
        %v1530 = vmul.f32 %v1495, %v1529
        %v1531 = vsub.f32 1.0, %v1530
        %v1532 = vmul.f32 %v1529, %v1531
        %v1533 = vadd.f32 %v1529, %v1532
        %vm1534 = vweird.f32 %v1495
        %vm1535 = vweird.f32 %v1529
        %vm1536 = vmor %vm1534, %vm1535
        %v1537 = vsel %vm1536, %v1529, %v1533
        %v1538 = vand.u32 2147483647, %v1495
        %vm1539 = vcmp.eq.f32.partialorder %v1538, 8.507059e+37
        %v1540 = vand.u32 %v1495, 2147483648
        %v1541 = vor.u32 1.1754944e-38, %v1540
        %v1542 = vsel %vm1539, %v1541, %v1537
        %v1543 = vmul.f32 1.0, %v1542
        %v1544 = vrcp.pop %v1498
        %v1545 = vmul.f32 %v1498, %v1544
        %v1546 = vsub.f32 1.0, %v1545
        %v1547 = vmul.f32 %v1544, %v1546
        %v1548 = vadd.f32 %v1544, %v1547
        %vm1549 = vweird.f32 %v1498
        %vm1550 = vweird.f32 %v1544
        %vm1551 = vmor %vm1549, %vm1550
        %v1552 = vsel %vm1551, %v1544, %v1548
        %v1553 = vand.u32 2147483647, %v1498
        %vm1554 = vcmp.eq.f32.partialorder %v1553, 8.507059e+37
        %v1555 = vand.u32 %v1498, 2147483648
        %v1556 = vor.u32 1.1754944e-38, %v1555
        %v1557 = vsel %vm1554, %v1556, %v1552
        %v1558 = vmul.f32 1.0, %v1557
        %v1559 = vmul.f32 %v1480, %v1513
        %v1560 = vmul.f32 %v1482, %v1528
        %v1561 = vmul.f32 %v1484, %v1543
        %v1562 = vmul.f32 %v1486, %v1558
        %v1563 = vpack.c.bf16 %v1559, %v1559
        %v1564 = vpack.c.bf16 %v1560, %v1560
        %v1565 = vpack.c.bf16 %v1561, %v1561
        %v1566 = vpack.c.bf16 %v1562, %v1562
        %v1569 = vunpack.c.l.b16 %v1563
        %v1570 = vunpack.c.l.b16 %v1564
        %v1571 = vpack.c.b16 %v1570, %v1569
        %1572 = vrot.lane.b32.xlu0 %v1364, 112
        %v1573 = vpop.permute.xlu0 %1572
        %v1576 = vsel %vm1200, %v1571, 0
        %1578 = vmatpush.bf16.msra.mxu0 0
        %1579 = vmatpush.bf16.msra.mxu0 0
        %1580 = vmatpush.bf16.msra.mxu0 0
        %1581 = vmatpush.bf16.msra.mxu0 0
        %1582 = vmatpush.bf16.msra.mxu0 0
        %1583 = vmatpush.bf16.msra.mxu0 0
        %1584 = vmatpush.bf16.msra.mxu0 0
        %1585 = vmatpush.bf16.msra.mxu0 %v1573
        %1586 = vmatmul.bf16.gmra.mxu0 %v1576
        %v1587 = vpop.f32.mrf.mxu0
        %v1588 = vadd.f32 0.0, %v1587
        %v1589 = vpop.f32.mrf.mxu0
        %v1590 = vadd.f32 0.0, %v1589
        %1591 = vdwg.mxu0
        %v1594 = vunpack.c.l.b16 %v1565
        %v1595 = vunpack.c.l.b16 %v1566
        %v1596 = vpack.c.b16 %v1595, %v1594
        %1597 = vrot.lane.b32.xlu0 %v1392, 112
        %v1598 = vpop.permute.xlu0 %1597
        %v1601 = vsel %vm1200, %v1596, 0
        %1603 = vmatpush.bf16.msra.mxu0 0
        %1604 = vmatpush.bf16.msra.mxu0 0
        %1605 = vmatpush.bf16.msra.mxu0 0
        %1606 = vmatpush.bf16.msra.mxu0 0
        %1607 = vmatpush.bf16.msra.mxu0 0
        %1608 = vmatpush.bf16.msra.mxu0 0
        %1609 = vmatpush.bf16.msra.mxu0 0
        %1610 = vmatpush.bf16.msra.mxu0 %v1598
        %1611 = vmatmul.bf16.gmra.mxu0 %v1601
        %v1612 = vpop.f32.mrf.mxu0
        %v1613 = vadd.f32 0.0, %v1612
        %v1614 = vpop.f32.mrf.mxu0
        %v1615 = vadd.f32 0.0, %v1614
        %1616 = vdwg.mxu0
        %1621 = vrot.lane.b32.xlu0 %v1588, 16
        %v1622 = vpop.permute.xlu0 %1621
        %1623 = vrot.lane.b32.xlu0 %v1590, 16
        %v1624 = vpop.permute.xlu0 %1623
        %1625 = vrot.lane.b32.xlu0 %v1613, 16
        %v1626 = vpop.permute.xlu0 %1625
        %1627 = vrot.lane.b32.xlu0 %v1615, 16
        %v1628 = vpop.permute.xlu0 %1627
        %vm1633 = vcmask 261248
        %1634 = vst.msk [vmem:[#allocation3] sm:$0xff] %vm1633, %v1622
        %1635 = vst.msk [vmem:[#allocation3 + $0x8] sm:$0xff] %vm1633, %v1624
        %1636 = vst.msk [vmem:[#allocation3 + $0x10] sm:$0xff] %vm1633, %v1626
        %1637 = vst.msk [vmem:[#allocation3 + $0x18] sm:$0xff] %vm1633, %v1628
        %1638 = vrot.lane.b32.xlu0 %v1194, 96
        %v1639 = vpop.permute.xlu0 %1638
        %1640 = vrot.lane.b32.xlu0 %v1199, 96
        %v1641 = vpop.permute.xlu0 %1640
        %v1643 = vsel %vm1200, %v1639, 0
        %v1646 = vsel %vm1200, %v1641, 0
        %1648 = vmatpush.bf16.xpose.msra.mxu0 0
        %1649 = vmatpush.bf16.xpose.msra.mxu0 0
        %1650 = vmatpush.bf16.xpose.msra.mxu0 0
        %1651 = vmatpush.bf16.xpose.msra.mxu0 0
        %1652 = vmatpush.bf16.xpose.msra.mxu0 0
        %1653 = vmatpush.bf16.xpose.msra.mxu0 0
        %1654 = vmatpush.bf16.xpose.msra.mxu0 0
        %1655 = vmatpush.bf16.xpose.msra.mxu0 %v1646
        %1656 = vmatmul.bf16.gmra.mxu0 %v1643
        %v1657 = vpop.f32.mrf.mxu0
        %v1658 = vadd.f32 0.0, %v1657
        %v1659 = vpop.f32.mrf.mxu0
        %v1660 = vadd.f32 0.0, %v1659
        %1661 = vdwg.mxu0
        %1662 = vrot.lane.b32.xlu0 %v1225, 96
        %v1663 = vpop.permute.xlu0 %1662
        %1664 = vrot.lane.b32.xlu0 %v1230, 96
        %v1665 = vpop.permute.xlu0 %1664
        %v1667 = vsel %vm1200, %v1663, 0
        %v1670 = vsel %vm1200, %v1665, 0
        %1672 = vmatpush.bf16.xpose.msra.mxu0 0
        %1673 = vmatpush.bf16.xpose.msra.mxu0 0
        %1674 = vmatpush.bf16.xpose.msra.mxu0 0
        %1675 = vmatpush.bf16.xpose.msra.mxu0 0
        %1676 = vmatpush.bf16.xpose.msra.mxu0 0
        %1677 = vmatpush.bf16.xpose.msra.mxu0 0
        %1678 = vmatpush.bf16.xpose.msra.mxu0 0
        %1679 = vmatpush.bf16.xpose.msra.mxu0 %v1670
        %1680 = vmatmul.bf16.gmra.mxu0 %v1667
        %v1681 = vpop.f32.mrf.mxu0
        %v1682 = vadd.f32 0.0, %v1681
        %v1683 = vpop.f32.mrf.mxu0
        %v1684 = vadd.f32 0.0, %v1683
        %1685 = vdwg.mxu0
        %v1686 = vsel %vm1200, %v1658, -inf
        %1687 = vmax.xlane.f32.xlu0 %v1686
        %v1688 = vpop.xlane.xlu0 %1687
        %v1689 = vsel %vm1200, %v1660, -inf
        %1690 = vmax.xlane.f32.xlu0 %v1689
        %v1691 = vpop.xlane.xlu0 %1690
        %v1692 = vsel %vm1200, %v1682, -inf
        %1693 = vmax.xlane.f32.xlu0 %v1692
        %v1694 = vpop.xlane.xlu0 %1693
        %v1695 = vsel %vm1200, %v1684, -inf
        %1696 = vmax.xlane.f32.xlu0 %v1695
        %v1697 = vpop.xlane.xlu0 %1696
        %v1698 = vsub.f32 %v1658, %v1688
        %v1699 = vsub.f32 %v1660, %v1691
        %v1700 = vsub.f32 %v1682, %v1694
        %v1701 = vsub.f32 %v1684, %v1697
        %v1702 = vmul.f32 %v1698, 1.442695
        %v1703 = vpow.pop %v1702
        %v1704 = vmul.f32 %v1699, 1.442695
        %v1705 = vpow.pop %v1704
        %v1706 = vmul.f32 %v1700, 1.442695
        %v1707 = vpow.pop %v1706
        %v1708 = vmul.f32 %v1701, 1.442695
        %v1709 = vpow.pop %v1708
        %v1710 = vsel %vm1200, %v1703, 0.0
        %1711 = vadd.xlane.f32.xlu0 %v1710
        %v1712 = vpop.xlane.xlu0 %1711
        %v1713 = vsel %vm1200, %v1705, 0.0
        %1714 = vadd.xlane.f32.xlu0 %v1713
        %v1715 = vpop.xlane.xlu0 %1714
        %v1716 = vsel %vm1200, %v1707, 0.0
        %1717 = vadd.xlane.f32.xlu0 %v1716
        %v1718 = vpop.xlane.xlu0 %1717
        %v1719 = vsel %vm1200, %v1709, 0.0
        %1720 = vadd.xlane.f32.xlu0 %v1719
        %v1721 = vpop.xlane.xlu0 %1720
        %v1722 = vrcp.pop %v1712
        %v1723 = vmul.f32 %v1712, %v1722
        %v1724 = vsub.f32 1.0, %v1723
        %v1725 = vmul.f32 %v1722, %v1724
        %v1726 = vadd.f32 %v1722, %v1725
        %vm1727 = vweird.f32 %v1712
        %vm1728 = vweird.f32 %v1722
        %vm1729 = vmor %vm1727, %vm1728
        %v1730 = vsel %vm1729, %v1722, %v1726
        %v1731 = vand.u32 2147483647, %v1712
        %vm1732 = vcmp.eq.f32.partialorder %v1731, 8.507059e+37
        %v1733 = vand.u32 %v1712, 2147483648
        %v1734 = vor.u32 1.1754944e-38, %v1733
        %v1735 = vsel %vm1732, %v1734, %v1730
        %v1736 = vmul.f32 1.0, %v1735
        %v1737 = vrcp.pop %v1715
        %v1738 = vmul.f32 %v1715, %v1737
        %v1739 = vsub.f32 1.0, %v1738
        %v1740 = vmul.f32 %v1737, %v1739
        %v1741 = vadd.f32 %v1737, %v1740
        %vm1742 = vweird.f32 %v1715
        %vm1743 = vweird.f32 %v1737
        %vm1744 = vmor %vm1742, %vm1743
        %v1745 = vsel %vm1744, %v1737, %v1741
        %v1746 = vand.u32 2147483647, %v1715
        %vm1747 = vcmp.eq.f32.partialorder %v1746, 8.507059e+37
        %v1748 = vand.u32 %v1715, 2147483648
        %v1749 = vor.u32 1.1754944e-38, %v1748
        %v1750 = vsel %vm1747, %v1749, %v1745
        %v1751 = vmul.f32 1.0, %v1750
        %v1752 = vrcp.pop %v1718
        %v1753 = vmul.f32 %v1718, %v1752
        %v1754 = vsub.f32 1.0, %v1753
        %v1755 = vmul.f32 %v1752, %v1754
        %v1756 = vadd.f32 %v1752, %v1755
        %vm1757 = vweird.f32 %v1718
        %vm1758 = vweird.f32 %v1752
        %vm1759 = vmor %vm1757, %vm1758
        %v1760 = vsel %vm1759, %v1752, %v1756
        %v1761 = vand.u32 2147483647, %v1718
        %vm1762 = vcmp.eq.f32.partialorder %v1761, 8.507059e+37
        %v1763 = vand.u32 %v1718, 2147483648
        %v1764 = vor.u32 1.1754944e-38, %v1763
        %v1765 = vsel %vm1762, %v1764, %v1760
        %v1766 = vmul.f32 1.0, %v1765
        %v1767 = vrcp.pop %v1721
        %v1768 = vmul.f32 %v1721, %v1767
        %v1769 = vsub.f32 1.0, %v1768
        %v1770 = vmul.f32 %v1767, %v1769
        %v1771 = vadd.f32 %v1767, %v1770
        %vm1772 = vweird.f32 %v1721
        %vm1773 = vweird.f32 %v1767
        %vm1774 = vmor %vm1772, %vm1773
        %v1775 = vsel %vm1774, %v1767, %v1771
        %v1776 = vand.u32 2147483647, %v1721
        %vm1777 = vcmp.eq.f32.partialorder %v1776, 8.507059e+37
        %v1778 = vand.u32 %v1721, 2147483648
        %v1779 = vor.u32 1.1754944e-38, %v1778
        %v1780 = vsel %vm1777, %v1779, %v1775
        %v1781 = vmul.f32 1.0, %v1780
        %v1782 = vmul.f32 %v1703, %v1736
        %v1783 = vmul.f32 %v1705, %v1751
        %v1784 = vmul.f32 %v1707, %v1766
        %v1785 = vmul.f32 %v1709, %v1781
        %v1786 = vpack.c.bf16 %v1782, %v1782
        %v1787 = vpack.c.bf16 %v1783, %v1783
        %v1788 = vpack.c.bf16 %v1784, %v1784
        %v1789 = vpack.c.bf16 %v1785, %v1785
        %v1792 = vunpack.c.l.b16 %v1786
        %v1793 = vunpack.c.l.b16 %v1787
        %v1794 = vpack.c.b16 %v1793, %v1792
        %1795 = vrot.lane.b32.xlu0 %v1364, 96
        %v1796 = vpop.permute.xlu0 %1795
        %v1799 = vsel %vm1200, %v1794, 0
        %1801 = vmatpush.bf16.msra.mxu0 0
        %1802 = vmatpush.bf16.msra.mxu0 0
        %1803 = vmatpush.bf16.msra.mxu0 0
        %1804 = vmatpush.bf16.msra.mxu0 0
        %1805 = vmatpush.bf16.msra.mxu0 0
        %1806 = vmatpush.bf16.msra.mxu0 0
        %1807 = vmatpush.bf16.msra.mxu0 0
        %1808 = vmatpush.bf16.msra.mxu0 %v1796
        %1809 = vmatmul.bf16.gmra.mxu0 %v1799
        %v1810 = vpop.f32.mrf.mxu0
        %v1811 = vadd.f32 0.0, %v1810
        %v1812 = vpop.f32.mrf.mxu0
        %v1813 = vadd.f32 0.0, %v1812
        %1814 = vdwg.mxu0
        %v1817 = vunpack.c.l.b16 %v1788
        %v1818 = vunpack.c.l.b16 %v1789
        %v1819 = vpack.c.b16 %v1818, %v1817
        %1820 = vrot.lane.b32.xlu0 %v1392, 96
        %v1821 = vpop.permute.xlu0 %1820
        %v1824 = vsel %vm1200, %v1819, 0
        %1826 = vmatpush.bf16.msra.mxu0 0
        %1827 = vmatpush.bf16.msra.mxu0 0
        %1828 = vmatpush.bf16.msra.mxu0 0
        %1829 = vmatpush.bf16.msra.mxu0 0
        %1830 = vmatpush.bf16.msra.mxu0 0
        %1831 = vmatpush.bf16.msra.mxu0 0
        %1832 = vmatpush.bf16.msra.mxu0 0
        %1833 = vmatpush.bf16.msra.mxu0 %v1821
        %1834 = vmatmul.bf16.gmra.mxu0 %v1824
        %v1835 = vpop.f32.mrf.mxu0
        %v1836 = vadd.f32 0.0, %v1835
        %v1837 = vpop.f32.mrf.mxu0
        %v1838 = vadd.f32 0.0, %v1837
        %1839 = vdwg.mxu0
        %1844 = vrot.lane.b32.xlu0 %v1811, 32
        %v1845 = vpop.permute.xlu0 %1844
        %1846 = vrot.lane.b32.xlu0 %v1813, 32
        %v1847 = vpop.permute.xlu0 %1846
        %1848 = vrot.lane.b32.xlu0 %v1836, 32
        %v1849 = vpop.permute.xlu0 %1848
        %1850 = vrot.lane.b32.xlu0 %v1838, 32
        %v1851 = vpop.permute.xlu0 %1850
        %vm1856 = vcmask 392448
        %1857 = vst.msk [vmem:[#allocation3] sm:$0xff] %vm1856, %v1845
        %1858 = vst.msk [vmem:[#allocation3 + $0x8] sm:$0xff] %vm1856, %v1847
        %1859 = vst.msk [vmem:[#allocation3 + $0x10] sm:$0xff] %vm1856, %v1849
        %1860 = vst.msk [vmem:[#allocation3 + $0x18] sm:$0xff] %vm1856, %v1851
        %1861 = vrot.lane.b32.xlu0 %v1194, 80
        %v1862 = vpop.permute.xlu0 %1861
        %1863 = vrot.lane.b32.xlu0 %v1199, 80
        %v1864 = vpop.permute.xlu0 %1863
        %v1866 = vsel %vm1200, %v1862, 0
        %v1869 = vsel %vm1200, %v1864, 0
        %1871 = vmatpush.bf16.xpose.msra.mxu0 0
        %1872 = vmatpush.bf16.xpose.msra.mxu0 0
        %1873 = vmatpush.bf16.xpose.msra.mxu0 0
        %1874 = vmatpush.bf16.xpose.msra.mxu0 0
        %1875 = vmatpush.bf16.xpose.msra.mxu0 0
        %1876 = vmatpush.bf16.xpose.msra.mxu0 0
        %1877 = vmatpush.bf16.xpose.msra.mxu0 0
        %1878 = vmatpush.bf16.xpose.msra.mxu0 %v1869
        %1879 = vmatmul.bf16.gmra.mxu0 %v1866
        %v1880 = vpop.f32.mrf.mxu0
        %v1881 = vadd.f32 0.0, %v1880
        %v1882 = vpop.f32.mrf.mxu0
        %v1883 = vadd.f32 0.0, %v1882
        %1884 = vdwg.mxu0
        %1885 = vrot.lane.b32.xlu0 %v1225, 80
        %v1886 = vpop.permute.xlu0 %1885
        %1887 = vrot.lane.b32.xlu0 %v1230, 80
        %v1888 = vpop.permute.xlu0 %1887
        %v1890 = vsel %vm1200, %v1886, 0
        %v1893 = vsel %vm1200, %v1888, 0
        %1895 = vmatpush.bf16.xpose.msra.mxu0 0
        %1896 = vmatpush.bf16.xpose.msra.mxu0 0
        %1897 = vmatpush.bf16.xpose.msra.mxu0 0
        %1898 = vmatpush.bf16.xpose.msra.mxu0 0
        %1899 = vmatpush.bf16.xpose.msra.mxu0 0
        %1900 = vmatpush.bf16.xpose.msra.mxu0 0
        %1901 = vmatpush.bf16.xpose.msra.mxu0 0
        %1902 = vmatpush.bf16.xpose.msra.mxu0 %v1893
        %1903 = vmatmul.bf16.gmra.mxu0 %v1890
        %v1904 = vpop.f32.mrf.mxu0
        %v1905 = vadd.f32 0.0, %v1904
        %v1906 = vpop.f32.mrf.mxu0
        %v1907 = vadd.f32 0.0, %v1906
        %1908 = vdwg.mxu0
        %v1909 = vsel %vm1200, %v1881, -inf
        %1910 = vmax.xlane.f32.xlu0 %v1909
        %v1911 = vpop.xlane.xlu0 %1910
        %v1912 = vsel %vm1200, %v1883, -inf
        %1913 = vmax.xlane.f32.xlu0 %v1912
        %v1914 = vpop.xlane.xlu0 %1913
        %v1915 = vsel %vm1200, %v1905, -inf
        %1916 = vmax.xlane.f32.xlu0 %v1915
        %v1917 = vpop.xlane.xlu0 %1916
        %v1918 = vsel %vm1200, %v1907, -inf
        %1919 = vmax.xlane.f32.xlu0 %v1918
        %v1920 = vpop.xlane.xlu0 %1919
        %v1921 = vsub.f32 %v1881, %v1911
        %v1922 = vsub.f32 %v1883, %v1914
        %v1923 = vsub.f32 %v1905, %v1917
        %v1924 = vsub.f32 %v1907, %v1920
        %v1925 = vmul.f32 %v1921, 1.442695
        %v1926 = vpow.pop %v1925
        %v1927 = vmul.f32 %v1922, 1.442695
        %v1928 = vpow.pop %v1927
        %v1929 = vmul.f32 %v1923, 1.442695
        %v1930 = vpow.pop %v1929
        %v1931 = vmul.f32 %v1924, 1.442695
        %v1932 = vpow.pop %v1931
        %v1933 = vsel %vm1200, %v1926, 0.0
        %1934 = vadd.xlane.f32.xlu0 %v1933
        %v1935 = vpop.xlane.xlu0 %1934
        %v1936 = vsel %vm1200, %v1928, 0.0
        %1937 = vadd.xlane.f32.xlu0 %v1936
        %v1938 = vpop.xlane.xlu0 %1937
        %v1939 = vsel %vm1200, %v1930, 0.0
        %1940 = vadd.xlane.f32.xlu0 %v1939
        %v1941 = vpop.xlane.xlu0 %1940
        %v1942 = vsel %vm1200, %v1932, 0.0
        %1943 = vadd.xlane.f32.xlu0 %v1942
        %v1944 = vpop.xlane.xlu0 %1943
        %v1945 = vrcp.pop %v1935
        %v1946 = vmul.f32 %v1935, %v1945
        %v1947 = vsub.f32 1.0, %v1946
        %v1948 = vmul.f32 %v1945, %v1947
        %v1949 = vadd.f32 %v1945, %v1948
        %vm1950 = vweird.f32 %v1935
        %vm1951 = vweird.f32 %v1945
        %vm1952 = vmor %vm1950, %vm1951
        %v1953 = vsel %vm1952, %v1945, %v1949
        %v1954 = vand.u32 2147483647, %v1935
        %vm1955 = vcmp.eq.f32.partialorder %v1954, 8.507059e+37
        %v1956 = vand.u32 %v1935, 2147483648
        %v1957 = vor.u32 1.1754944e-38, %v1956
        %v1958 = vsel %vm1955, %v1957, %v1953
        %v1959 = vmul.f32 1.0, %v1958
        %v1960 = vrcp.pop %v1938
        %v1961 = vmul.f32 %v1938, %v1960
        %v1962 = vsub.f32 1.0, %v1961
        %v1963 = vmul.f32 %v1960, %v1962
        %v1964 = vadd.f32 %v1960, %v1963
        %vm1965 = vweird.f32 %v1938
        %vm1966 = vweird.f32 %v1960
        %vm1967 = vmor %vm1965, %vm1966
        %v1968 = vsel %vm1967, %v1960, %v1964
        %v1969 = vand.u32 2147483647, %v1938
        %vm1970 = vcmp.eq.f32.partialorder %v1969, 8.507059e+37
        %v1971 = vand.u32 %v1938, 2147483648
        %v1972 = vor.u32 1.1754944e-38, %v1971
        %v1973 = vsel %vm1970, %v1972, %v1968
        %v1974 = vmul.f32 1.0, %v1973
        %v1975 = vrcp.pop %v1941
        %v1976 = vmul.f32 %v1941, %v1975
        %v1977 = vsub.f32 1.0, %v1976
        %v1978 = vmul.f32 %v1975, %v1977
        %v1979 = vadd.f32 %v1975, %v1978
        %vm1980 = vweird.f32 %v1941
        %vm1981 = vweird.f32 %v1975
        %vm1982 = vmor %vm1980, %vm1981
        %v1983 = vsel %vm1982, %v1975, %v1979
        %v1984 = vand.u32 2147483647, %v1941
        %vm1985 = vcmp.eq.f32.partialorder %v1984, 8.507059e+37
        %v1986 = vand.u32 %v1941, 2147483648
        %v1987 = vor.u32 1.1754944e-38, %v1986
        %v1988 = vsel %vm1985, %v1987, %v1983
        %v1989 = vmul.f32 1.0, %v1988
        %v1990 = vrcp.pop %v1944
        %v1991 = vmul.f32 %v1944, %v1990
        %v1992 = vsub.f32 1.0, %v1991
        %v1993 = vmul.f32 %v1990, %v1992
        %v1994 = vadd.f32 %v1990, %v1993
        %vm1995 = vweird.f32 %v1944
        %vm1996 = vweird.f32 %v1990
        %vm1997 = vmor %vm1995, %vm1996
        %v1998 = vsel %vm1997, %v1990, %v1994
        %v1999 = vand.u32 2147483647, %v1944
        %vm2000 = vcmp.eq.f32.partialorder %v1999, 8.507059e+37
        %v2001 = vand.u32 %v1944, 2147483648
        %v2002 = vor.u32 1.1754944e-38, %v2001
        %v2003 = vsel %vm2000, %v2002, %v1998
        %v2004 = vmul.f32 1.0, %v2003
        %v2005 = vmul.f32 %v1926, %v1959
        %v2006 = vmul.f32 %v1928, %v1974
        %v2007 = vmul.f32 %v1930, %v1989
        %v2008 = vmul.f32 %v1932, %v2004
        %v2009 = vpack.c.bf16 %v2005, %v2005
        %v2010 = vpack.c.bf16 %v2006, %v2006
        %v2011 = vpack.c.bf16 %v2007, %v2007
        %v2012 = vpack.c.bf16 %v2008, %v2008
        %v2015 = vunpack.c.l.b16 %v2009
        %v2016 = vunpack.c.l.b16 %v2010
        %v2017 = vpack.c.b16 %v2016, %v2015
        %2018 = vrot.lane.b32.xlu0 %v1364, 80
        %v2019 = vpop.permute.xlu0 %2018
        %v2022 = vsel %vm1200, %v2017, 0
        %2024 = vmatpush.bf16.msra.mxu0 0
        %2025 = vmatpush.bf16.msra.mxu0 0
        %2026 = vmatpush.bf16.msra.mxu0 0
        %2027 = vmatpush.bf16.msra.mxu0 0
        %2028 = vmatpush.bf16.msra.mxu0 0
        %2029 = vmatpush.bf16.msra.mxu0 0
        %2030 = vmatpush.bf16.msra.mxu0 0
        %2031 = vmatpush.bf16.msra.mxu0 %v2019
        %2032 = vmatmul.bf16.gmra.mxu0 %v2022
        %v2033 = vpop.f32.mrf.mxu0
        %v2034 = vadd.f32 0.0, %v2033
        %v2035 = vpop.f32.mrf.mxu0
        %v2036 = vadd.f32 0.0, %v2035
        %2037 = vdwg.mxu0
        %v2040 = vunpack.c.l.b16 %v2011
        %v2041 = vunpack.c.l.b16 %v2012
        %v2042 = vpack.c.b16 %v2041, %v2040
        %2043 = vrot.lane.b32.xlu0 %v1392, 80
        %v2044 = vpop.permute.xlu0 %2043
        %v2047 = vsel %vm1200, %v2042, 0
        %2049 = vmatpush.bf16.msra.mxu0 0
        %2050 = vmatpush.bf16.msra.mxu0 0
        %2051 = vmatpush.bf16.msra.mxu0 0
        %2052 = vmatpush.bf16.msra.mxu0 0
        %2053 = vmatpush.bf16.msra.mxu0 0
        %2054 = vmatpush.bf16.msra.mxu0 0
        %2055 = vmatpush.bf16.msra.mxu0 0
        %2056 = vmatpush.bf16.msra.mxu0 %v2044
        %2057 = vmatmul.bf16.gmra.mxu0 %v2047
        %v2058 = vpop.f32.mrf.mxu0
        %v2059 = vadd.f32 0.0, %v2058
        %v2060 = vpop.f32.mrf.mxu0
        %v2061 = vadd.f32 0.0, %v2060
        %2062 = vdwg.mxu0
        %2067 = vrot.lane.b32.xlu0 %v2034, 48
        %v2068 = vpop.permute.xlu0 %2067
        %2069 = vrot.lane.b32.xlu0 %v2036, 48
        %v2070 = vpop.permute.xlu0 %2069
        %2071 = vrot.lane.b32.xlu0 %v2059, 48
        %v2072 = vpop.permute.xlu0 %2071
        %2073 = vrot.lane.b32.xlu0 %v2061, 48
        %v2074 = vpop.permute.xlu0 %2073
        %vm2079 = vcmask 523648
        %2080 = vst.msk [vmem:[#allocation3] sm:$0xff] %vm2079, %v2068
        %2081 = vst.msk [vmem:[#allocation3 + $0x8] sm:$0xff] %vm2079, %v2070
        %2082 = vst.msk [vmem:[#allocation3 + $0x10] sm:$0xff] %vm2079, %v2072
        %2083 = vst.msk [vmem:[#allocation3 + $0x18] sm:$0xff] %vm2079, %v2074
        %2084 = vrot.lane.b32.xlu0 %v1194, 64
        %v2085 = vpop.permute.xlu0 %2084
        %2086 = vrot.lane.b32.xlu0 %v1199, 64
        %v2087 = vpop.permute.xlu0 %2086
        %v2089 = vsel %vm1200, %v2085, 0
        %v2092 = vsel %vm1200, %v2087, 0
        %2094 = vmatpush.bf16.xpose.msra.mxu0 0
        %2095 = vmatpush.bf16.xpose.msra.mxu0 0
        %2096 = vmatpush.bf16.xpose.msra.mxu0 0
        %2097 = vmatpush.bf16.xpose.msra.mxu0 0
        %2098 = vmatpush.bf16.xpose.msra.mxu0 0
        %2099 = vmatpush.bf16.xpose.msra.mxu0 0
        %2100 = vmatpush.bf16.xpose.msra.mxu0 0
        %2101 = vmatpush.bf16.xpose.msra.mxu0 %v2092
        %2102 = vmatmul.bf16.gmra.mxu0 %v2089
        %v2103 = vpop.f32.mrf.mxu0
        %v2104 = vadd.f32 0.0, %v2103
        %v2105 = vpop.f32.mrf.mxu0
        %v2106 = vadd.f32 0.0, %v2105
        %2107 = vdwg.mxu0
        %2108 = vrot.lane.b32.xlu0 %v1225, 64
        %v2109 = vpop.permute.xlu0 %2108
        %2110 = vrot.lane.b32.xlu0 %v1230, 64
        %v2111 = vpop.permute.xlu0 %2110
        %v2113 = vsel %vm1200, %v2109, 0
        %v2116 = vsel %vm1200, %v2111, 0
        %2118 = vmatpush.bf16.xpose.msra.mxu0 0
        %2119 = vmatpush.bf16.xpose.msra.mxu0 0
        %2120 = vmatpush.bf16.xpose.msra.mxu0 0
        %2121 = vmatpush.bf16.xpose.msra.mxu0 0
        %2122 = vmatpush.bf16.xpose.msra.mxu0 0
        %2123 = vmatpush.bf16.xpose.msra.mxu0 0
        %2124 = vmatpush.bf16.xpose.msra.mxu0 0
        %2125 = vmatpush.bf16.xpose.msra.mxu0 %v2116
        %2126 = vmatmul.bf16.gmra.mxu0 %v2113
        %v2127 = vpop.f32.mrf.mxu0
        %v2128 = vadd.f32 0.0, %v2127
        %v2129 = vpop.f32.mrf.mxu0
        %v2130 = vadd.f32 0.0, %v2129
        %2131 = vdwg.mxu0
        %v2132 = vsel %vm1200, %v2104, -inf
        %2133 = vmax.xlane.f32.xlu0 %v2132
        %v2134 = vpop.xlane.xlu0 %2133
        %v2135 = vsel %vm1200, %v2106, -inf
        %2136 = vmax.xlane.f32.xlu0 %v2135
        %v2137 = vpop.xlane.xlu0 %2136
        %v2138 = vsel %vm1200, %v2128, -inf
        %2139 = vmax.xlane.f32.xlu0 %v2138
        %v2140 = vpop.xlane.xlu0 %2139
        %v2141 = vsel %vm1200, %v2130, -inf
        %2142 = vmax.xlane.f32.xlu0 %v2141
        %v2143 = vpop.xlane.xlu0 %2142
        %v2144 = vsub.f32 %v2104, %v2134
        %v2145 = vsub.f32 %v2106, %v2137
        %v2146 = vsub.f32 %v2128, %v2140
        %v2147 = vsub.f32 %v2130, %v2143
        %v2148 = vmul.f32 %v2144, 1.442695
        %v2149 = vpow.pop %v2148
        %v2150 = vmul.f32 %v2145, 1.442695
        %v2151 = vpow.pop %v2150
        %v2152 = vmul.f32 %v2146, 1.442695
        %v2153 = vpow.pop %v2152
        %v2154 = vmul.f32 %v2147, 1.442695
        %v2155 = vpow.pop %v2154
        %v2156 = vsel %vm1200, %v2149, 0.0
        %2157 = vadd.xlane.f32.xlu0 %v2156
        %v2158 = vpop.xlane.xlu0 %2157
        %v2159 = vsel %vm1200, %v2151, 0.0
        %2160 = vadd.xlane.f32.xlu0 %v2159
        %v2161 = vpop.xlane.xlu0 %2160
        %v2162 = vsel %vm1200, %v2153, 0.0
        %2163 = vadd.xlane.f32.xlu0 %v2162
        %v2164 = vpop.xlane.xlu0 %2163
        %v2165 = vsel %vm1200, %v2155, 0.0
        %2166 = vadd.xlane.f32.xlu0 %v2165
        %v2167 = vpop.xlane.xlu0 %2166
        %v2168 = vrcp.pop %v2158
        %v2169 = vmul.f32 %v2158, %v2168
        %v2170 = vsub.f32 1.0, %v2169
        %v2171 = vmul.f32 %v2168, %v2170
        %v2172 = vadd.f32 %v2168, %v2171
        %vm2173 = vweird.f32 %v2158
        %vm2174 = vweird.f32 %v2168
        %vm2175 = vmor %vm2173, %vm2174
        %v2176 = vsel %vm2175, %v2168, %v2172
        %v2177 = vand.u32 2147483647, %v2158
        %vm2178 = vcmp.eq.f32.partialorder %v2177, 8.507059e+37
        %v2179 = vand.u32 %v2158, 2147483648
        %v2180 = vor.u32 1.1754944e-38, %v2179
        %v2181 = vsel %vm2178, %v2180, %v2176
        %v2182 = vmul.f32 1.0, %v2181
        %v2183 = vrcp.pop %v2161
        %v2184 = vmul.f32 %v2161, %v2183
        %v2185 = vsub.f32 1.0, %v2184
        %v2186 = vmul.f32 %v2183, %v2185
        %v2187 = vadd.f32 %v2183, %v2186
        %vm2188 = vweird.f32 %v2161
        %vm2189 = vweird.f32 %v2183
        %vm2190 = vmor %vm2188, %vm2189
        %v2191 = vsel %vm2190, %v2183, %v2187
        %v2192 = vand.u32 2147483647, %v2161
        %vm2193 = vcmp.eq.f32.partialorder %v2192, 8.507059e+37
        %v2194 = vand.u32 %v2161, 2147483648
        %v2195 = vor.u32 1.1754944e-38, %v2194
        %v2196 = vsel %vm2193, %v2195, %v2191
        %v2197 = vmul.f32 1.0, %v2196
        %v2198 = vrcp.pop %v2164
        %v2199 = vmul.f32 %v2164, %v2198
        %v2200 = vsub.f32 1.0, %v2199
        %v2201 = vmul.f32 %v2198, %v2200
        %v2202 = vadd.f32 %v2198, %v2201
        %vm2203 = vweird.f32 %v2164
        %vm2204 = vweird.f32 %v2198
        %vm2205 = vmor %vm2203, %vm2204
        %v2206 = vsel %vm2205, %v2198, %v2202
        %v2207 = vand.u32 2147483647, %v2164
        %vm2208 = vcmp.eq.f32.partialorder %v2207, 8.507059e+37
        %v2209 = vand.u32 %v2164, 2147483648
        %v2210 = vor.u32 1.1754944e-38, %v2209
        %v2211 = vsel %vm2208, %v2210, %v2206
        %v2212 = vmul.f32 1.0, %v2211
        %v2213 = vrcp.pop %v2167
        %v2214 = vmul.f32 %v2167, %v2213
        %v2215 = vsub.f32 1.0, %v2214
        %v2216 = vmul.f32 %v2213, %v2215
        %v2217 = vadd.f32 %v2213, %v2216
        %vm2218 = vweird.f32 %v2167
        %vm2219 = vweird.f32 %v2213
        %vm2220 = vmor %vm2218, %vm2219
        %v2221 = vsel %vm2220, %v2213, %v2217
        %v2222 = vand.u32 2147483647, %v2167
        %vm2223 = vcmp.eq.f32.partialorder %v2222, 8.507059e+37
        %v2224 = vand.u32 %v2167, 2147483648
        %v2225 = vor.u32 1.1754944e-38, %v2224
        %v2226 = vsel %vm2223, %v2225, %v2221
        %v2227 = vmul.f32 1.0, %v2226
        %v2228 = vmul.f32 %v2149, %v2182
        %v2229 = vmul.f32 %v2151, %v2197
        %v2230 = vmul.f32 %v2153, %v2212
        %v2231 = vmul.f32 %v2155, %v2227
        %v2232 = vpack.c.bf16 %v2228, %v2228
        %v2233 = vpack.c.bf16 %v2229, %v2229
        %v2234 = vpack.c.bf16 %v2230, %v2230
        %v2235 = vpack.c.bf16 %v2231, %v2231
        %v2238 = vunpack.c.l.b16 %v2232
        %v2239 = vunpack.c.l.b16 %v2233
        %v2240 = vpack.c.b16 %v2239, %v2238
        %2241 = vrot.lane.b32.xlu0 %v1364, 64
        %v2242 = vpop.permute.xlu0 %2241
        %v2245 = vsel %vm1200, %v2240, 0
        %2247 = vmatpush.bf16.msra.mxu0 0
        %2248 = vmatpush.bf16.msra.mxu0 0
        %2249 = vmatpush.bf16.msra.mxu0 0
        %2250 = vmatpush.bf16.msra.mxu0 0
        %2251 = vmatpush.bf16.msra.mxu0 0
        %2252 = vmatpush.bf16.msra.mxu0 0
        %2253 = vmatpush.bf16.msra.mxu0 0
        %2254 = vmatpush.bf16.msra.mxu0 %v2242
        %2255 = vmatmul.bf16.gmra.mxu0 %v2245
        %v2256 = vpop.f32.mrf.mxu0
        %v2257 = vadd.f32 0.0, %v2256
        %v2258 = vpop.f32.mrf.mxu0
        %v2259 = vadd.f32 0.0, %v2258
        %2260 = vdwg.mxu0
        %v2263 = vunpack.c.l.b16 %v2234
        %v2264 = vunpack.c.l.b16 %v2235
        %v2265 = vpack.c.b16 %v2264, %v2263
        %2266 = vrot.lane.b32.xlu0 %v1392, 64
        %v2267 = vpop.permute.xlu0 %2266
        %v2270 = vsel %vm1200, %v2265, 0
        %2272 = vmatpush.bf16.msra.mxu0 0
        %2273 = vmatpush.bf16.msra.mxu0 0
        %2274 = vmatpush.bf16.msra.mxu0 0
        %2275 = vmatpush.bf16.msra.mxu0 0
        %2276 = vmatpush.bf16.msra.mxu0 0
        %2277 = vmatpush.bf16.msra.mxu0 0
        %2278 = vmatpush.bf16.msra.mxu0 0
        %2279 = vmatpush.bf16.msra.mxu0 %v2267
        %2280 = vmatmul.bf16.gmra.mxu0 %v2270
        %v2281 = vpop.f32.mrf.mxu0
        %v2282 = vadd.f32 0.0, %v2281
        %v2283 = vpop.f32.mrf.mxu0
        %v2284 = vadd.f32 0.0, %v2283
        %2285 = vdwg.mxu0
        %2290 = vrot.lane.b32.xlu0 %v2257, 64
        %v2291 = vpop.permute.xlu0 %2290
        %2292 = vrot.lane.b32.xlu0 %v2259, 64
        %v2293 = vpop.permute.xlu0 %2292
        %2294 = vrot.lane.b32.xlu0 %v2282, 64
        %v2295 = vpop.permute.xlu0 %2294
        %2296 = vrot.lane.b32.xlu0 %v2284, 64
        %v2297 = vpop.permute.xlu0 %2296
        %vm2302 = vcmask 654848
        %2303 = vst.msk [vmem:[#allocation3] sm:$0xff] %vm2302, %v2291
        %2304 = vst.msk [vmem:[#allocation3 + $0x8] sm:$0xff] %vm2302, %v2293
        %2305 = vst.msk [vmem:[#allocation3 + $0x10] sm:$0xff] %vm2302, %v2295
        %2306 = vst.msk [vmem:[#allocation3 + $0x18] sm:$0xff] %vm2302, %v2297
        %2307 = vrot.lane.b32.xlu0 %v1194, 48
        %v2308 = vpop.permute.xlu0 %2307
        %2309 = vrot.lane.b32.xlu0 %v1199, 48
        %v2310 = vpop.permute.xlu0 %2309
        %v2312 = vsel %vm1200, %v2308, 0
        %v2315 = vsel %vm1200, %v2310, 0
        %2317 = vmatpush.bf16.xpose.msra.mxu0 0
        %2318 = vmatpush.bf16.xpose.msra.mxu0 0
        %2319 = vmatpush.bf16.xpose.msra.mxu0 0
        %2320 = vmatpush.bf16.xpose.msra.mxu0 0
        %2321 = vmatpush.bf16.xpose.msra.mxu0 0
        %2322 = vmatpush.bf16.xpose.msra.mxu0 0
        %2323 = vmatpush.bf16.xpose.msra.mxu0 0
        %2324 = vmatpush.bf16.xpose.msra.mxu0 %v2315
        %2325 = vmatmul.bf16.gmra.mxu0 %v2312
        %v2326 = vpop.f32.mrf.mxu0
        %v2327 = vadd.f32 0.0, %v2326
        %v2328 = vpop.f32.mrf.mxu0
        %v2329 = vadd.f32 0.0, %v2328
        %2330 = vdwg.mxu0
        %2331 = vrot.lane.b32.xlu0 %v1225, 48
        %v2332 = vpop.permute.xlu0 %2331
        %2333 = vrot.lane.b32.xlu0 %v1230, 48
        %v2334 = vpop.permute.xlu0 %2333
        %v2336 = vsel %vm1200, %v2332, 0
        %v2339 = vsel %vm1200, %v2334, 0
        %2341 = vmatpush.bf16.xpose.msra.mxu0 0
        %2342 = vmatpush.bf16.xpose.msra.mxu0 0
        %2343 = vmatpush.bf16.xpose.msra.mxu0 0
        %2344 = vmatpush.bf16.xpose.msra.mxu0 0
        %2345 = vmatpush.bf16.xpose.msra.mxu0 0
        %2346 = vmatpush.bf16.xpose.msra.mxu0 0
        %2347 = vmatpush.bf16.xpose.msra.mxu0 0
        %2348 = vmatpush.bf16.xpose.msra.mxu0 %v2339
        %2349 = vmatmul.bf16.gmra.mxu0 %v2336
        %v2350 = vpop.f32.mrf.mxu0
        %v2351 = vadd.f32 0.0, %v2350
        %v2352 = vpop.f32.mrf.mxu0
        %v2353 = vadd.f32 0.0, %v2352
        %2354 = vdwg.mxu0
        %v2355 = vsel %vm1200, %v2327, -inf
        %2356 = vmax.xlane.f32.xlu0 %v2355
        %v2357 = vpop.xlane.xlu0 %2356
        %v2358 = vsel %vm1200, %v2329, -inf
        %2359 = vmax.xlane.f32.xlu0 %v2358
        %v2360 = vpop.xlane.xlu0 %2359
        %v2361 = vsel %vm1200, %v2351, -inf
        %2362 = vmax.xlane.f32.xlu0 %v2361
        %v2363 = vpop.xlane.xlu0 %2362
        %v2364 = vsel %vm1200, %v2353, -inf
        %2365 = vmax.xlane.f32.xlu0 %v2364
        %v2366 = vpop.xlane.xlu0 %2365
        %v2367 = vsub.f32 %v2327, %v2357
        %v2368 = vsub.f32 %v2329, %v2360
        %v2369 = vsub.f32 %v2351, %v2363
        %v2370 = vsub.f32 %v2353, %v2366
        %v2371 = vmul.f32 %v2367, 1.442695
        %v2372 = vpow.pop %v2371
        %v2373 = vmul.f32 %v2368, 1.442695
        %v2374 = vpow.pop %v2373
        %v2375 = vmul.f32 %v2369, 1.442695
        %v2376 = vpow.pop %v2375
        %v2377 = vmul.f32 %v2370, 1.442695
        %v2378 = vpow.pop %v2377
        %v2379 = vsel %vm1200, %v2372, 0.0
        %2380 = vadd.xlane.f32.xlu0 %v2379
        %v2381 = vpop.xlane.xlu0 %2380
        %v2382 = vsel %vm1200, %v2374, 0.0
        %2383 = vadd.xlane.f32.xlu0 %v2382
        %v2384 = vpop.xlane.xlu0 %2383
        %v2385 = vsel %vm1200, %v2376, 0.0
        %2386 = vadd.xlane.f32.xlu0 %v2385
        %v2387 = vpop.xlane.xlu0 %2386
        %v2388 = vsel %vm1200, %v2378, 0.0
        %2389 = vadd.xlane.f32.xlu0 %v2388
        %v2390 = vpop.xlane.xlu0 %2389
        %v2391 = vrcp.pop %v2381
        %v2392 = vmul.f32 %v2381, %v2391
        %v2393 = vsub.f32 1.0, %v2392
        %v2394 = vmul.f32 %v2391, %v2393
        %v2395 = vadd.f32 %v2391, %v2394
        %vm2396 = vweird.f32 %v2381
        %vm2397 = vweird.f32 %v2391
        %vm2398 = vmor %vm2396, %vm2397
        %v2399 = vsel %vm2398, %v2391, %v2395
        %v2400 = vand.u32 2147483647, %v2381
        %vm2401 = vcmp.eq.f32.partialorder %v2400, 8.507059e+37
        %v2402 = vand.u32 %v2381, 2147483648
        %v2403 = vor.u32 1.1754944e-38, %v2402
        %v2404 = vsel %vm2401, %v2403, %v2399
        %v2405 = vmul.f32 1.0, %v2404
        %v2406 = vrcp.pop %v2384
        %v2407 = vmul.f32 %v2384, %v2406
        %v2408 = vsub.f32 1.0, %v2407
        %v2409 = vmul.f32 %v2406, %v2408
        %v2410 = vadd.f32 %v2406, %v2409
        %vm2411 = vweird.f32 %v2384
        %vm2412 = vweird.f32 %v2406
        %vm2413 = vmor %vm2411, %vm2412
        %v2414 = vsel %vm2413, %v2406, %v2410
        %v2415 = vand.u32 2147483647, %v2384
        %vm2416 = vcmp.eq.f32.partialorder %v2415, 8.507059e+37
        %v2417 = vand.u32 %v2384, 2147483648
        %v2418 = vor.u32 1.1754944e-38, %v2417
        %v2419 = vsel %vm2416, %v2418, %v2414
        %v2420 = vmul.f32 1.0, %v2419
        %v2421 = vrcp.pop %v2387
        %v2422 = vmul.f32 %v2387, %v2421
        %v2423 = vsub.f32 1.0, %v2422
        %v2424 = vmul.f32 %v2421, %v2423
        %v2425 = vadd.f32 %v2421, %v2424
        %vm2426 = vweird.f32 %v2387
        %vm2427 = vweird.f32 %v2421
        %vm2428 = vmor %vm2426, %vm2427
        %v2429 = vsel %vm2428, %v2421, %v2425
        %v2430 = vand.u32 2147483647, %v2387
        %vm2431 = vcmp.eq.f32.partialorder %v2430, 8.507059e+37
        %v2432 = vand.u32 %v2387, 2147483648
        %v2433 = vor.u32 1.1754944e-38, %v2432
        %v2434 = vsel %vm2431, %v2433, %v2429
        %v2435 = vmul.f32 1.0, %v2434
        %v2436 = vrcp.pop %v2390
        %v2437 = vmul.f32 %v2390, %v2436
        %v2438 = vsub.f32 1.0, %v2437
        %v2439 = vmul.f32 %v2436, %v2438
        %v2440 = vadd.f32 %v2436, %v2439
        %vm2441 = vweird.f32 %v2390
        %vm2442 = vweird.f32 %v2436
        %vm2443 = vmor %vm2441, %vm2442
        %v2444 = vsel %vm2443, %v2436, %v2440
        %v2445 = vand.u32 2147483647, %v2390
        %vm2446 = vcmp.eq.f32.partialorder %v2445, 8.507059e+37
        %v2447 = vand.u32 %v2390, 2147483648
        %v2448 = vor.u32 1.1754944e-38, %v2447
        %v2449 = vsel %vm2446, %v2448, %v2444
        %v2450 = vmul.f32 1.0, %v2449
        %v2451 = vmul.f32 %v2372, %v2405
        %v2452 = vmul.f32 %v2374, %v2420
        %v2453 = vmul.f32 %v2376, %v2435
        %v2454 = vmul.f32 %v2378, %v2450
        %v2455 = vpack.c.bf16 %v2451, %v2451
        %v2456 = vpack.c.bf16 %v2452, %v2452
        %v2457 = vpack.c.bf16 %v2453, %v2453
        %v2458 = vpack.c.bf16 %v2454, %v2454
        %v2461 = vunpack.c.l.b16 %v2455
        %v2462 = vunpack.c.l.b16 %v2456
        %v2463 = vpack.c.b16 %v2462, %v2461
        %2464 = vrot.lane.b32.xlu0 %v1364, 48
        %v2465 = vpop.permute.xlu0 %2464
        %v2468 = vsel %vm1200, %v2463, 0
        %2470 = vmatpush.bf16.msra.mxu0 0
        %2471 = vmatpush.bf16.msra.mxu0 0
        %2472 = vmatpush.bf16.msra.mxu0 0
        %2473 = vmatpush.bf16.msra.mxu0 0
        %2474 = vmatpush.bf16.msra.mxu0 0
        %2475 = vmatpush.bf16.msra.mxu0 0
        %2476 = vmatpush.bf16.msra.mxu0 0
        %2477 = vmatpush.bf16.msra.mxu0 %v2465
        %2478 = vmatmul.bf16.gmra.mxu0 %v2468
        %v2479 = vpop.f32.mrf.mxu0
        %v2480 = vadd.f32 0.0, %v2479
        %v2481 = vpop.f32.mrf.mxu0
        %v2482 = vadd.f32 0.0, %v2481
        %2483 = vdwg.mxu0
        %v2486 = vunpack.c.l.b16 %v2457
        %v2487 = vunpack.c.l.b16 %v2458
        %v2488 = vpack.c.b16 %v2487, %v2486
        %2489 = vrot.lane.b32.xlu0 %v1392, 48
        %v2490 = vpop.permute.xlu0 %2489
        %v2493 = vsel %vm1200, %v2488, 0
        %2495 = vmatpush.bf16.msra.mxu0 0
        %2496 = vmatpush.bf16.msra.mxu0 0
        %2497 = vmatpush.bf16.msra.mxu0 0
        %2498 = vmatpush.bf16.msra.mxu0 0
        %2499 = vmatpush.bf16.msra.mxu0 0
        %2500 = vmatpush.bf16.msra.mxu0 0
        %2501 = vmatpush.bf16.msra.mxu0 0
        %2502 = vmatpush.bf16.msra.mxu0 %v2490
        %2503 = vmatmul.bf16.gmra.mxu0 %v2493
        %v2504 = vpop.f32.mrf.mxu0
        %v2505 = vadd.f32 0.0, %v2504
        %v2506 = vpop.f32.mrf.mxu0
        %v2507 = vadd.f32 0.0, %v2506
        %2508 = vdwg.mxu0
        %2513 = vrot.lane.b32.xlu0 %v2480, 80
        %v2514 = vpop.permute.xlu0 %2513
        %2515 = vrot.lane.b32.xlu0 %v2482, 80
        %v2516 = vpop.permute.xlu0 %2515
        %2517 = vrot.lane.b32.xlu0 %v2505, 80
        %v2518 = vpop.permute.xlu0 %2517
        %2519 = vrot.lane.b32.xlu0 %v2507, 80
        %v2520 = vpop.permute.xlu0 %2519
        %vm2525 = vcmask 786048
        %2526 = vst.msk [vmem:[#allocation3] sm:$0xff] %vm2525, %v2514
        %2527 = vst.msk [vmem:[#allocation3 + $0x8] sm:$0xff] %vm2525, %v2516
        %2528 = vst.msk [vmem:[#allocation3 + $0x10] sm:$0xff] %vm2525, %v2518
        %2529 = vst.msk [vmem:[#allocation3 + $0x18] sm:$0xff] %vm2525, %v2520
        %2530 = vrot.lane.b32.xlu0 %v1194, 32
        %v2531 = vpop.permute.xlu0 %2530
        %2532 = vrot.lane.b32.xlu0 %v1199, 32
        %v2533 = vpop.permute.xlu0 %2532
        %v2535 = vsel %vm1200, %v2531, 0
        %v2538 = vsel %vm1200, %v2533, 0
        %2540 = vmatpush.bf16.xpose.msra.mxu0 0
        %2541 = vmatpush.bf16.xpose.msra.mxu0 0
        %2542 = vmatpush.bf16.xpose.msra.mxu0 0
        %2543 = vmatpush.bf16.xpose.msra.mxu0 0
        %2544 = vmatpush.bf16.xpose.msra.mxu0 0
        %2545 = vmatpush.bf16.xpose.msra.mxu0 0
        %2546 = vmatpush.bf16.xpose.msra.mxu0 0
        %2547 = vmatpush.bf16.xpose.msra.mxu0 %v2538
        %2548 = vmatmul.bf16.gmra.mxu0 %v2535
        %v2549 = vpop.f32.mrf.mxu0
        %v2550 = vadd.f32 0.0, %v2549
        %v2551 = vpop.f32.mrf.mxu0
        %v2552 = vadd.f32 0.0, %v2551
        %2553 = vdwg.mxu0
        %2554 = vrot.lane.b32.xlu0 %v1225, 32
        %v2555 = vpop.permute.xlu0 %2554
        %2556 = vrot.lane.b32.xlu0 %v1230, 32
        %v2557 = vpop.permute.xlu0 %2556
        %v2559 = vsel %vm1200, %v2555, 0
        %v2562 = vsel %vm1200, %v2557, 0
        %2564 = vmatpush.bf16.xpose.msra.mxu0 0
        %2565 = vmatpush.bf16.xpose.msra.mxu0 0
        %2566 = vmatpush.bf16.xpose.msra.mxu0 0
        %2567 = vmatpush.bf16.xpose.msra.mxu0 0
        %2568 = vmatpush.bf16.xpose.msra.mxu0 0
        %2569 = vmatpush.bf16.xpose.msra.mxu0 0
        %2570 = vmatpush.bf16.xpose.msra.mxu0 0
        %2571 = vmatpush.bf16.xpose.msra.mxu0 %v2562
        %2572 = vmatmul.bf16.gmra.mxu0 %v2559
        %v2573 = vpop.f32.mrf.mxu0
        %v2574 = vadd.f32 0.0, %v2573
        %v2575 = vpop.f32.mrf.mxu0
        %v2576 = vadd.f32 0.0, %v2575
        %2577 = vdwg.mxu0
        %v2578 = vsel %vm1200, %v2550, -inf
        %2579 = vmax.xlane.f32.xlu0 %v2578
        %v2580 = vpop.xlane.xlu0 %2579
        %v2581 = vsel %vm1200, %v2552, -inf
        %2582 = vmax.xlane.f32.xlu0 %v2581
        %v2583 = vpop.xlane.xlu0 %2582
        %v2584 = vsel %vm1200, %v2574, -inf
        %2585 = vmax.xlane.f32.xlu0 %v2584
        %v2586 = vpop.xlane.xlu0 %2585
        %v2587 = vsel %vm1200, %v2576, -inf
        %2588 = vmax.xlane.f32.xlu0 %v2587
        %v2589 = vpop.xlane.xlu0 %2588
        %v2590 = vsub.f32 %v2550, %v2580
        %v2591 = vsub.f32 %v2552, %v2583
        %v2592 = vsub.f32 %v2574, %v2586
        %v2593 = vsub.f32 %v2576, %v2589
        %v2594 = vmul.f32 %v2590, 1.442695
        %v2595 = vpow.pop %v2594
        %v2596 = vmul.f32 %v2591, 1.442695
        %v2597 = vpow.pop %v2596
        %v2598 = vmul.f32 %v2592, 1.442695
        %v2599 = vpow.pop %v2598
        %v2600 = vmul.f32 %v2593, 1.442695
        %v2601 = vpow.pop %v2600
        %v2602 = vsel %vm1200, %v2595, 0.0
        %2603 = vadd.xlane.f32.xlu0 %v2602
        %v2604 = vpop.xlane.xlu0 %2603
        %v2605 = vsel %vm1200, %v2597, 0.0
        %2606 = vadd.xlane.f32.xlu0 %v2605
        %v2607 = vpop.xlane.xlu0 %2606
        %v2608 = vsel %vm1200, %v2599, 0.0
        %2609 = vadd.xlane.f32.xlu0 %v2608
        %v2610 = vpop.xlane.xlu0 %2609
        %v2611 = vsel %vm1200, %v2601, 0.0
        %2612 = vadd.xlane.f32.xlu0 %v2611
        %v2613 = vpop.xlane.xlu0 %2612
        %v2614 = vrcp.pop %v2604
        %v2615 = vmul.f32 %v2604, %v2614
        %v2616 = vsub.f32 1.0, %v2615
        %v2617 = vmul.f32 %v2614, %v2616
        %v2618 = vadd.f32 %v2614, %v2617
        %vm2619 = vweird.f32 %v2604
        %vm2620 = vweird.f32 %v2614
        %vm2621 = vmor %vm2619, %vm2620
        %v2622 = vsel %vm2621, %v2614, %v2618
        %v2623 = vand.u32 2147483647, %v2604
        %vm2624 = vcmp.eq.f32.partialorder %v2623, 8.507059e+37
        %v2625 = vand.u32 %v2604, 2147483648
        %v2626 = vor.u32 1.1754944e-38, %v2625
        %v2627 = vsel %vm2624, %v2626, %v2622
        %v2628 = vmul.f32 1.0, %v2627
        %v2629 = vrcp.pop %v2607
        %v2630 = vmul.f32 %v2607, %v2629
        %v2631 = vsub.f32 1.0, %v2630
        %v2632 = vmul.f32 %v2629, %v2631
        %v2633 = vadd.f32 %v2629, %v2632
        %vm2634 = vweird.f32 %v2607
        %vm2635 = vweird.f32 %v2629
        %vm2636 = vmor %vm2634, %vm2635
        %v2637 = vsel %vm2636, %v2629, %v2633
        %v2638 = vand.u32 2147483647, %v2607
        %vm2639 = vcmp.eq.f32.partialorder %v2638, 8.507059e+37
        %v2640 = vand.u32 %v2607, 2147483648
        %v2641 = vor.u32 1.1754944e-38, %v2640
        %v2642 = vsel %vm2639, %v2641, %v2637
        %v2643 = vmul.f32 1.0, %v2642
        %v2644 = vrcp.pop %v2610
        %v2645 = vmul.f32 %v2610, %v2644
        %v2646 = vsub.f32 1.0, %v2645
        %v2647 = vmul.f32 %v2644, %v2646
        %v2648 = vadd.f32 %v2644, %v2647
        %vm2649 = vweird.f32 %v2610
        %vm2650 = vweird.f32 %v2644
        %vm2651 = vmor %vm2649, %vm2650
        %v2652 = vsel %vm2651, %v2644, %v2648
        %v2653 = vand.u32 2147483647, %v2610
        %vm2654 = vcmp.eq.f32.partialorder %v2653, 8.507059e+37
        %v2655 = vand.u32 %v2610, 2147483648
        %v2656 = vor.u32 1.1754944e-38, %v2655
        %v2657 = vsel %vm2654, %v2656, %v2652
        %v2658 = vmul.f32 1.0, %v2657
        %v2659 = vrcp.pop %v2613
        %v2660 = vmul.f32 %v2613, %v2659
        %v2661 = vsub.f32 1.0, %v2660
        %v2662 = vmul.f32 %v2659, %v2661
        %v2663 = vadd.f32 %v2659, %v2662
        %vm2664 = vweird.f32 %v2613
        %vm2665 = vweird.f32 %v2659
        %vm2666 = vmor %vm2664, %vm2665
        %v2667 = vsel %vm2666, %v2659, %v2663
        %v2668 = vand.u32 2147483647, %v2613
        %vm2669 = vcmp.eq.f32.partialorder %v2668, 8.507059e+37
        %v2670 = vand.u32 %v2613, 2147483648
        %v2671 = vor.u32 1.1754944e-38, %v2670
        %v2672 = vsel %vm2669, %v2671, %v2667
        %v2673 = vmul.f32 1.0, %v2672
        %v2674 = vmul.f32 %v2595, %v2628
        %v2675 = vmul.f32 %v2597, %v2643
        %v2676 = vmul.f32 %v2599, %v2658
        %v2677 = vmul.f32 %v2601, %v2673
        %v2678 = vpack.c.bf16 %v2674, %v2674
        %v2679 = vpack.c.bf16 %v2675, %v2675
        %v2680 = vpack.c.bf16 %v2676, %v2676
        %v2681 = vpack.c.bf16 %v2677, %v2677
        %v2684 = vunpack.c.l.b16 %v2678
        %v2685 = vunpack.c.l.b16 %v2679
        %v2686 = vpack.c.b16 %v2685, %v2684
        %2687 = vrot.lane.b32.xlu0 %v1364, 32
        %v2688 = vpop.permute.xlu0 %2687
        %v2691 = vsel %vm1200, %v2686, 0
        %2693 = vmatpush.bf16.msra.mxu0 0
        %2694 = vmatpush.bf16.msra.mxu0 0
        %2695 = vmatpush.bf16.msra.mxu0 0
        %2696 = vmatpush.bf16.msra.mxu0 0
        %2697 = vmatpush.bf16.msra.mxu0 0
        %2698 = vmatpush.bf16.msra.mxu0 0
        %2699 = vmatpush.bf16.msra.mxu0 0
        %2700 = vmatpush.bf16.msra.mxu0 %v2688
        %2701 = vmatmul.bf16.gmra.mxu0 %v2691
        %v2702 = vpop.f32.mrf.mxu0
        %v2703 = vadd.f32 0.0, %v2702
        %v2704 = vpop.f32.mrf.mxu0
        %v2705 = vadd.f32 0.0, %v2704
        %2706 = vdwg.mxu0
        %v2709 = vunpack.c.l.b16 %v2680
        %v2710 = vunpack.c.l.b16 %v2681
        %v2711 = vpack.c.b16 %v2710, %v2709
        %2712 = vrot.lane.b32.xlu0 %v1392, 32
        %v2713 = vpop.permute.xlu0 %2712
        %v2716 = vsel %vm1200, %v2711, 0
        %2718 = vmatpush.bf16.msra.mxu0 0
        %2719 = vmatpush.bf16.msra.mxu0 0
        %2720 = vmatpush.bf16.msra.mxu0 0
        %2721 = vmatpush.bf16.msra.mxu0 0
        %2722 = vmatpush.bf16.msra.mxu0 0
        %2723 = vmatpush.bf16.msra.mxu0 0
        %2724 = vmatpush.bf16.msra.mxu0 0
        %2725 = vmatpush.bf16.msra.mxu0 %v2713
        %2726 = vmatmul.bf16.gmra.mxu0 %v2716
        %v2727 = vpop.f32.mrf.mxu0
        %v2728 = vadd.f32 0.0, %v2727
        %v2729 = vpop.f32.mrf.mxu0
        %v2730 = vadd.f32 0.0, %v2729
        %2731 = vdwg.mxu0
        %2736 = vrot.lane.b32.xlu0 %v2703, 96
        %v2737 = vpop.permute.xlu0 %2736
        %2738 = vrot.lane.b32.xlu0 %v2705, 96
        %v2739 = vpop.permute.xlu0 %2738
        %2740 = vrot.lane.b32.xlu0 %v2728, 96
        %v2741 = vpop.permute.xlu0 %2740
        %2742 = vrot.lane.b32.xlu0 %v2730, 96
        %v2743 = vpop.permute.xlu0 %2742
        %vm2748 = vcmask 917248
        %2749 = vst.msk [vmem:[#allocation3] sm:$0xff] %vm2748, %v2737
        %2750 = vst.msk [vmem:[#allocation3 + $0x8] sm:$0xff] %vm2748, %v2739
        %2751 = vst.msk [vmem:[#allocation3 + $0x10] sm:$0xff] %vm2748, %v2741
        %2752 = vst.msk [vmem:[#allocation3 + $0x18] sm:$0xff] %vm2748, %v2743
        %2753 = vrot.lane.b32.xlu0 %v1194, 16
        %v2754 = vpop.permute.xlu0 %2753
        %2755 = vrot.lane.b32.xlu0 %v1199, 16
        %v2756 = vpop.permute.xlu0 %2755
        %v2758 = vsel %vm1200, %v2754, 0
        %v2761 = vsel %vm1200, %v2756, 0
        %2763 = vmatpush.bf16.xpose.msra.mxu0 0
        %2764 = vmatpush.bf16.xpose.msra.mxu0 0
        %2765 = vmatpush.bf16.xpose.msra.mxu0 0
        %2766 = vmatpush.bf16.xpose.msra.mxu0 0
        %2767 = vmatpush.bf16.xpose.msra.mxu0 0
        %2768 = vmatpush.bf16.xpose.msra.mxu0 0
        %2769 = vmatpush.bf16.xpose.msra.mxu0 0
        %2770 = vmatpush.bf16.xpose.msra.mxu0 %v2761
        %2771 = vmatmul.bf16.gmra.mxu0 %v2758
        %v2772 = vpop.f32.mrf.mxu0
        %v2773 = vadd.f32 0.0, %v2772
        %v2774 = vpop.f32.mrf.mxu0
        %v2775 = vadd.f32 0.0, %v2774
        %2776 = vdwg.mxu0
        %2777 = vrot.lane.b32.xlu0 %v1225, 16
        %v2778 = vpop.permute.xlu0 %2777
        %2779 = vrot.lane.b32.xlu0 %v1230, 16
        %v2780 = vpop.permute.xlu0 %2779
        %v2782 = vsel %vm1200, %v2778, 0
        %v2785 = vsel %vm1200, %v2780, 0
        %2787 = vmatpush.bf16.xpose.msra.mxu0 0
        %2788 = vmatpush.bf16.xpose.msra.mxu0 0
        %2789 = vmatpush.bf16.xpose.msra.mxu0 0
        %2790 = vmatpush.bf16.xpose.msra.mxu0 0
        %2791 = vmatpush.bf16.xpose.msra.mxu0 0
        %2792 = vmatpush.bf16.xpose.msra.mxu0 0
        %2793 = vmatpush.bf16.xpose.msra.mxu0 0
        %2794 = vmatpush.bf16.xpose.msra.mxu0 %v2785
        %2795 = vmatmul.bf16.gmra.mxu0 %v2782
        %v2796 = vpop.f32.mrf.mxu0
        %v2797 = vadd.f32 0.0, %v2796
        %v2798 = vpop.f32.mrf.mxu0
        %v2799 = vadd.f32 0.0, %v2798
        %2800 = vdwg.mxu0
        %v2801 = vsel %vm1200, %v2773, -inf
        %2802 = vmax.xlane.f32.xlu0 %v2801
        %v2803 = vpop.xlane.xlu0 %2802
        %v2804 = vsel %vm1200, %v2775, -inf
        %2805 = vmax.xlane.f32.xlu0 %v2804
        %v2806 = vpop.xlane.xlu0 %2805
        %v2807 = vsel %vm1200, %v2797, -inf
        %2808 = vmax.xlane.f32.xlu0 %v2807
        %v2809 = vpop.xlane.xlu0 %2808
        %v2810 = vsel %vm1200, %v2799, -inf
        %2811 = vmax.xlane.f32.xlu0 %v2810
        %v2812 = vpop.xlane.xlu0 %2811
        %v2813 = vsub.f32 %v2773, %v2803
        %v2814 = vsub.f32 %v2775, %v2806
        %v2815 = vsub.f32 %v2797, %v2809
        %v2816 = vsub.f32 %v2799, %v2812
        %v2817 = vmul.f32 %v2813, 1.442695
        %v2818 = vpow.pop %v2817
        %v2819 = vmul.f32 %v2814, 1.442695
        %v2820 = vpow.pop %v2819
        %v2821 = vmul.f32 %v2815, 1.442695
        %v2822 = vpow.pop %v2821
        %v2823 = vmul.f32 %v2816, 1.442695
        %v2824 = vpow.pop %v2823
        %v2825 = vsel %vm1200, %v2818, 0.0
        %2826 = vadd.xlane.f32.xlu0 %v2825
        %v2827 = vpop.xlane.xlu0 %2826
        %v2828 = vsel %vm1200, %v2820, 0.0
        %2829 = vadd.xlane.f32.xlu0 %v2828
        %v2830 = vpop.xlane.xlu0 %2829
        %v2831 = vsel %vm1200, %v2822, 0.0
        %2832 = vadd.xlane.f32.xlu0 %v2831
        %v2833 = vpop.xlane.xlu0 %2832
        %v2834 = vsel %vm1200, %v2824, 0.0
        %2835 = vadd.xlane.f32.xlu0 %v2834
        %v2836 = vpop.xlane.xlu0 %2835
        %v2837 = vrcp.pop %v2827
        %v2838 = vmul.f32 %v2827, %v2837
        %v2839 = vsub.f32 1.0, %v2838
        %v2840 = vmul.f32 %v2837, %v2839
        %v2841 = vadd.f32 %v2837, %v2840
        %vm2842 = vweird.f32 %v2827
        %vm2843 = vweird.f32 %v2837
        %vm2844 = vmor %vm2842, %vm2843
        %v2845 = vsel %vm2844, %v2837, %v2841
        %v2846 = vand.u32 2147483647, %v2827
        %vm2847 = vcmp.eq.f32.partialorder %v2846, 8.507059e+37
        %v2848 = vand.u32 %v2827, 2147483648
        %v2849 = vor.u32 1.1754944e-38, %v2848
        %v2850 = vsel %vm2847, %v2849, %v2845
        %v2851 = vmul.f32 1.0, %v2850
        %v2852 = vrcp.pop %v2830
        %v2853 = vmul.f32 %v2830, %v2852
        %v2854 = vsub.f32 1.0, %v2853
        %v2855 = vmul.f32 %v2852, %v2854
        %v2856 = vadd.f32 %v2852, %v2855
        %vm2857 = vweird.f32 %v2830
        %vm2858 = vweird.f32 %v2852
        %vm2859 = vmor %vm2857, %vm2858
        %v2860 = vsel %vm2859, %v2852, %v2856
        %v2861 = vand.u32 2147483647, %v2830
        %vm2862 = vcmp.eq.f32.partialorder %v2861, 8.507059e+37
        %v2863 = vand.u32 %v2830, 2147483648
        %v2864 = vor.u32 1.1754944e-38, %v2863
        %v2865 = vsel %vm2862, %v2864, %v2860
        %v2866 = vmul.f32 1.0, %v2865
        %v2867 = vrcp.pop %v2833
        %v2868 = vmul.f32 %v2833, %v2867
        %v2869 = vsub.f32 1.0, %v2868
        %v2870 = vmul.f32 %v2867, %v2869
        %v2871 = vadd.f32 %v2867, %v2870
        %vm2872 = vweird.f32 %v2833
        %vm2873 = vweird.f32 %v2867
        %vm2874 = vmor %vm2872, %vm2873
        %v2875 = vsel %vm2874, %v2867, %v2871
        %v2876 = vand.u32 2147483647, %v2833
        %vm2877 = vcmp.eq.f32.partialorder %v2876, 8.507059e+37
        %v2878 = vand.u32 %v2833, 2147483648
        %v2879 = vor.u32 1.1754944e-38, %v2878
        %v2880 = vsel %vm2877, %v2879, %v2875
        %v2881 = vmul.f32 1.0, %v2880
        %v2882 = vrcp.pop %v2836
        %v2883 = vmul.f32 %v2836, %v2882
        %v2884 = vsub.f32 1.0, %v2883
        %v2885 = vmul.f32 %v2882, %v2884
        %v2886 = vadd.f32 %v2882, %v2885
        %vm2887 = vweird.f32 %v2836
        %vm2888 = vweird.f32 %v2882
        %vm2889 = vmor %vm2887, %vm2888
        %v2890 = vsel %vm2889, %v2882, %v2886
        %v2891 = vand.u32 2147483647, %v2836
        %vm2892 = vcmp.eq.f32.partialorder %v2891, 8.507059e+37
        %v2893 = vand.u32 %v2836, 2147483648
        %v2894 = vor.u32 1.1754944e-38, %v2893
        %v2895 = vsel %vm2892, %v2894, %v2890
        %v2896 = vmul.f32 1.0, %v2895
        %v2897 = vmul.f32 %v2818, %v2851
        %v2898 = vmul.f32 %v2820, %v2866
        %v2899 = vmul.f32 %v2822, %v2881
        %v2900 = vmul.f32 %v2824, %v2896
        %v2901 = vpack.c.bf16 %v2897, %v2897
        %v2902 = vpack.c.bf16 %v2898, %v2898
        %v2903 = vpack.c.bf16 %v2899, %v2899
        %v2904 = vpack.c.bf16 %v2900, %v2900
        %v2907 = vunpack.c.l.b16 %v2901
        %v2908 = vunpack.c.l.b16 %v2902
        %v2909 = vpack.c.b16 %v2908, %v2907
        %2910 = vrot.lane.b32.xlu0 %v1364, 16
        %v2911 = vpop.permute.xlu0 %2910
        %v2914 = vsel %vm1200, %v2909, 0
        %2916 = vmatpush.bf16.msra.mxu0 0
        %2917 = vmatpush.bf16.msra.mxu0 0
        %2918 = vmatpush.bf16.msra.mxu0 0
        %2919 = vmatpush.bf16.msra.mxu0 0
        %2920 = vmatpush.bf16.msra.mxu0 0
        %2921 = vmatpush.bf16.msra.mxu0 0
        %2922 = vmatpush.bf16.msra.mxu0 0
        %2923 = vmatpush.bf16.msra.mxu0 %v2911
        %2924 = vmatmul.bf16.gmra.mxu0 %v2914
        %v2925 = vpop.f32.mrf.mxu0
        %v2926 = vadd.f32 0.0, %v2925
        %v2927 = vpop.f32.mrf.mxu0
        %v2928 = vadd.f32 0.0, %v2927
        %2929 = vdwg.mxu0
        %v2932 = vunpack.c.l.b16 %v2903
        %v2933 = vunpack.c.l.b16 %v2904
        %v2934 = vpack.c.b16 %v2933, %v2932
        %2935 = vrot.lane.b32.xlu0 %v1392, 16
        %v2936 = vpop.permute.xlu0 %2935
        %v2939 = vsel %vm1200, %v2934, 0
        %2941 = vmatpush.bf16.msra.mxu0 0
        %2942 = vmatpush.bf16.msra.mxu0 0
        %2943 = vmatpush.bf16.msra.mxu0 0
        %2944 = vmatpush.bf16.msra.mxu0 0
        %2945 = vmatpush.bf16.msra.mxu0 0
        %2946 = vmatpush.bf16.msra.mxu0 0
        %2947 = vmatpush.bf16.msra.mxu0 0
        %2948 = vmatpush.bf16.msra.mxu0 %v2936
        %2949 = vmatmul.bf16.gmra.mxu0 %v2939
        %v2950 = vpop.f32.mrf.mxu0
        %v2951 = vadd.f32 0.0, %v2950
        %v2952 = vpop.f32.mrf.mxu0
        %v2953 = vadd.f32 0.0, %v2952
        %2954 = vdwg.mxu0
        %2959 = vrot.lane.b32.xlu0 %v2926, 112
        %v2960 = vpop.permute.xlu0 %2959
        %2961 = vrot.lane.b32.xlu0 %v2928, 112
        %v2962 = vpop.permute.xlu0 %2961
        %2963 = vrot.lane.b32.xlu0 %v2951, 112
        %v2964 = vpop.permute.xlu0 %2963
        %2965 = vrot.lane.b32.xlu0 %v2953, 112
        %v2966 = vpop.permute.xlu0 %2965
        %vm2971 = vcmask 1048448
        %2972 = vst.msk [vmem:[#allocation3] sm:$0xff] %vm2971, %v2960
        %2973 = vst.msk [vmem:[#allocation3 + $0x8] sm:$0xff] %vm2971, %v2962
        %2974 = vst.msk [vmem:[#allocation3 + $0x10] sm:$0xff] %vm2971, %v2964
        %2975 = vst.msk [vmem:[#allocation3 + $0x18] sm:$0xff] %vm2971, %v2966
        %v2976 = vld [vmem:[#allocation3] sm:$0xff]
        %v2977 = vld [vmem:[#allocation3 + $0x8] sm:$0xff]
        %v2978 = vld [vmem:[#allocation3 + $0x10] sm:$0xff]
        %v2979 = vld [vmem:[#allocation3 + $0x18] sm:$0xff]
        %v2980 = vpack.c.bf16 %v2977, %v2976
        %v2981 = vpack.c.bf16 %v2979, %v2978
        %v2982 = vld [vmem:[%s757] sm:$0xf]
        %v2983 = vld [vmem:[%s757 + $0x4] sm:$0xf]
        %v2984 = vld [vmem:[%s757 + $0x8] sm:$0xf]
        %v2985 = vld [vmem:[%s757 + $0xc] sm:$0xf]
        %v2986 = vld [vmem:[%s757 + $0x10] sm:$0xf]
        %v2987 = vld [vmem:[%s757 + $0x14] sm:$0xf]
        %v2988 = vld [vmem:[%s757 + $0x18] sm:$0xf]
        %v2989 = vld [vmem:[%s757 + $0x1c] sm:$0xf]
        %v2990 = vld [vmem:[%s757 + $0x20] sm:$0xf]
        %v2991 = vld [vmem:[%s757 + $0x24] sm:$0xf]
        %v2992 = vld [vmem:[%s757 + $0x28] sm:$0xf]
        %v2993 = vld [vmem:[%s757 + $0x2c] sm:$0xf]
        %v2994 = vld [vmem:[%s757 + $0x30] sm:$0xf]
        %v2995 = vld [vmem:[%s757 + $0x34] sm:$0xf]
        %v2996 = vld [vmem:[%s757 + $0x38] sm:$0xf]
        %v2997 = vld [vmem:[%s757 + $0x3c] sm:$0xf]
        %v2998 = vld [vmem:[%s766] sm:$0x1]
        %v3000 = vperm.slane %v2998, 0
        %v3018 = vunpack.c.l.b16 %v2982
        %v3019 = vunpack.c.l.b16 %v2983
        %v3020 = vunpack.c.l.b16 %v2984
        %v3021 = vunpack.c.l.b16 %v2985
        %v3022 = vunpack.c.l.b16 %v2986
        %v3023 = vunpack.c.l.b16 %v2987
        %v3024 = vunpack.c.l.b16 %v2988
        %v3025 = vunpack.c.l.b16 %v2989
        %v3026 = vunpack.c.l.b16 %v2990
        %v3027 = vunpack.c.l.b16 %v2991
        %v3028 = vunpack.c.l.b16 %v2992
        %v3029 = vunpack.c.l.b16 %v2993
        %v3030 = vunpack.c.l.b16 %v2994
        %v3031 = vunpack.c.l.b16 %v2995
        %v3032 = vunpack.c.l.b16 %v2996
        %v3033 = vunpack.c.l.b16 %v2997
        %v3034 = vpack.c.b16 %v3019, %v3018
        %v3035 = vpack.c.b16 %v3021, %v3020
        %v3036 = vpack.c.b16 %v3023, %v3022
        %v3037 = vpack.c.b16 %v3025, %v3024
        %v3038 = vpack.c.b16 %v3027, %v3026
        %v3039 = vpack.c.b16 %v3029, %v3028
        %v3040 = vpack.c.b16 %v3031, %v3030
        %v3041 = vpack.c.b16 %v3033, %v3032
        %3050 = vmatpush.bf16.msra.mxu0 %v3041
        %3051 = vmatpush.bf16.msra.mxu0 %v3040
        %3052 = vmatpush.bf16.msra.mxu0 %v3039
        %3053 = vmatpush.bf16.msra.mxu0 %v3038
        %3054 = vmatpush.bf16.msra.mxu0 %v3037
        %3055 = vmatpush.bf16.msra.mxu0 %v3036
        %3056 = vmatpush.bf16.msra.mxu0 %v3035
        %3057 = vmatpush.bf16.msra.mxu0 %v3034
        %3058 = vmatmul.bf16.gmra.mxu0 %v2980
        %v3059 = vpop.f32.mrf.mxu0
        %v3060 = vadd.f32 %v3000, %v3059
        %v3061 = vpop.f32.mrf.mxu0
        %v3062 = vadd.f32 %v3000, %v3061
        %3063 = vmatmul.bf16.gmra.mxu0 %v2981
        %v3064 = vpop.f32.mrf.mxu0
        %v3065 = vadd.f32 %v3000, %v3064
        %v3066 = vpop.f32.mrf.mxu0
        %v3067 = vadd.f32 %v3000, %v3066
        %3068 = vdwg.mxu0
        %v3069 = vadd.f32 %v947, %v3060
        %v3070 = vadd.f32 %v948, %v3062
        %v3071 = vadd.f32 %v949, %v3065
        %v3072 = vadd.f32 %v950, %v3067
        %v3073 = vld [vmem:[%s775] sm:$0x1]
        %v3074 = vld [vmem:[%s784] sm:$0x1]
        %3075 = vadd.xlane.f32.xlu0 %v3069
        %v3076 = vpop.xlane.xlu0 %3075
        %3077 = vadd.xlane.f32.xlu0 %v3070
        %v3078 = vpop.xlane.xlu0 %3077
        %3079 = vadd.xlane.f32.xlu0 %v3071
        %v3080 = vpop.xlane.xlu0 %3079
        %3081 = vadd.xlane.f32.xlu0 %v3072
        %v3082 = vpop.xlane.xlu0 %3081
        %v3083 = vrcp.pop 128.0
        %v3084 = vmul.f32 128.0, %v3083
        %v3085 = vsub.f32 1.0, %v3084
        %v3086 = vmul.f32 %v3083, %v3085
        %v3087 = vadd.f32 %v3083, %v3086
        %vm3088 = vweird.f32 %v3083
        %v3089 = vsel %vm3088, %v3083, %v3087
        %v3090 = vmul.f32 %v3076, %v3089
        %v3091 = vmul.f32 %v3078, %v3089
        %v3092 = vmul.f32 %v3080, %v3089
        %v3093 = vmul.f32 %v3082, %v3089
        %v3094 = vsub.f32 %v3069, %v3090
        %v3095 = vsub.f32 %v3070, %v3091
        %v3096 = vsub.f32 %v3071, %v3092
        %v3097 = vsub.f32 %v3072, %v3093
        %v3098 = vmul.f32 %v3094, %v3094
        %v3099 = vmul.f32 %v3095, %v3095
        %v3100 = vmul.f32 %v3096, %v3096
        %v3101 = vmul.f32 %v3097, %v3097
        %3102 = vadd.xlane.f32.xlu0 %v3098
        %v3103 = vpop.xlane.xlu0 %3102
        %3104 = vadd.xlane.f32.xlu0 %v3099
        %v3105 = vpop.xlane.xlu0 %3104
        %3106 = vadd.xlane.f32.xlu0 %v3100
        %v3107 = vpop.xlane.xlu0 %3106
        %3108 = vadd.xlane.f32.xlu0 %v3101
        %v3109 = vpop.xlane.xlu0 %3108
        %v3110 = vmul.f32 %v3103, %v3089
        %v3111 = vmul.f32 %v3105, %v3089
        %v3112 = vmul.f32 %v3107, %v3089
        %v3113 = vmul.f32 %v3109, %v3089
        %v3114 = vadd.f32 %v3110, 1e-05
        %v3115 = vadd.f32 %v3111, 1e-05
        %v3116 = vadd.f32 %v3112, 1e-05
        %v3117 = vadd.f32 %v3113, 1e-05
        %v3118 = vrsqrt.pop %v3114
        %v3119 = vmul.f32 %v3118, %v3114
        %v3120 = vmul.f32 %v3119, %v3118
        %v3121 = vmul.f32 0.5, %v3120
        %v3122 = vsub.f32 1.5, %v3121
        %v3123 = vmul.f32 %v3118, %v3122
        %vm3124 = vweird.f32 %v3114
        %vm3125 = vweird.f32 %v3118
        %vm3126 = vmor %vm3124, %vm3125
        %v3127 = vsel %vm3126, %v3118, %v3123
        %v3128 = vrsqrt.pop %v3115
        %v3129 = vmul.f32 %v3128, %v3115
        %v3130 = vmul.f32 %v3129, %v3128
        %v3131 = vmul.f32 0.5, %v3130
        %v3132 = vsub.f32 1.5, %v3131
        %v3133 = vmul.f32 %v3128, %v3132
        %vm3134 = vweird.f32 %v3115
        %vm3135 = vweird.f32 %v3128
        %vm3136 = vmor %vm3134, %vm3135
        %v3137 = vsel %vm3136, %v3128, %v3133
        %v3138 = vrsqrt.pop %v3116
        %v3139 = vmul.f32 %v3138, %v3116
        %v3140 = vmul.f32 %v3139, %v3138
        %v3141 = vmul.f32 0.5, %v3140
        %v3142 = vsub.f32 1.5, %v3141
        %v3143 = vmul.f32 %v3138, %v3142
        %vm3144 = vweird.f32 %v3116
        %vm3145 = vweird.f32 %v3138
        %vm3146 = vmor %vm3144, %vm3145
        %v3147 = vsel %vm3146, %v3138, %v3143
        %v3148 = vrsqrt.pop %v3117
        %v3149 = vmul.f32 %v3148, %v3117
        %v3150 = vmul.f32 %v3149, %v3148
        %v3151 = vmul.f32 0.5, %v3150
        %v3152 = vsub.f32 1.5, %v3151
        %v3153 = vmul.f32 %v3148, %v3152
        %vm3154 = vweird.f32 %v3117
        %vm3155 = vweird.f32 %v3148
        %vm3156 = vmor %vm3154, %vm3155
        %v3157 = vsel %vm3156, %v3148, %v3153
        %v3158 = vmul.f32 %v3094, %v3127
        %v3159 = vmul.f32 %v3095, %v3137
        %v3160 = vmul.f32 %v3096, %v3147
        %v3161 = vmul.f32 %v3097, %v3157
        %v3163 = vperm.slane %v3073, 0
        %v3165 = vmul.f32 %v3158, %v3163
        %v3166 = vmul.f32 %v3159, %v3163
        %v3167 = vmul.f32 %v3160, %v3163
        %v3168 = vmul.f32 %v3161, %v3163
        %v3170 = vperm.slane %v3074, 0
        %v3172 = vadd.f32 %v3165, %v3170
        %v3173 = vadd.f32 %v3166, %v3170
        %v3174 = vadd.f32 %v3167, %v3170
        %v3175 = vadd.f32 %v3168, %v3170
        %v3176 = vpack.c.bf16 %v3173, %v3172
        %v3177 = vpack.c.bf16 %v3175, %v3174
        %v3178 = vld [vmem:[%s794] sm:$0xff]
        %v3179 = vld [vmem:[%s794 + $0x8] sm:$0xff]
        %v3180 = vld [vmem:[%s794 + $0x10] sm:$0xff]
        %v3181 = vld [vmem:[%s794 + $0x18] sm:$0xff]
        %v3182 = vld [vmem:[%s794 + $0x20] sm:$0xff]
        %v3183 = vld [vmem:[%s794 + $0x28] sm:$0xff]
        %v3184 = vld [vmem:[%s794 + $0x30] sm:$0xff]
        %v3185 = vld [vmem:[%s794 + $0x38] sm:$0xff]
        %v3186 = vld [vmem:[%s794 + $0x40] sm:$0xff]
        %v3187 = vld [vmem:[%s794 + $0x48] sm:$0xff]
        %v3188 = vld [vmem:[%s794 + $0x50] sm:$0xff]
        %v3189 = vld [vmem:[%s794 + $0x58] sm:$0xff]
        %v3190 = vld [vmem:[%s794 + $0x60] sm:$0xff]
        %v3191 = vld [vmem:[%s794 + $0x68] sm:$0xff]
        %v3192 = vld [vmem:[%s794 + $0x70] sm:$0xff]
        %v3193 = vld [vmem:[%s794 + $0x78] sm:$0xff]
        %v3194 = vld [vmem:[%s804] sm:$0x3]
        %v3196 = vperm.slane %v3194, 0
        %v3197 = vperm.slane %v3194, 1
        %v3216 = vunpack.c.l.b16 %v3178
        %v3217 = vunpack.c.h.b16 %v3178
        %v3218 = vunpack.c.l.b16 %v3179
        %v3219 = vunpack.c.h.b16 %v3179
        %v3220 = vunpack.c.l.b16 %v3180
        %v3221 = vunpack.c.h.b16 %v3180
        %v3222 = vunpack.c.l.b16 %v3181
        %v3223 = vunpack.c.h.b16 %v3181
        %v3224 = vunpack.c.l.b16 %v3182
        %v3225 = vunpack.c.h.b16 %v3182
        %v3226 = vunpack.c.l.b16 %v3183
        %v3227 = vunpack.c.h.b16 %v3183
        %v3228 = vunpack.c.l.b16 %v3184
        %v3229 = vunpack.c.h.b16 %v3184
        %v3230 = vunpack.c.l.b16 %v3185
        %v3231 = vunpack.c.h.b16 %v3185
        %v3232 = vunpack.c.l.b16 %v3186
        %v3233 = vunpack.c.h.b16 %v3186
        %v3234 = vunpack.c.l.b16 %v3187
        %v3235 = vunpack.c.h.b16 %v3187
        %v3236 = vunpack.c.l.b16 %v3188
        %v3237 = vunpack.c.h.b16 %v3188
        %v3238 = vunpack.c.l.b16 %v3189
        %v3239 = vunpack.c.h.b16 %v3189
        %v3240 = vunpack.c.l.b16 %v3190
        %v3241 = vunpack.c.h.b16 %v3190
        %v3242 = vunpack.c.l.b16 %v3191
        %v3243 = vunpack.c.h.b16 %v3191
        %v3244 = vunpack.c.l.b16 %v3192
        %v3245 = vunpack.c.h.b16 %v3192
        %v3246 = vunpack.c.l.b16 %v3193
        %v3247 = vunpack.c.h.b16 %v3193
        %v3248 = vpack.c.b16 %v3218, %v3216
        %v3249 = vpack.c.b16 %v3219, %v3217
        %v3250 = vpack.c.b16 %v3222, %v3220
        %v3251 = vpack.c.b16 %v3223, %v3221
        %v3252 = vpack.c.b16 %v3226, %v3224
        %v3253 = vpack.c.b16 %v3227, %v3225
        %v3254 = vpack.c.b16 %v3230, %v3228
        %v3255 = vpack.c.b16 %v3231, %v3229
        %v3256 = vpack.c.b16 %v3234, %v3232
        %v3257 = vpack.c.b16 %v3235, %v3233
        %v3258 = vpack.c.b16 %v3238, %v3236
        %v3259 = vpack.c.b16 %v3239, %v3237
        %v3260 = vpack.c.b16 %v3242, %v3240
        %v3261 = vpack.c.b16 %v3243, %v3241
        %v3262 = vpack.c.b16 %v3246, %v3244
        %v3263 = vpack.c.b16 %v3247, %v3245
        %3280 = vmatpush.bf16.msra.mxu0 %v3262
        %3281 = vmatpush.bf16.msra.mxu0 %v3260
        %3282 = vmatpush.bf16.msra.mxu0 %v3258
        %3283 = vmatpush.bf16.msra.mxu0 %v3256
        %3284 = vmatpush.bf16.msra.mxu0 %v3254
        %3285 = vmatpush.bf16.msra.mxu0 %v3252
        %3286 = vmatpush.bf16.msra.mxu0 %v3250
        %3287 = vmatpush.bf16.msra.mxu0 %v3248
        %3288 = vmatmul.bf16.gmra.mxu0 %v3176
        %v3289 = vpop.f32.mrf.mxu0
        %v3290 = vadd.f32 %v3196, %v3289
        %v3291 = vpop.f32.mrf.mxu0
        %v3292 = vadd.f32 %v3196, %v3291
        %3293 = vmatmul.bf16.gmra.mxu0 %v3177
        %v3294 = vpop.f32.mrf.mxu0
        %v3295 = vadd.f32 %v3196, %v3294
        %v3296 = vpop.f32.mrf.mxu0
        %v3297 = vadd.f32 %v3196, %v3296
        %3298 = vdwg.mxu0
        %3299 = vmatpush.bf16.msra.mxu0 %v3263
        %3300 = vmatpush.bf16.msra.mxu0 %v3261
        %3301 = vmatpush.bf16.msra.mxu0 %v3259
        %3302 = vmatpush.bf16.msra.mxu0 %v3257
        %3303 = vmatpush.bf16.msra.mxu0 %v3255
        %3304 = vmatpush.bf16.msra.mxu0 %v3253
        %3305 = vmatpush.bf16.msra.mxu0 %v3251
        %3306 = vmatpush.bf16.msra.mxu0 %v3249
        %3307 = vmatmul.bf16.gmra.mxu0 %v3176
        %v3308 = vpop.f32.mrf.mxu0
        %v3309 = vadd.f32 %v3197, %v3308
        %v3310 = vpop.f32.mrf.mxu0
        %v3311 = vadd.f32 %v3197, %v3310
        %3312 = vmatmul.bf16.gmra.mxu0 %v3177
        %v3313 = vpop.f32.mrf.mxu0
        %v3314 = vadd.f32 %v3197, %v3313
        %v3315 = vpop.f32.mrf.mxu0
        %v3316 = vadd.f32 %v3197, %v3315
        %3317 = vdwg.mxu0
        %v3318 = vmax.f32 %v3290, 0.0
        %v3319 = vmax.f32 %v3309, 0.0
        %v3320 = vmax.f32 %v3292, 0.0
        %v3321 = vmax.f32 %v3311, 0.0
        %v3322 = vmax.f32 %v3295, 0.0
        %v3323 = vmax.f32 %v3314, 0.0
        %v3324 = vmax.f32 %v3297, 0.0
        %v3325 = vmax.f32 %v3316, 0.0
        %v3326 = vpack.c.bf16 %v3320, %v3318
        %v3327 = vpack.c.bf16 %v3321, %v3319
        %v3328 = vpack.c.bf16 %v3324, %v3322
        %v3329 = vpack.c.bf16 %v3325, %v3323
        %v3330 = vld [vmem:[%s814] sm:$0xf]
        %v3331 = vld [vmem:[%s814 + $0x4] sm:$0xf]
        %v3332 = vld [vmem:[%s814 + $0x8] sm:$0xf]
        %v3333 = vld [vmem:[%s814 + $0xc] sm:$0xf]
        %v3334 = vld [vmem:[%s814 + $0x10] sm:$0xf]
        %v3335 = vld [vmem:[%s814 + $0x14] sm:$0xf]
        %v3336 = vld [vmem:[%s814 + $0x18] sm:$0xf]
        %v3337 = vld [vmem:[%s814 + $0x1c] sm:$0xf]
        %v3338 = vld [vmem:[%s814 + $0x20] sm:$0xf]
        %v3339 = vld [vmem:[%s814 + $0x24] sm:$0xf]
        %v3340 = vld [vmem:[%s814 + $0x28] sm:$0xf]
        %v3341 = vld [vmem:[%s814 + $0x2c] sm:$0xf]
        %v3342 = vld [vmem:[%s814 + $0x30] sm:$0xf]
        %v3343 = vld [vmem:[%s814 + $0x34] sm:$0xf]
        %v3344 = vld [vmem:[%s814 + $0x38] sm:$0xf]
        %v3345 = vld [vmem:[%s814 + $0x3c] sm:$0xf]
        %v3346 = vld [vmem:[%s814 + $0x40] sm:$0xf]
        %v3347 = vld [vmem:[%s814 + $0x44] sm:$0xf]
        %v3348 = vld [vmem:[%s814 + $0x48] sm:$0xf]
        %v3349 = vld [vmem:[%s814 + $0x4c] sm:$0xf]
        %v3350 = vld [vmem:[%s814 + $0x50] sm:$0xf]
        %v3351 = vld [vmem:[%s814 + $0x54] sm:$0xf]
        %v3352 = vld [vmem:[%s814 + $0x58] sm:$0xf]
        %v3353 = vld [vmem:[%s814 + $0x5c] sm:$0xf]
        %v3354 = vld [vmem:[%s814 + $0x60] sm:$0xf]
        %v3355 = vld [vmem:[%s814 + $0x64] sm:$0xf]
        %v3356 = vld [vmem:[%s814 + $0x68] sm:$0xf]
        %v3357 = vld [vmem:[%s814 + $0x6c] sm:$0xf]
        %v3358 = vld [vmem:[%s814 + $0x70] sm:$0xf]
        %v3359 = vld [vmem:[%s814 + $0x74] sm:$0xf]
        %v3360 = vld [vmem:[%s814 + $0x78] sm:$0xf]
        %v3361 = vld [vmem:[%s814 + $0x7c] sm:$0xf]
        %v3362 = vld [vmem:[%s823] sm:$0x1]
        %v3364 = vperm.slane %v3362, 0
        %v3398 = vunpack.c.l.b16 %v3330
        %v3399 = vunpack.c.l.b16 %v3331
        %v3400 = vunpack.c.l.b16 %v3332
        %v3401 = vunpack.c.l.b16 %v3333
        %v3402 = vunpack.c.l.b16 %v3334
        %v3403 = vunpack.c.l.b16 %v3335
        %v3404 = vunpack.c.l.b16 %v3336
        %v3405 = vunpack.c.l.b16 %v3337
        %v3406 = vunpack.c.l.b16 %v3338
        %v3407 = vunpack.c.l.b16 %v3339
        %v3408 = vunpack.c.l.b16 %v3340
        %v3409 = vunpack.c.l.b16 %v3341
        %v3410 = vunpack.c.l.b16 %v3342
        %v3411 = vunpack.c.l.b16 %v3343
        %v3412 = vunpack.c.l.b16 %v3344
        %v3413 = vunpack.c.l.b16 %v3345
        %v3414 = vunpack.c.l.b16 %v3346
        %v3415 = vunpack.c.l.b16 %v3347
        %v3416 = vunpack.c.l.b16 %v3348
        %v3417 = vunpack.c.l.b16 %v3349
        %v3418 = vunpack.c.l.b16 %v3350
        %v3419 = vunpack.c.l.b16 %v3351
        %v3420 = vunpack.c.l.b16 %v3352
        %v3421 = vunpack.c.l.b16 %v3353
        %v3422 = vunpack.c.l.b16 %v3354
        %v3423 = vunpack.c.l.b16 %v3355
        %v3424 = vunpack.c.l.b16 %v3356
        %v3425 = vunpack.c.l.b16 %v3357
        %v3426 = vunpack.c.l.b16 %v3358
        %v3427 = vunpack.c.l.b16 %v3359
        %v3428 = vunpack.c.l.b16 %v3360
        %v3429 = vunpack.c.l.b16 %v3361
        %v3430 = vpack.c.b16 %v3399, %v3398
        %v3431 = vpack.c.b16 %v3401, %v3400
        %v3432 = vpack.c.b16 %v3403, %v3402
        %v3433 = vpack.c.b16 %v3405, %v3404
        %v3434 = vpack.c.b16 %v3407, %v3406
        %v3435 = vpack.c.b16 %v3409, %v3408
        %v3436 = vpack.c.b16 %v3411, %v3410
        %v3437 = vpack.c.b16 %v3413, %v3412
        %v3438 = vpack.c.b16 %v3415, %v3414
        %v3439 = vpack.c.b16 %v3417, %v3416
        %v3440 = vpack.c.b16 %v3419, %v3418
        %v3441 = vpack.c.b16 %v3421, %v3420
        %v3442 = vpack.c.b16 %v3423, %v3422
        %v3443 = vpack.c.b16 %v3425, %v3424
        %v3444 = vpack.c.b16 %v3427, %v3426
        %v3445 = vpack.c.b16 %v3429, %v3428
        %3462 = vmatpush.bf16.msra.mxu0 %v3437
        %3463 = vmatpush.bf16.msra.mxu0 %v3436
        %3464 = vmatpush.bf16.msra.mxu0 %v3435
        %3465 = vmatpush.bf16.msra.mxu0 %v3434
        %3466 = vmatpush.bf16.msra.mxu0 %v3433
        %3467 = vmatpush.bf16.msra.mxu0 %v3432
        %3468 = vmatpush.bf16.msra.mxu0 %v3431
        %3469 = vmatpush.bf16.msra.mxu0 %v3430
        %3470 = vmatmul.bf16.gmra.mxu0 %v3326
        %v3471 = vpop.f32.mrf.mxu0
        %v3472 = vadd.f32 %v3364, %v3471
        %v3473 = vpop.f32.mrf.mxu0
        %v3474 = vadd.f32 %v3364, %v3473
        %3475 = vmatmul.bf16.gmra.mxu0 %v3328
        %v3476 = vpop.f32.mrf.mxu0
        %v3477 = vadd.f32 %v3364, %v3476
        %v3478 = vpop.f32.mrf.mxu0
        %v3479 = vadd.f32 %v3364, %v3478
        %3480 = vdwg.mxu0
        %3481 = vmatpush.bf16.msra.mxu0 %v3445
        %3482 = vmatpush.bf16.msra.mxu0 %v3444
        %3483 = vmatpush.bf16.msra.mxu0 %v3443
        %3484 = vmatpush.bf16.msra.mxu0 %v3442
        %3485 = vmatpush.bf16.msra.mxu0 %v3441
        %3486 = vmatpush.bf16.msra.mxu0 %v3440
        %3487 = vmatpush.bf16.msra.mxu0 %v3439
        %3488 = vmatpush.bf16.msra.mxu0 %v3438
        %3489 = vmatmul.bf16.gmra.mxu0 %v3327
        %v3490 = vpop.f32.mrf.mxu0
        %v3491 = vadd.f32 %v3472, %v3490
        %v3492 = vpop.f32.mrf.mxu0
        %v3493 = vadd.f32 %v3474, %v3492
        %3494 = vmatmul.bf16.gmra.mxu0 %v3329
        %v3495 = vpop.f32.mrf.mxu0
        %v3496 = vadd.f32 %v3477, %v3495
        %v3497 = vpop.f32.mrf.mxu0
        %v3498 = vadd.f32 %v3479, %v3497
        %3499 = vdwg.mxu0
        %v3500 = vadd.f32 %v3172, %v3491
        %v3501 = vadd.f32 %v3173, %v3493
        %v3502 = vadd.f32 %v3174, %v3496
        %v3503 = vadd.f32 %v3175, %v3498
        %v3504 = vld [vmem:[%s832] sm:$0x1]
        %v3505 = vld [vmem:[%s841] sm:$0x1]
        %3506 = vadd.xlane.f32.xlu0 %v3500
        %v3507 = vpop.xlane.xlu0 %3506
        %3508 = vadd.xlane.f32.xlu0 %v3501
        %v3509 = vpop.xlane.xlu0 %3508
        %3510 = vadd.xlane.f32.xlu0 %v3502
        %v3511 = vpop.xlane.xlu0 %3510
        %3512 = vadd.xlane.f32.xlu0 %v3503
        %v3513 = vpop.xlane.xlu0 %3512
        %v3514 = vmul.f32 %v3507, %v3089
        %v3515 = vmul.f32 %v3509, %v3089
        %v3516 = vmul.f32 %v3511, %v3089
        %v3517 = vmul.f32 %v3513, %v3089
        %v3518 = vsub.f32 %v3500, %v3514
        %v3519 = vsub.f32 %v3501, %v3515
        %v3520 = vsub.f32 %v3502, %v3516
        %v3521 = vsub.f32 %v3503, %v3517
        %v3522 = vmul.f32 %v3518, %v3518
        %v3523 = vmul.f32 %v3519, %v3519
        %v3524 = vmul.f32 %v3520, %v3520
        %v3525 = vmul.f32 %v3521, %v3521
        %3526 = vadd.xlane.f32.xlu0 %v3522
        %v3527 = vpop.xlane.xlu0 %3526
        %3528 = vadd.xlane.f32.xlu0 %v3523
        %v3529 = vpop.xlane.xlu0 %3528
        %3530 = vadd.xlane.f32.xlu0 %v3524
        %v3531 = vpop.xlane.xlu0 %3530
        %3532 = vadd.xlane.f32.xlu0 %v3525
        %v3533 = vpop.xlane.xlu0 %3532
        %v3534 = vmul.f32 %v3527, %v3089
        %v3535 = vmul.f32 %v3529, %v3089
        %v3536 = vmul.f32 %v3531, %v3089
        %v3537 = vmul.f32 %v3533, %v3089
        %v3538 = vadd.f32 %v3534, 1e-05
        %v3539 = vadd.f32 %v3535, 1e-05
        %v3540 = vadd.f32 %v3536, 1e-05
        %v3541 = vadd.f32 %v3537, 1e-05
        %v3542 = vrsqrt.pop %v3538
        %v3543 = vmul.f32 %v3542, %v3538
        %v3544 = vmul.f32 %v3543, %v3542
        %v3545 = vmul.f32 0.5, %v3544
        %v3546 = vsub.f32 1.5, %v3545
        %v3547 = vmul.f32 %v3542, %v3546
        %vm3548 = vweird.f32 %v3538
        %vm3549 = vweird.f32 %v3542
        %vm3550 = vmor %vm3548, %vm3549
        %v3551 = vsel %vm3550, %v3542, %v3547
        %v3552 = vrsqrt.pop %v3539
        %v3553 = vmul.f32 %v3552, %v3539
        %v3554 = vmul.f32 %v3553, %v3552
        %v3555 = vmul.f32 0.5, %v3554
        %v3556 = vsub.f32 1.5, %v3555
        %v3557 = vmul.f32 %v3552, %v3556
        %vm3558 = vweird.f32 %v3539
        %vm3559 = vweird.f32 %v3552
        %vm3560 = vmor %vm3558, %vm3559
        %v3561 = vsel %vm3560, %v3552, %v3557
        %v3562 = vrsqrt.pop %v3540
        %v3563 = vmul.f32 %v3562, %v3540
        %v3564 = vmul.f32 %v3563, %v3562
        %v3565 = vmul.f32 0.5, %v3564
        %v3566 = vsub.f32 1.5, %v3565
        %v3567 = vmul.f32 %v3562, %v3566
        %vm3568 = vweird.f32 %v3540
        %vm3569 = vweird.f32 %v3562
        %vm3570 = vmor %vm3568, %vm3569
        %v3571 = vsel %vm3570, %v3562, %v3567
        %v3572 = vrsqrt.pop %v3541
        %v3573 = vmul.f32 %v3572, %v3541
        %v3574 = vmul.f32 %v3573, %v3572
        %v3575 = vmul.f32 0.5, %v3574
        %v3576 = vsub.f32 1.5, %v3575
        %v3577 = vmul.f32 %v3572, %v3576
        %vm3578 = vweird.f32 %v3541
        %vm3579 = vweird.f32 %v3572
        %vm3580 = vmor %vm3578, %vm3579
        %v3581 = vsel %vm3580, %v3572, %v3577
        %v3582 = vmul.f32 %v3518, %v3551
        %v3583 = vmul.f32 %v3519, %v3561
        %v3584 = vmul.f32 %v3520, %v3571
        %v3585 = vmul.f32 %v3521, %v3581
        %v3587 = vperm.slane %v3504, 0
        %v3589 = vmul.f32 %v3582, %v3587
        %v3590 = vmul.f32 %v3583, %v3587
        %v3591 = vmul.f32 %v3584, %v3587
        %v3592 = vmul.f32 %v3585, %v3587
        %v3594 = vperm.slane %v3505, 0
        %v3596 = vadd.f32 %v3589, %v3594
        %v3597 = vadd.f32 %v3590, %v3594
        %v3598 = vadd.f32 %v3591, %v3594
        %v3599 = vadd.f32 %v3592, %v3594
        %3600 = vst [vmem:[#allocation2] sm:$0xff] %v3596
        %3601 = vst [vmem:[#allocation2 + $0x8] sm:$0xff] %v3597
        %3602 = vst [vmem:[#allocation2 + $0x10] sm:$0xff] %v3598
        %3603 = vst [vmem:[#allocation2 + $0x18] sm:$0xff] %v3599
        %p3604 = scmp.eq.s32.totalorder %s51, 5
        // Predicated region
        $region129: #{tpu_custom_call.1} parent=71 // pred_check
          %p3605 = pneg %p3604
        $region130: #{tpu_custom_call.1} parent=71 // pred_check_branch
          %3607 = sbr.rel (%p3605) target = $region132
        $region131: #{tpu_custom_call.1} parent=71 // pred_region
          %v3608 = vadd.f32 %v3596, %v3597
          %v3609 = vrot.slane %v3608, 4
          %v3610 = vadd.f32 %v3608, %v3609
          %v3611 = vrot.slane %v3610, 2
          %v3612 = vadd.f32 %v3610, %v3611
          %v3613 = vrot.slane %v3612, 1
          %v3614 = vadd.f32 %v3612, %v3613
          %v3615 = vadd.f32 %v3598, %v3599
          %v3616 = vrot.slane %v3615, 4
          %v3617 = vadd.f32 %v3615, %v3616
          %v3618 = vrot.slane %v3617, 2
          %v3619 = vadd.f32 %v3617, %v3618
          %v3620 = vrot.slane %v3619, 1
          %v3621 = vadd.f32 %v3619, %v3620
          %v3622 = vrcp.pop 16.0
          %v3623 = vmul.f32 16.0, %v3622
          %v3624 = vsub.f32 1.0, %v3623
          %v3625 = vmul.f32 %v3622, %v3624
          %v3626 = vadd.f32 %v3622, %v3625
          %vm3627 = vweird.f32 %v3622
          %v3628 = vsel %vm3627, %v3622, %v3626
          %v3629 = vmul.f32 %v3614, %v3628
          %v3630 = vmul.f32 %v3621, %v3628
          %v3631 = vsub.f32 %v3596, %v3629
          %v3632 = vsub.f32 %v3597, %v3629
          %v3633 = vsub.f32 %v3598, %v3630
          %v3634 = vsub.f32 %v3599, %v3630
          %v3635 = vmul.f32 %v3631, %v3631
          %v3636 = vmul.f32 %v3632, %v3632
          %v3637 = vmul.f32 %v3633, %v3633
          %v3638 = vmul.f32 %v3634, %v3634
          %v3639 = vadd.f32 %v3635, %v3636
          %v3640 = vrot.slane %v3639, 4
          %v3641 = vadd.f32 %v3639, %v3640
          %v3642 = vrot.slane %v3641, 2
          %v3643 = vadd.f32 %v3641, %v3642
          %v3644 = vrot.slane %v3643, 1
          %v3645 = vadd.f32 %v3643, %v3644
          %v3646 = vadd.f32 %v3637, %v3638
          %v3647 = vrot.slane %v3646, 4
          %v3648 = vadd.f32 %v3646, %v3647
          %v3649 = vrot.slane %v3648, 2
          %v3650 = vadd.f32 %v3648, %v3649
          %v3651 = vrot.slane %v3650, 1
          %v3652 = vadd.f32 %v3650, %v3651
          %v3653 = vrcp.pop 15.0
          %v3654 = vmul.f32 15.0, %v3653
          %v3655 = vsub.f32 1.0, %v3654
          %v3656 = vmul.f32 %v3653, %v3655
          %v3657 = vadd.f32 %v3653, %v3656
          %vm3658 = vweird.f32 %v3653
          %v3659 = vsel %vm3658, %v3653, %v3657
          %v3660 = vmul.f32 %v3645, %v3659
          %v3661 = vmul.f32 %v3652, %v3659
          %vm3664 = vcmask 1044484
          %v3665 = vsel %vm3664, %v3629, %v3629
          %vm3666 = vcmask 1046534
          %v3667 = vsel %vm3666, %v3629, %v3665
          %v3668 = vrot.slane %v3630, 7
          %vm3669 = vcmask 1041409
          %v3670 = vsel %vm3669, %v3668, %v3667
          %vm3671 = vcmask 1043459
          %v3672 = vsel %vm3671, %v3668, %v3670
          %vm3673 = vcmask 1045509
          %v3674 = vsel %vm3673, %v3668, %v3672
          %vm3675 = vcmask 1047559
          %v3676 = vsel %vm3675, %v3668, %v3674
          %3678 = vst [vmem:[%s933] sm:$0x3] %v3676
          %v3679 = vrsqrt.pop %v3660
          %v3680 = vmul.f32 %v3679, %v3660
          %v3681 = vmul.f32 %v3680, %v3679
          %v3682 = vmul.f32 0.5, %v3681
          %v3683 = vsub.f32 1.5, %v3682
          %v3684 = vmul.f32 %v3679, %v3683
          %v3685 = vmul.f32 %v3660, %v3684
          %vm3686 = vcmp.eq.f32.partialorder %v3660, inf
          %v3687 = vsel %vm3686, %v3660, %v3685
          %vm3688 = vcmp.eq.f32.partialorder %v3660, 0.0
          %v3689 = vand.u32 %v3660, 2147483648
          %v3690 = vsel %vm3688, %v3689, %v3687
          %v3691 = vrsqrt.pop %v3661
          %v3692 = vmul.f32 %v3691, %v3661
          %v3693 = vmul.f32 %v3692, %v3691
          %v3694 = vmul.f32 0.5, %v3693
          %v3695 = vsub.f32 1.5, %v3694
          %v3696 = vmul.f32 %v3691, %v3695
          %v3697 = vmul.f32 %v3661, %v3696
          %vm3698 = vcmp.eq.f32.partialorder %v3661, inf
          %v3699 = vsel %vm3698, %v3661, %v3697
          %vm3700 = vcmp.eq.f32.partialorder %v3661, 0.0
          %v3701 = vand.u32 %v3661, 2147483648
          %v3702 = vsel %vm3700, %v3701, %v3699
          %v3705 = vsel %vm3664, %v3690, %v3690
          %v3706 = vsel %vm3666, %v3690, %v3705
          %v3707 = vrot.slane %v3702, 7
          %v3708 = vsel %vm3669, %v3707, %v3706
          %v3709 = vsel %vm3671, %v3707, %v3708
          %v3710 = vsel %vm3673, %v3707, %v3709
          %v3711 = vsel %vm3675, %v3707, %v3710
          %3713 = vst [vmem:[%s933 + $0x2] sm:$0x3] %v3711
        $region132: #{tpu_custom_call.1} parent=71 // pred_fallthru
          _
        %s3714 = sand.u32 %s423, 1
        %s3715 = scalar_lea.sflag [#allocation6], %s3714
        %s3716 = sand.u32 %s423, 1
        %s3717 = smul.addr %s3716, 4
        %s3718 = scalar_lea.vmem [#allocation25], %s3717
        // Predicated region
        $region133: #{tpu_custom_call.1} parent=71 // pred_check
          %p3719 = pneg %p433
        $region134: #{tpu_custom_call.1} parent=71 // pred_check_branch
          %3721 = sbr.rel (%p3719) target = $region136
        $region135: #{tpu_custom_call.1} parent=71 // pred_region
          %3723 = vsyncadd %s3715, 0
          %s3724 = smul.addr %s50, 2
          %s3725 = smul.addr %s3724, 2
          %s3726 = scalar_lea.hbm %s13, %s3725
          %s3728 = sshll.u32 %s3718, 4
          %s3729 = int_to_ptr.vmem [resolvable:$true] %s3728
          %s3730 = sshll.u32 %s3726, 4
          %s3731 = int_to_ptr.hbm [resolvable:$true] %s3730
          %3733 = dma.vmem_to_hbm [thread:$0]  %s3729, 64, %s3731, %s3715
        $region136: #{tpu_custom_call.1} parent=71 // pred_fallthru
          _
      $region72: #{tpu_custom_call.1} parent=5 // pred_fallthru
        _
      %p3734 = scmp.le.s32.totalorder 2, %s41
      // Predicated region
      $region137: #{tpu_custom_call.1} parent=5 // pred_check
        %p3735 = pneg %p3734
      $region138: #{tpu_custom_call.1} parent=5 // pred_check_branch
        %3737 = sbr.rel (%p3735) target = $region140
      $region139: #{tpu_custom_call.1} parent=5 // pred_region
        %s3738 = ssub.s32 %s41, 2
        // Predicated region
        $region141: #{tpu_custom_call.1} parent=139 // pred_check
          %p3739 = pneg %p439
        $region142: #{tpu_custom_call.1} parent=139 // pred_check_branch
          %3741 = sbr.rel (%p3739) target = $region144
        $region143: #{tpu_custom_call.1} parent=139 // pred_region
          %s3742 = sand.u32 %s424, 1
          %s3743 = scalar_lea.sflag [#allocation6], %s3742
          %s3744 = sand.u32 %s424, 1
          %s3745 = smul.addr %s3744, 4
          %s3746 = scalar_lea.vmem [#allocation25], %s3745
          %3748 = dma.done %s3743, 64
        $region144: #{tpu_custom_call.1} parent=139 // pred_fallthru
          _
      $region140: #{tpu_custom_call.1} parent=5 // pred_fallthru
        _
    $region6: #{tpu_custom_call.1} parent=1 // loop_footer
      %s45 = sadd.s32 1, %s41
    $region7: #{tpu_custom_call.1} parent=1 // loop_footer_branch
      %40 = sbr.rel target = $region3
    $region8: #{tpu_custom_call.1} parent=1 // loop_exit
      _
    %3749 = vsyncpa [#allocation5], 1
    %s3750 = scalar_lea.sflag [#allocation5], 1
    %3751 = vsyncpa %s3750, 1
    %3752 = vsyncpa [#allocation8], 1
    %s3753 = scalar_lea.sflag [#allocation8], 1
    %3754 = vsyncpa %s3753, 1
    %3755 = vsyncpa [#allocation11], 1
    %s3756 = scalar_lea.sflag [#allocation11], 1
    %3757 = vsyncpa %s3756, 1
    %3758 = vsyncpa [#allocation14], 1
    %s3759 = scalar_lea.sflag [#allocation14], 1
    %3760 = vsyncpa %s3759, 1
    %3761 = vsyncpa [#allocation17], 1
    %s3762 = scalar_lea.sflag [#allocation17], 1
    %3763 = vsyncpa %s3762, 1
    %3764 = vsyncpa [#allocation20], 1
    %s3765 = scalar_lea.sflag [#allocation20], 1
    %3766 = vsyncpa %s3765, 1
    %3767 = vsyncpa [#allocation23], 1
    %s3768 = scalar_lea.sflag [#allocation23], 1
    %3769 = vsyncpa %s3768, 1
    %3770 = vsyncpa [#allocation6], 1
    %s3771 = scalar_lea.sflag [#allocation6], 1
    %3772 = vsyncpa %s3771, 1

</llo_original>
